<compile_context>
chip_gen: v5e
topology: v5e:2x2
jax: 0.10.0
libtpu: 0.0.40
codegen_flags: <defaults>
</compile_context>

<pallas_src>
import jax
import jax.numpy as jnp
from jax.experimental import pallas as pl
from jax.experimental.pallas import tpu as pltpu


def _round_up(x, m):
    return (x + m - 1) // m * m


def _double_conv_kernel(x_ref, w1_ref, b1_ref, w2_ref, b2_ref, o_ref, h_ref):
    # x_ref : (1, H+2, W+2, Cin_p) f32  -- zero spatial halo, zero channel pad
    # w1_ref: (9, Cin_p, C_p)      bf16 -- BN1 scale folded into columns
    # b1_ref: (1, C_p)             f32  -- folded BN1 shift
    # w2_ref: (9, C_p, C_p)        bf16 -- BN2 scale folded into columns
    # b2_ref: (1, C_p)             f32  -- folded BN2 shift
    # o_ref : (1, H, W, C_p)       f32
    # h_ref : (H+2, W+16, C_p)     f32 VMEM scratch; layer-1 activation with a
    #         zero halo, interior at columns [8, 8+W) so the store is aligned.
    hh = x_ref.shape[1] - 2
    ww = x_ref.shape[2] - 2
    cin = x_ref.shape[3]
    cp = w1_ref.shape[2]
    m = hh * ww

    x = x_ref[0]                                         # (H+2, W+2, Cin_p) f32

    # ---- conv1 (+ folded BN1 scale) + bias + ReLU ---------------------------
    acc1 = jnp.zeros((m, cp), jnp.float32)
    for dy in range(3):
        for dx in range(3):
            t = dy * 3 + dx
            tap = x[dy:dy + hh, dx:dx + ww, :].reshape(m, cin)
            acc1 = acc1 + jnp.dot(tap.astype(jnp.bfloat16), w1_ref[t],
                                  preferred_element_type=jnp.float32)
    h1 = jnp.maximum(acc1 + b1_ref[...], 0.0)            # (M, C_p) f32

    # Stage layer-1 activation in VMEM with a zero halo (aligned interior store).
    h_ref[...] = jnp.zeros_like(h_ref)
    h_ref[pl.ds(1, hh), pl.ds(8, ww), :] = h1.reshape(hh, ww, cp)

    # ---- conv2 (+ folded BN2 scale) + bias + ReLU ---------------------------
    acc2 = jnp.zeros((m, cp), jnp.float32)
    for dy in range(3):
        for dx in range(3):
            t = dy * 3 + dx
            tap = h_ref[pl.ds(dy, hh), pl.ds(7 + dx, ww), :].reshape(m, cp)
            acc2 = acc2 + jnp.dot(tap.astype(jnp.bfloat16), w2_ref[t],
                                  preferred_element_type=jnp.float32)
    y = jnp.maximum(acc2 + b2_ref[...], 0.0)
    o_ref[0] = y.reshape(hh, ww, cp).astype(o_ref.dtype)


def _fold_bn(gamma, beta, running_mean, running_var, eps=1e-5):
    scale = gamma / jnp.sqrt(running_var + eps)
    shift = beta - running_mean * scale
    return scale, shift


def _prep_weight(w_oihw, scale, cin_pad, cout_pad):
    """(Cout, Cin, 3, 3) -> (9, Cin_p, Cout_p) bf16, BN scale folded in."""
    co, ci, kh, kw = w_oihw.shape
    wm = jnp.transpose(w_oihw, (2, 3, 1, 0)).reshape(kh * kw, ci, co)
    wm = wm * scale[None, None, :]
    wm = jnp.pad(wm, ((0, 0), (0, cin_pad - ci), (0, cout_pad - co)))
    return wm.astype(jnp.bfloat16)


def double_convolution(x_nchw, params):
    (w1, g1, b1, m1, v1, w2, g2, b2, m2, v2) = params
    n, cin, h, w = x_nchw.shape
    cout = w1.shape[0]
    cin_p = _round_up(cin, 128)
    cout_p = _round_up(cout, 128)

    s1, sh1 = _fold_bn(g1, b1, m1, v1)
    s2, sh2 = _fold_bn(g2, b2, m2, v2)

    w1p = _prep_weight(w1, s1, cin_p, cout_p)
    w2p = _prep_weight(w2, s2, cout_p, cout_p)
    b1p = jnp.pad(sh1, (0, cout_p - cout)).reshape(1, cout_p).astype(jnp.float32)
    b2p = jnp.pad(sh2, (0, cout_p - cout)).reshape(1, cout_p).astype(jnp.float32)

    # NCHW -> NHWC, 1-pixel spatial zero halo, channel zero-pad (glue).
    x = jnp.transpose(x_nchw, (0, 2, 3, 1))
    x_p = jnp.pad(x, ((0, 0), (1, 1), (1, 1), (0, cin_p - cin))).astype(jnp.float32)

    cost = pl.CostEstimate(
        flops=2 * n * h * w * 9 * cout_p * (cin_p + cout_p),
        transcendentals=0,
        bytes_accessed=(n * (h + 2) * (w + 2) * cin_p * 4
                        + 9 * cin_p * cout_p * 2 + 9 * cout_p * cout_p * 2
                        + 2 * cout_p * 4
                        + n * h * w * cout_p * 4),
    )

    out = pl.pallas_call(
        _double_conv_kernel,
        out_shape=jax.ShapeDtypeStruct((n, h, w, cout_p), jnp.float32),
        grid_spec=pltpu.PrefetchScalarGridSpec(
            num_scalar_prefetch=0,
            grid=(n,),
            in_specs=[
                pl.BlockSpec((1, h + 2, w + 2, cin_p), lambda i: (i, 0, 0, 0)),
                pl.BlockSpec((9, cin_p, cout_p), lambda i: (0, 0, 0)),
                pl.BlockSpec((1, cout_p), lambda i: (0, 0)),
                pl.BlockSpec((9, cout_p, cout_p), lambda i: (0, 0, 0)),
                pl.BlockSpec((1, cout_p), lambda i: (0, 0)),
            ],
            out_specs=pl.BlockSpec((1, h, w, cout_p), lambda i: (i, 0, 0, 0)),
            scratch_shapes=[pltpu.VMEM((h + 2, w + 16, cout_p), jnp.float32)],
        ),
        compiler_params=pltpu.CompilerParams(dimension_semantics=("parallel",)),
        cost_estimate=cost,
    )(x_p, w1p, b1p, w2p, b2p)

    out = out[..., :cout]                        # drop channel padding
    return jnp.transpose(out, (0, 3, 1, 2))      # NHWC -> NCHW


def _reference(x_nchw, params):
    (w1, g1, b1, m1, v1, w2, g2, b2, m2, v2) = params

    def conv(x, w):
        return jax.lax.conv_general_dilated(
            x, w, window_strides=(1, 1), padding="SAME",
            dimension_numbers=("NCHW", "OIHW", "NCHW"))

    def bn_relu(y, g, b, mean, var):
        s, sh = _fold_bn(g, b, mean, var)
        return jnp.maximum(y * s[None, :, None, None] + sh[None, :, None, None], 0.0)

    y = bn_relu(conv(x_nchw, w1), g1, b1, m1, v1)
    y = bn_relu(conv(y, w2), g2, b2, m2, v2)
    return y


if __name__ == "__main__":
    key = jax.random.PRNGKey(0)
    N, Cin, Cout, H, W = 2, 4, 8, 16, 16

    keys = jax.random.split(key, 11)
    x = jax.random.normal(keys[0], (N, Cin, H, W), dtype=jnp.float32)

    w1 = 0.1 * jax.random.normal(keys[1], (Cout, Cin, 3, 3), dtype=jnp.float32)
    g1 = 1.0 + 0.1 * jax.random.normal(keys[2], (Cout,), dtype=jnp.float32)
    b1 = 0.1 * jax.random.normal(keys[3], (Cout,), dtype=jnp.float32)
    m1 = 0.1 * jax.random.normal(keys[4], (Cout,), dtype=jnp.float32)
    v1 = jnp.abs(jax.random.normal(keys[5], (Cout,), dtype=jnp.float32)) + 0.5

    w2 = 0.1 * jax.random.normal(keys[6], (Cout, Cout, 3, 3), dtype=jnp.float32)
    g2 = 1.0 + 0.1 * jax.random.normal(keys[7], (Cout,), dtype=jnp.float32)
    b2 = 0.1 * jax.random.normal(keys[8], (Cout,), dtype=jnp.float32)
    m2 = 0.1 * jax.random.normal(keys[9], (Cout,), dtype=jnp.float32)
    v2 = jnp.abs(jax.random.normal(keys[10], (Cout,), dtype=jnp.float32)) + 0.5

    params = (w1, g1, b1, m1, v1, w2, g2, b2, m2, v2)

    out = jax.jit(double_convolution)(x, params)
    out = jax.block_until_ready(out)

    ref = _reference(x, params)
    assert out.shape == (N, Cout, H, W), out.shape
    # bf16 MXU operands with f32 accumulation -> relaxed tolerance vs f32 reference.
    assert jnp.allclose(out, ref, atol=2e-2, rtol=2e-2), "mismatch vs reference conv"

    print("KERNEL_OK")
</pallas_src>

<mosaic_0001>
module attributes {stable_mosaic.version = 11 : i64} {
  func.func @_double_conv_kernel(%arg0: i32, %arg1: memref<1x18x18x128xf32, #tpu.memory_space<vmem>>, %arg2: memref<9x128x128xbf16, #tpu.memory_space<vmem>>, %arg3: memref<1x128xf32, #tpu.memory_space<vmem>>, %arg4: memref<9x128x128xbf16, #tpu.memory_space<vmem>>, %arg5: memref<1x128xf32, #tpu.memory_space<vmem>>, %arg6: memref<1x16x16x128xf32, #tpu.memory_space<vmem>>, %arg7: memref<18x32x128xf32, #tpu.memory_space<vmem>>) attributes {dimension_semantics = [#tpu.dimension_semantics<parallel>], iteration_bounds = array<i64: 2>, scalar_prefetch = 0 : i64, scratch_operands = 1 : i64, tpu.core_type = #tpu.core_type<tc>, window_params = [{transform_indices = @transform_0, window_bounds = array<i64: 1, 18, 18, 128>}, {pipeline_mode = #tpu.pipeline_mode<synchronous>, transform_indices = @transform_1, window_bounds = array<i64: 9, 128, 128>}, {pipeline_mode = #tpu.pipeline_mode<synchronous>, transform_indices = @transform_2, window_bounds = array<i64: 1, 128>}, {pipeline_mode = #tpu.pipeline_mode<synchronous>, transform_indices = @transform_3, window_bounds = array<i64: 9, 128, 128>}, {pipeline_mode = #tpu.pipeline_mode<synchronous>, transform_indices = @transform_4, window_bounds = array<i64: 1, 128>}, {transform_indices = @transform_5, window_bounds = array<i64: 1, 16, 16, 128>}]} {
    %c0 = arith.constant 0 : index
    %c0_0 = arith.constant 0 : index
    %c0_1 = arith.constant 0 : index
    %c0_2 = arith.constant 0 : index
    %0 = vector.load %arg1[%c0, %c0_0, %c0_1, %c0_2] : memref<1x18x18x128xf32, #tpu.memory_space<vmem>>, vector<1x18x18x128xf32>
    %1 = vector.shape_cast %0 : vector<1x18x18x128xf32> to vector<18x18x128xf32>
    %cst = arith.constant 0.000000e+00 : f32
    %2 = vector.broadcast %cst : f32 to vector<256x128xf32>
    %3 = vector.extract_strided_slice %1 {offsets = [0, 0, 0], sizes = [16, 16, 128], strides = [1, 1, 1]} : vector<18x18x128xf32> to vector<16x16x128xf32>
    %4 = vector.shape_cast %3 : vector<16x16x128xf32> to vector<256x128xf32>
    %5 = arith.truncf %4 : vector<256x128xf32> to vector<256x128xbf16>
    %c0_3 = arith.constant 0 : index
    %c0_4 = arith.constant 0 : index
    %c0_5 = arith.constant 0 : index
    %6 = vector.load %arg2[%c0_3, %c0_4, %c0_5] : memref<9x128x128xbf16, #tpu.memory_space<vmem>>, vector<1x128x128xbf16>
    %7 = vector.shape_cast %6 : vector<1x128x128xbf16> to vector<128x128xbf16>
    %cst_6 = arith.constant dense<0.000000e+00> : vector<256x128xf32>
    %8 = tpu.matmul %5, %7, %cst_6 {dimension_numbers = #tpu.dot_dimension_numbers<[1], [0], [0], [1], [0, 0, 1, 1], [], []>} : vector<256x128xbf16>, vector<128x128xbf16>, vector<256x128xf32> -> vector<256x128xf32>
    %9 = arith.addf %2, %8 : vector<256x128xf32>
    %10 = vector.extract_strided_slice %1 {offsets = [0, 1, 0], sizes = [16, 16, 128], strides = [1, 1, 1]} : vector<18x18x128xf32> to vector<16x16x128xf32>
    %11 = vector.shape_cast %10 : vector<16x16x128xf32> to vector<256x128xf32>
    %12 = arith.truncf %11 : vector<256x128xf32> to vector<256x128xbf16>
    %c1 = arith.constant 1 : index
    %c0_7 = arith.constant 0 : index
    %c0_8 = arith.constant 0 : index
    %13 = vector.load %arg2[%c1, %c0_7, %c0_8] : memref<9x128x128xbf16, #tpu.memory_space<vmem>>, vector<1x128x128xbf16>
    %14 = vector.shape_cast %13 : vector<1x128x128xbf16> to vector<128x128xbf16>
    %cst_9 = arith.constant dense<0.000000e+00> : vector<256x128xf32>
    %15 = tpu.matmul %12, %14, %cst_9 {dimension_numbers = #tpu.dot_dimension_numbers<[1], [0], [0], [1], [0, 0, 1, 1], [], []>} : vector<256x128xbf16>, vector<128x128xbf16>, vector<256x128xf32> -> vector<256x128xf32>
    %16 = arith.addf %9, %15 : vector<256x128xf32>
    %17 = vector.extract_strided_slice %1 {offsets = [0, 2, 0], sizes = [16, 16, 128], strides = [1, 1, 1]} : vector<18x18x128xf32> to vector<16x16x128xf32>
    %18 = vector.shape_cast %17 : vector<16x16x128xf32> to vector<256x128xf32>
    %19 = arith.truncf %18 : vector<256x128xf32> to vector<256x128xbf16>
    %c2 = arith.constant 2 : index
    %c0_10 = arith.constant 0 : index
    %c0_11 = arith.constant 0 : index
    %20 = vector.load %arg2[%c2, %c0_10, %c0_11] : memref<9x128x128xbf16, #tpu.memory_space<vmem>>, vector<1x128x128xbf16>
    %21 = vector.shape_cast %20 : vector<1x128x128xbf16> to vector<128x128xbf16>
    %cst_12 = arith.constant dense<0.000000e+00> : vector<256x128xf32>
    %22 = tpu.matmul %19, %21, %cst_12 {dimension_numbers = #tpu.dot_dimension_numbers<[1], [0], [0], [1], [0, 0, 1, 1], [], []>} : vector<256x128xbf16>, vector<128x128xbf16>, vector<256x128xf32> -> vector<256x128xf32>
    %23 = arith.addf %16, %22 : vector<256x128xf32>
    %24 = vector.extract_strided_slice %1 {offsets = [1, 0, 0], sizes = [16, 16, 128], strides = [1, 1, 1]} : vector<18x18x128xf32> to vector<16x16x128xf32>
    %25 = vector.shape_cast %24 : vector<16x16x128xf32> to vector<256x128xf32>
    %26 = arith.truncf %25 : vector<256x128xf32> to vector<256x128xbf16>
    %c3 = arith.constant 3 : index
    %c0_13 = arith.constant 0 : index
    %c0_14 = arith.constant 0 : index
    %27 = vector.load %arg2[%c3, %c0_13, %c0_14] : memref<9x128x128xbf16, #tpu.memory_space<vmem>>, vector<1x128x128xbf16>
    %28 = vector.shape_cast %27 : vector<1x128x128xbf16> to vector<128x128xbf16>
    %cst_15 = arith.constant dense<0.000000e+00> : vector<256x128xf32>
    %29 = tpu.matmul %26, %28, %cst_15 {dimension_numbers = #tpu.dot_dimension_numbers<[1], [0], [0], [1], [0, 0, 1, 1], [], []>} : vector<256x128xbf16>, vector<128x128xbf16>, vector<256x128xf32> -> vector<256x128xf32>
    %30 = arith.addf %23, %29 : vector<256x128xf32>
    %31 = vector.extract_strided_slice %1 {offsets = [1, 1, 0], sizes = [16, 16, 128], strides = [1, 1, 1]} : vector<18x18x128xf32> to vector<16x16x128xf32>
    %32 = vector.shape_cast %31 : vector<16x16x128xf32> to vector<256x128xf32>
    %33 = arith.truncf %32 : vector<256x128xf32> to vector<256x128xbf16>
    %c4 = arith.constant 4 : index
    %c0_16 = arith.constant 0 : index
    %c0_17 = arith.constant 0 : index
    %34 = vector.load %arg2[%c4, %c0_16, %c0_17] : memref<9x128x128xbf16, #tpu.memory_space<vmem>>, vector<1x128x128xbf16>
    %35 = vector.shape_cast %34 : vector<1x128x128xbf16> to vector<128x128xbf16>
    %cst_18 = arith.constant dense<0.000000e+00> : vector<256x128xf32>
    %36 = tpu.matmul %33, %35, %cst_18 {dimension_numbers = #tpu.dot_dimension_numbers<[1], [0], [0], [1], [0, 0, 1, 1], [], []>} : vector<256x128xbf16>, vector<128x128xbf16>, vector<256x128xf32> -> vector<256x128xf32>
    %37 = arith.addf %30, %36 : vector<256x128xf32>
    %38 = vector.extract_strided_slice %1 {offsets = [1, 2, 0], sizes = [16, 16, 128], strides = [1, 1, 1]} : vector<18x18x128xf32> to vector<16x16x128xf32>
    %39 = vector.shape_cast %38 : vector<16x16x128xf32> to vector<256x128xf32>
    %40 = arith.truncf %39 : vector<256x128xf32> to vector<256x128xbf16>
    %c5 = arith.constant 5 : index
    %c0_19 = arith.constant 0 : index
    %c0_20 = arith.constant 0 : index
    %41 = vector.load %arg2[%c5, %c0_19, %c0_20] : memref<9x128x128xbf16, #tpu.memory_space<vmem>>, vector<1x128x128xbf16>
    %42 = vector.shape_cast %41 : vector<1x128x128xbf16> to vector<128x128xbf16>
    %cst_21 = arith.constant dense<0.000000e+00> : vector<256x128xf32>
    %43 = tpu.matmul %40, %42, %cst_21 {dimension_numbers = #tpu.dot_dimension_numbers<[1], [0], [0], [1], [0, 0, 1, 1], [], []>} : vector<256x128xbf16>, vector<128x128xbf16>, vector<256x128xf32> -> vector<256x128xf32>
    %44 = arith.addf %37, %43 : vector<256x128xf32>
    %45 = vector.extract_strided_slice %1 {offsets = [2, 0, 0], sizes = [16, 16, 128], strides = [1, 1, 1]} : vector<18x18x128xf32> to vector<16x16x128xf32>
    %46 = vector.shape_cast %45 : vector<16x16x128xf32> to vector<256x128xf32>
    %47 = arith.truncf %46 : vector<256x128xf32> to vector<256x128xbf16>
    %c6 = arith.constant 6 : index
    %c0_22 = arith.constant 0 : index
    %c0_23 = arith.constant 0 : index
    %48 = vector.load %arg2[%c6, %c0_22, %c0_23] : memref<9x128x128xbf16, #tpu.memory_space<vmem>>, vector<1x128x128xbf16>
    %49 = vector.shape_cast %48 : vector<1x128x128xbf16> to vector<128x128xbf16>
    %cst_24 = arith.constant dense<0.000000e+00> : vector<256x128xf32>
    %50 = tpu.matmul %47, %49, %cst_24 {dimension_numbers = #tpu.dot_dimension_numbers<[1], [0], [0], [1], [0, 0, 1, 1], [], []>} : vector<256x128xbf16>, vector<128x128xbf16>, vector<256x128xf32> -> vector<256x128xf32>
    %51 = arith.addf %44, %50 : vector<256x128xf32>
    %52 = vector.extract_strided_slice %1 {offsets = [2, 1, 0], sizes = [16, 16, 128], strides = [1, 1, 1]} : vector<18x18x128xf32> to vector<16x16x128xf32>
    %53 = vector.shape_cast %52 : vector<16x16x128xf32> to vector<256x128xf32>
    %54 = arith.truncf %53 : vector<256x128xf32> to vector<256x128xbf16>
    %c7 = arith.constant 7 : index
    %c0_25 = arith.constant 0 : index
    %c0_26 = arith.constant 0 : index
    %55 = vector.load %arg2[%c7, %c0_25, %c0_26] : memref<9x128x128xbf16, #tpu.memory_space<vmem>>, vector<1x128x128xbf16>
    %56 = vector.shape_cast %55 : vector<1x128x128xbf16> to vector<128x128xbf16>
    %cst_27 = arith.constant dense<0.000000e+00> : vector<256x128xf32>
    %57 = tpu.matmul %54, %56, %cst_27 {dimension_numbers = #tpu.dot_dimension_numbers<[1], [0], [0], [1], [0, 0, 1, 1], [], []>} : vector<256x128xbf16>, vector<128x128xbf16>, vector<256x128xf32> -> vector<256x128xf32>
    %58 = arith.addf %51, %57 : vector<256x128xf32>
    %59 = vector.extract_strided_slice %1 {offsets = [2, 2, 0], sizes = [16, 16, 128], strides = [1, 1, 1]} : vector<18x18x128xf32> to vector<16x16x128xf32>
    %60 = vector.shape_cast %59 : vector<16x16x128xf32> to vector<256x128xf32>
    %61 = arith.truncf %60 : vector<256x128xf32> to vector<256x128xbf16>
    %c8 = arith.constant 8 : index
    %c0_28 = arith.constant 0 : index
    %c0_29 = arith.constant 0 : index
    %62 = vector.load %arg2[%c8, %c0_28, %c0_29] : memref<9x128x128xbf16, #tpu.memory_space<vmem>>, vector<1x128x128xbf16>
    %63 = vector.shape_cast %62 : vector<1x128x128xbf16> to vector<128x128xbf16>
    %cst_30 = arith.constant dense<0.000000e+00> : vector<256x128xf32>
    %64 = tpu.matmul %61, %63, %cst_30 {dimension_numbers = #tpu.dot_dimension_numbers<[1], [0], [0], [1], [0, 0, 1, 1], [], []>} : vector<256x128xbf16>, vector<128x128xbf16>, vector<256x128xf32> -> vector<256x128xf32>
    %65 = arith.addf %58, %64 : vector<256x128xf32>
    %c0_31 = arith.constant 0 : index
    %c0_32 = arith.constant 0 : index
    %66 = vector.load %arg3[%c0_31, %c0_32] : memref<1x128xf32, #tpu.memory_space<vmem>>, vector<1x128xf32>
    %67 = vector.broadcast %66 : vector<1x128xf32> to vector<256x128xf32>
    %68 = arith.addf %65, %67 : vector<256x128xf32>
    %cst_33 = arith.constant 0.000000e+00 : f32
    %69 = vector.broadcast %cst_33 : f32 to vector<256x128xf32>
    %70 = arith.maximumf %68, %69 : vector<256x128xf32>
    %cst_34 = arith.constant 0.000000e+00 : f32
    %71 = vector.broadcast %cst_34 : f32 to vector<18x32x128xf32>
    %c0_35 = arith.constant 0 : index
    %c0_36 = arith.constant 0 : index
    %c0_37 = arith.constant 0 : index
    %72 = vector.load %arg7[%c0_35, %c0_36, %c0_37] : memref<18x32x128xf32, #tpu.memory_space<vmem>>, vector<18x32x128xf32>
    tpu.vector_store %arg7[%c0_35, %c0_36, %c0_37], %71 {strides = array<i32>} : memref<18x32x128xf32, #tpu.memory_space<vmem>>, vector<18x32x128xf32>,
    %73 = vector.shape_cast %70 : vector<256x128xf32> to vector<16x16x128xf32>
    %c1_38 = arith.constant 1 : index
    %c8_39 = arith.constant 8 : index
    %c0_40 = arith.constant 0 : index
    %74 = vector.load %arg7[%c1_38, %c8_39, %c0_40] : memref<18x32x128xf32, #tpu.memory_space<vmem>>, vector<16x16x128xf32>
    tpu.vector_store %arg7[%c1_38, %c8_39, %c0_40], %73 {strides = array<i32>} : memref<18x32x128xf32, #tpu.memory_space<vmem>>, vector<16x16x128xf32>,
    %cst_41 = arith.constant 0.000000e+00 : f32
    %75 = vector.broadcast %cst_41 : f32 to vector<256x128xf32>
    %c0_42 = arith.constant 0 : index
    %c7_43 = arith.constant 7 : index
    %c0_44 = arith.constant 0 : index
    %76 = vector.load %arg7[%c0_42, %c7_43, %c0_44] : memref<18x32x128xf32, #tpu.memory_space<vmem>>, vector<16x16x128xf32>
    %77 = vector.shape_cast %76 : vector<16x16x128xf32> to vector<256x128xf32>
    %78 = arith.truncf %77 : vector<256x128xf32> to vector<256x128xbf16>
    %c0_45 = arith.constant 0 : index
    %c0_46 = arith.constant 0 : index
    %c0_47 = arith.constant 0 : index
    %79 = vector.load %arg4[%c0_45, %c0_46, %c0_47] : memref<9x128x128xbf16, #tpu.memory_space<vmem>>, vector<1x128x128xbf16>
    %80 = vector.shape_cast %79 : vector<1x128x128xbf16> to vector<128x128xbf16>
    %cst_48 = arith.constant dense<0.000000e+00> : vector<256x128xf32>
    %81 = tpu.matmul %78, %80, %cst_48 {dimension_numbers = #tpu.dot_dimension_numbers<[1], [0], [0], [1], [0, 0, 1, 1], [], []>} : vector<256x128xbf16>, vector<128x128xbf16>, vector<256x128xf32> -> vector<256x128xf32>
    %82 = arith.addf %75, %81 : vector<256x128xf32>
    %c0_49 = arith.constant 0 : index
    %c8_50 = arith.constant 8 : index
    %c0_51 = arith.constant 0 : index
    %83 = vector.load %arg7[%c0_49, %c8_50, %c0_51] : memref<18x32x128xf32, #tpu.memory_space<vmem>>, vector<16x16x128xf32>
    %84 = vector.shape_cast %83 : vector<16x16x128xf32> to vector<256x128xf32>
    %85 = arith.truncf %84 : vector<256x128xf32> to vector<256x128xbf16>
    %c1_52 = arith.constant 1 : index
    %c0_53 = arith.constant 0 : index
    %c0_54 = arith.constant 0 : index
    %86 = vector.load %arg4[%c1_52, %c0_53, %c0_54] : memref<9x128x128xbf16, #tpu.memory_space<vmem>>, vector<1x128x128xbf16>
    %87 = vector.shape_cast %86 : vector<1x128x128xbf16> to vector<128x128xbf16>
    %cst_55 = arith.constant dense<0.000000e+00> : vector<256x128xf32>
    %88 = tpu.matmul %85, %87, %cst_55 {dimension_numbers = #tpu.dot_dimension_numbers<[1], [0], [0], [1], [0, 0, 1, 1], [], []>} : vector<256x128xbf16>, vector<128x128xbf16>, vector<256x128xf32> -> vector<256x128xf32>
    %89 = arith.addf %82, %88 : vector<256x128xf32>
    %c0_56 = arith.constant 0 : index
    %c9 = arith.constant 9 : index
    %c0_57 = arith.constant 0 : index
    %90 = vector.load %arg7[%c0_56, %c9, %c0_57] : memref<18x32x128xf32, #tpu.memory_space<vmem>>, vector<16x16x128xf32>
    %91 = vector.shape_cast %90 : vector<16x16x128xf32> to vector<256x128xf32>
    %92 = arith.truncf %91 : vector<256x128xf32> to vector<256x128xbf16>
    %c2_58 = arith.constant 2 : index
    %c0_59 = arith.constant 0 : index
    %c0_60 = arith.constant 0 : index
    %93 = vector.load %arg4[%c2_58, %c0_59, %c0_60] : memref<9x128x128xbf16, #tpu.memory_space<vmem>>, vector<1x128x128xbf16>
    %94 = vector.shape_cast %93 : vector<1x128x128xbf16> to vector<128x128xbf16>
    %cst_61 = arith.constant dense<0.000000e+00> : vector<256x128xf32>
    %95 = tpu.matmul %92, %94, %cst_61 {dimension_numbers = #tpu.dot_dimension_numbers<[1], [0], [0], [1], [0, 0, 1, 1], [], []>} : vector<256x128xbf16>, vector<128x128xbf16>, vector<256x128xf32> -> vector<256x128xf32>
    %96 = arith.addf %89, %95 : vector<256x128xf32>
    %c1_62 = arith.constant 1 : index
    %c7_63 = arith.constant 7 : index
    %c0_64 = arith.constant 0 : index
    %97 = vector.load %arg7[%c1_62, %c7_63, %c0_64] : memref<18x32x128xf32, #tpu.memory_space<vmem>>, vector<16x16x128xf32>
    %98 = vector.shape_cast %97 : vector<16x16x128xf32> to vector<256x128xf32>
    %99 = arith.truncf %98 : vector<256x128xf32> to vector<256x128xbf16>
    %c3_65 = arith.constant 3 : index
    %c0_66 = arith.constant 0 : index
    %c0_67 = arith.constant 0 : index
    %100 = vector.load %arg4[%c3_65, %c0_66, %c0_67] : memref<9x128x128xbf16, #tpu.memory_space<vmem>>, vector<1x128x128xbf16>
    %101 = vector.shape_cast %100 : vector<1x128x128xbf16> to vector<128x128xbf16>
    %cst_68 = arith.constant dense<0.000000e+00> : vector<256x128xf32>
    %102 = tpu.matmul %99, %101, %cst_68 {dimension_numbers = #tpu.dot_dimension_numbers<[1], [0], [0], [1], [0, 0, 1, 1], [], []>} : vector<256x128xbf16>, vector<128x128xbf16>, vector<256x128xf32> -> vector<256x128xf32>
    %103 = arith.addf %96, %102 : vector<256x128xf32>
    %c1_69 = arith.constant 1 : index
    %c8_70 = arith.constant 8 : index
    %c0_71 = arith.constant 0 : index
    %104 = vector.load %arg7[%c1_69, %c8_70, %c0_71] : memref<18x32x128xf32, #tpu.memory_space<vmem>>, vector<16x16x128xf32>
    %105 = vector.shape_cast %104 : vector<16x16x128xf32> to vector<256x128xf32>
    %106 = arith.truncf %105 : vector<256x128xf32> to vector<256x128xbf16>
    %c4_72 = arith.constant 4 : index
    %c0_73 = arith.constant 0 : index
    %c0_74 = arith.constant 0 : index
    %107 = vector.load %arg4[%c4_72, %c0_73, %c0_74] : memref<9x128x128xbf16, #tpu.memory_space<vmem>>, vector<1x128x128xbf16>
    %108 = vector.shape_cast %107 : vector<1x128x128xbf16> to vector<128x128xbf16>
    %cst_75 = arith.constant dense<0.000000e+00> : vector<256x128xf32>
    %109 = tpu.matmul %106, %108, %cst_75 {dimension_numbers = #tpu.dot_dimension_numbers<[1], [0], [0], [1], [0, 0, 1, 1], [], []>} : vector<256x128xbf16>, vector<128x128xbf16>, vector<256x128xf32> -> vector<256x128xf32>
    %110 = arith.addf %103, %109 : vector<256x128xf32>
    %c1_76 = arith.constant 1 : index
    %c9_77 = arith.constant 9 : index
    %c0_78 = arith.constant 0 : index
    %111 = vector.load %arg7[%c1_76, %c9_77, %c0_78] : memref<18x32x128xf32, #tpu.memory_space<vmem>>, vector<16x16x128xf32>
    %112 = vector.shape_cast %111 : vector<16x16x128xf32> to vector<256x128xf32>
    %113 = arith.truncf %112 : vector<256x128xf32> to vector<256x128xbf16>
    %c5_79 = arith.constant 5 : index
    %c0_80 = arith.constant 0 : index
    %c0_81 = arith.constant 0 : index
    %114 = vector.load %arg4[%c5_79, %c0_80, %c0_81] : memref<9x128x128xbf16, #tpu.memory_space<vmem>>, vector<1x128x128xbf16>
    %115 = vector.shape_cast %114 : vector<1x128x128xbf16> to vector<128x128xbf16>
    %cst_82 = arith.constant dense<0.000000e+00> : vector<256x128xf32>
    %116 = tpu.matmul %113, %115, %cst_82 {dimension_numbers = #tpu.dot_dimension_numbers<[1], [0], [0], [1], [0, 0, 1, 1], [], []>} : vector<256x128xbf16>, vector<128x128xbf16>, vector<256x128xf32> -> vector<256x128xf32>
    %117 = arith.addf %110, %116 : vector<256x128xf32>
    %c2_83 = arith.constant 2 : index
    %c7_84 = arith.constant 7 : index
    %c0_85 = arith.constant 0 : index
    %118 = vector.load %arg7[%c2_83, %c7_84, %c0_85] : memref<18x32x128xf32, #tpu.memory_space<vmem>>, vector<16x16x128xf32>
    %119 = vector.shape_cast %118 : vector<16x16x128xf32> to vector<256x128xf32>
    %120 = arith.truncf %119 : vector<256x128xf32> to vector<256x128xbf16>
    %c6_86 = arith.constant 6 : index
    %c0_87 = arith.constant 0 : index
    %c0_88 = arith.constant 0 : index
    %121 = vector.load %arg4[%c6_86, %c0_87, %c0_88] : memref<9x128x128xbf16, #tpu.memory_space<vmem>>, vector<1x128x128xbf16>
    %122 = vector.shape_cast %121 : vector<1x128x128xbf16> to vector<128x128xbf16>
    %cst_89 = arith.constant dense<0.000000e+00> : vector<256x128xf32>
    %123 = tpu.matmul %120, %122, %cst_89 {dimension_numbers = #tpu.dot_dimension_numbers<[1], [0], [0], [1], [0, 0, 1, 1], [], []>} : vector<256x128xbf16>, vector<128x128xbf16>, vector<256x128xf32> -> vector<256x128xf32>
    %124 = arith.addf %117, %123 : vector<256x128xf32>
    %c2_90 = arith.constant 2 : index
    %c8_91 = arith.constant 8 : index
    %c0_92 = arith.constant 0 : index
    %125 = vector.load %arg7[%c2_90, %c8_91, %c0_92] : memref<18x32x128xf32, #tpu.memory_space<vmem>>, vector<16x16x128xf32>
    %126 = vector.shape_cast %125 : vector<16x16x128xf32> to vector<256x128xf32>
    %127 = arith.truncf %126 : vector<256x128xf32> to vector<256x128xbf16>
    %c7_93 = arith.constant 7 : index
    %c0_94 = arith.constant 0 : index
    %c0_95 = arith.constant 0 : index
    %128 = vector.load %arg4[%c7_93, %c0_94, %c0_95] : memref<9x128x128xbf16, #tpu.memory_space<vmem>>, vector<1x128x128xbf16>
    %129 = vector.shape_cast %128 : vector<1x128x128xbf16> to vector<128x128xbf16>
    %cst_96 = arith.constant dense<0.000000e+00> : vector<256x128xf32>
    %130 = tpu.matmul %127, %129, %cst_96 {dimension_numbers = #tpu.dot_dimension_numbers<[1], [0], [0], [1], [0, 0, 1, 1], [], []>} : vector<256x128xbf16>, vector<128x128xbf16>, vector<256x128xf32> -> vector<256x128xf32>
    %131 = arith.addf %124, %130 : vector<256x128xf32>
    %c2_97 = arith.constant 2 : index
    %c9_98 = arith.constant 9 : index
    %c0_99 = arith.constant 0 : index
    %132 = vector.load %arg7[%c2_97, %c9_98, %c0_99] : memref<18x32x128xf32, #tpu.memory_space<vmem>>, vector<16x16x128xf32>
    %133 = vector.shape_cast %132 : vector<16x16x128xf32> to vector<256x128xf32>
    %134 = arith.truncf %133 : vector<256x128xf32> to vector<256x128xbf16>
    %c8_100 = arith.constant 8 : index
    %c0_101 = arith.constant 0 : index
    %c0_102 = arith.constant 0 : index
    %135 = vector.load %arg4[%c8_100, %c0_101, %c0_102] : memref<9x128x128xbf16, #tpu.memory_space<vmem>>, vector<1x128x128xbf16>
    %136 = vector.shape_cast %135 : vector<1x128x128xbf16> to vector<128x128xbf16>
    %cst_103 = arith.constant dense<0.000000e+00> : vector<256x128xf32>
    %137 = tpu.matmul %134, %136, %cst_103 {dimension_numbers = #tpu.dot_dimension_numbers<[1], [0], [0], [1], [0, 0, 1, 1], [], []>} : vector<256x128xbf16>, vector<128x128xbf16>, vector<256x128xf32> -> vector<256x128xf32>
    %138 = arith.addf %131, %137 : vector<256x128xf32>
    %c0_104 = arith.constant 0 : index
    %c0_105 = arith.constant 0 : index
    %139 = vector.load %arg5[%c0_104, %c0_105] : memref<1x128xf32, #tpu.memory_space<vmem>>, vector<1x128xf32>
    %140 = vector.broadcast %139 : vector<1x128xf32> to vector<256x128xf32>
    %141 = arith.addf %138, %140 : vector<256x128xf32>
    %cst_106 = arith.constant 0.000000e+00 : f32
    %142 = vector.broadcast %cst_106 : f32 to vector<256x128xf32>
    %143 = arith.maximumf %141, %142 : vector<256x128xf32>
    %144 = vector.shape_cast %143 : vector<256x128xf32> to vector<16x16x128xf32>
    %c0_107 = arith.constant 0 : index
    %c0_108 = arith.constant 0 : index
    %c0_109 = arith.constant 0 : index
    %c0_110 = arith.constant 0 : index
    %145 = vector.load %arg6[%c0_107, %c0_108, %c0_109, %c0_110] : memref<1x16x16x128xf32, #tpu.memory_space<vmem>>, vector<1x16x16x128xf32>
    %146 = vector.shape_cast %145 : vector<1x16x16x128xf32> to vector<16x16x128xf32>
    %147 = vector.shape_cast %144 : vector<16x16x128xf32> to vector<1x16x16x128xf32>
    tpu.vector_store %arg6[%c0_107, %c0_108, %c0_109, %c0_110], %147 {strides = array<i32>} : memref<1x16x16x128xf32, #tpu.memory_space<vmem>>, vector<1x16x16x128xf32>,
    return
  }
  func.func @transform_0(%arg0: i32) -> (i32, i32, i32, i32) {
    %c0_i32 = arith.constant 0 : i32
    %c0_i32_0 = arith.constant 0 : i32
    %c0_i32_1 = arith.constant 0 : i32
    %c0_i32_2 = arith.constant 0 : i32
    return %arg0, %c0_i32, %c0_i32_0, %c0_i32_1 : i32, i32, i32, i32
  }
  func.func @transform_1(%arg0: i32) -> (i32, i32, i32) {
    %c0_i32 = arith.constant 0 : i32
    %c0_i32_0 = arith.constant 0 : i32
    %c0_i32_1 = arith.constant 0 : i32
    %c0_i32_2 = arith.constant 0 : i32
    return %c0_i32, %c0_i32_0, %c0_i32_1 : i32, i32, i32
  }
  func.func @transform_2(%arg0: i32) -> (i32, i32) {
    %c0_i32 = arith.constant 0 : i32
    %c0_i32_0 = arith.constant 0 : i32
    %c0_i32_1 = arith.constant 0 : i32
    return %c0_i32, %c0_i32_0 : i32, i32
  }
  func.func @transform_3(%arg0: i32) -> (i32, i32, i32) {
    %c0_i32 = arith.constant 0 : i32
    %c0_i32_0 = arith.constant 0 : i32
    %c0_i32_1 = arith.constant 0 : i32
    %c0_i32_2 = arith.constant 0 : i32
    return %c0_i32, %c0_i32_0, %c0_i32_1 : i32, i32, i32
  }
  func.func @transform_4(%arg0: i32) -> (i32, i32) {
    %c0_i32 = arith.constant 0 : i32
    %c0_i32_0 = arith.constant 0 : i32
    %c0_i32_1 = arith.constant 0 : i32
    return %c0_i32, %c0_i32_0 : i32, i32
  }
  func.func @transform_5(%arg0: i32) -> (i32, i32, i32, i32) {
    %c0_i32 = arith.constant 0 : i32
    %c0_i32_0 = arith.constant 0 : i32
    %c0_i32_1 = arith.constant 0 : i32
    %c0_i32_2 = arith.constant 0 : i32
    return %arg0, %c0_i32, %c0_i32_0, %c0_i32_1 : i32, i32, i32, i32
  }
}

</mosaic_0001>

<llo_original>
// kernel: double_convolution.1
$region0: #{double_convolution.1}
  #allocation0 [shape = 'u32[]', space=smem, size = 0x4, offset = 0x4, fixed_abs, tag = 'smem constant byte address 0x4 - core index']
  #allocation1 [shape = 'u32[72,128]{1,0:T(1,128)}', space=vmem, size = 0x9000, scoped, tag = 'internal scratch']
  #allocation2 [shape = 'f32[18,32,128]{2,1,0:T(8,128)}', space=vmem, size = 0x48000, scoped, tag = 'scratch operand']
  %s0 = inlined_call_operand.vmem [shape: f32[2,18,18,128], index: 0, kind: input, shape index: {}]
  %s1 = inlined_call_operand.vmem [shape: bf16[9,128,128], index: 1, kind: input, shape index: {}]
  %s2 = inlined_call_operand.vmem [shape: f32[1,128], index: 2, kind: input, shape index: {}]
  %s3 = inlined_call_operand.vmem [shape: bf16[9,128,128], index: 3, kind: input, shape index: {}]
  %s4 = inlined_call_operand.vmem [shape: f32[1,128], index: 4, kind: input, shape index: {}]
  %s5 = inlined_call_operand.vmem [shape: f32[2,16,16,128], index: 5, kind: output, shape index: {}]
  %s6 = sld [smem:[#allocation0]]
  $region53: #{double_convolution.1} parent=0
    _
  %s8 = ssub.s32 1, %s6
  %s9 = scalar_select 0, %s8, %s6
  loop: start=0, step=1, limit=4
  $region2: #{double_convolution.1} parent=0 // loop_pre_header
    _
  $region3: #{double_convolution.1} parent=0 // loop_header
    %s11 = sphi 0, %s15
    %p12 = scmp.ge.s32.totalorder %s11, 4
    %s21 = sphi 0, %s23
    %s24 = sphi 0, %s21
    %s25 = sphi 0, %s24
    %s41 = sphi 0, %s25
    %s45 = sphi 0, %s45
    %s47 = sphi 0, %s45
    %s48 = sphi 0, %s47
    %s62 = sphi 0, %s48
    %s66 = sphi 0, %s66
    %s68 = sphi 0, %s66
    %s69 = sphi 0, %s68
    %s83 = sphi 0, %s69
    %s87 = sphi 0, %s87
    %s89 = sphi 0, %s87
    %s90 = sphi 0, %s89
    %s104 = sphi 0, %s90
    %s108 = sphi 0, %s108
    %s110 = sphi 0, %s108
    %s111 = sphi 0, %s110
    %s125 = sphi 0, %s111
    %s131 = sphi 0, %s133
    %s134 = sphi 0, %s131
    %s135 = sphi 0, %s134
    %s151 = sphi 0, %s135
  $region4: #{double_convolution.1} parent=0 // loop_header_branch
    %14 = sbr.rel (%p12) target = $region8
  $region5: #{double_convolution.1} parent=0 // loop_body
    %s16 = ssub.s32 %s11, 1
    %s17 = ssub.s32 %s11, 2
    %s18 = sadd.s32 %s11, 1
    %s19 = ssub.s32 %s11, %s18
    %p20 = scmp.eq.s32.totalorder %s19, 0
    %s22 = sadd.s32 %s21, 1
    %s23 = scalar_select %p20, %s21, %s22
    %p26 = pneg %p20
    %p27 = scmp.eq.s32.totalorder %s11, 1
    %p28 = por %p26, %p27
    %p29 = scmp.ne.s32.totalorder %s21, %s24
    %p30 = scmp.eq.s32.totalorder %s11, 0
    %p31 = por %p29, %p30
    %p32 = scmp.ne.s32.totalorder %s21, %s24
    %p33 = scmp.eq.s32.totalorder %s16, 1
    %p34 = por %p32, %p33
    %p35 = scmp.ne.s32.totalorder %s24, %s25
    %p36 = scmp.eq.s32.totalorder %s16, 0
    %p37 = por %p35, %p36
    %p38 = scmp.ne.s32.totalorder %s24, %s25
    %p39 = scmp.eq.s32.totalorder %s17, 1
    %p40 = por %p38, %p39
    %p42 = scmp.ne.s32.totalorder %s25, %s41
    %p43 = scmp.eq.s32.totalorder %s17, 0
    %p44 = por %p42, %p43
    %s46 = sadd.s32 %s45, 1
    %p49 = scmp.eq.s32.totalorder %s11, 1
    %p50 = scmp.ne.s32.totalorder %s45, %s47
    %p51 = scmp.eq.s32.totalorder %s11, 0
    %p52 = por %p50, %p51
    %p53 = scmp.ne.s32.totalorder %s45, %s47
    %p54 = scmp.eq.s32.totalorder %s16, 1
    %p55 = por %p53, %p54
    %p56 = scmp.ne.s32.totalorder %s47, %s48
    %p57 = scmp.eq.s32.totalorder %s16, 0
    %p58 = por %p56, %p57
    %p59 = scmp.ne.s32.totalorder %s47, %s48
    %p60 = scmp.eq.s32.totalorder %s17, 1
    %p61 = por %p59, %p60
    %p63 = scmp.ne.s32.totalorder %s48, %s62
    %p64 = scmp.eq.s32.totalorder %s17, 0
    %p65 = por %p63, %p64
    %s67 = sadd.s32 %s66, 1
    %p70 = scmp.eq.s32.totalorder %s11, 1
    %p71 = scmp.ne.s32.totalorder %s66, %s68
    %p72 = scmp.eq.s32.totalorder %s11, 0
    %p73 = por %p71, %p72
    %p74 = scmp.ne.s32.totalorder %s66, %s68
    %p75 = scmp.eq.s32.totalorder %s16, 1
    %p76 = por %p74, %p75
    %p77 = scmp.ne.s32.totalorder %s68, %s69
    %p78 = scmp.eq.s32.totalorder %s16, 0
    %p79 = por %p77, %p78
    %p80 = scmp.ne.s32.totalorder %s68, %s69
    %p81 = scmp.eq.s32.totalorder %s17, 1
    %p82 = por %p80, %p81
    %p84 = scmp.ne.s32.totalorder %s69, %s83
    %p85 = scmp.eq.s32.totalorder %s17, 0
    %p86 = por %p84, %p85
    %s88 = sadd.s32 %s87, 1
    %p91 = scmp.eq.s32.totalorder %s11, 1
    %p92 = scmp.ne.s32.totalorder %s87, %s89
    %p93 = scmp.eq.s32.totalorder %s11, 0
    %p94 = por %p92, %p93
    %p95 = scmp.ne.s32.totalorder %s87, %s89
    %p96 = scmp.eq.s32.totalorder %s16, 1
    %p97 = por %p95, %p96
    %p98 = scmp.ne.s32.totalorder %s89, %s90
    %p99 = scmp.eq.s32.totalorder %s16, 0
    %p100 = por %p98, %p99
    %p101 = scmp.ne.s32.totalorder %s89, %s90
    %p102 = scmp.eq.s32.totalorder %s17, 1
    %p103 = por %p101, %p102
    %p105 = scmp.ne.s32.totalorder %s90, %s104
    %p106 = scmp.eq.s32.totalorder %s17, 0
    %p107 = por %p105, %p106
    %s109 = sadd.s32 %s108, 1
    %p112 = scmp.eq.s32.totalorder %s11, 1
    %p113 = scmp.ne.s32.totalorder %s108, %s110
    %p114 = scmp.eq.s32.totalorder %s11, 0
    %p115 = por %p113, %p114
    %p116 = scmp.ne.s32.totalorder %s108, %s110
    %p117 = scmp.eq.s32.totalorder %s16, 1
    %p118 = por %p116, %p117
    %p119 = scmp.ne.s32.totalorder %s110, %s111
    %p120 = scmp.eq.s32.totalorder %s16, 0
    %p121 = por %p119, %p120
    %p122 = scmp.ne.s32.totalorder %s110, %s111
    %p123 = scmp.eq.s32.totalorder %s17, 1
    %p124 = por %p122, %p123
    %p126 = scmp.ne.s32.totalorder %s111, %s125
    %p127 = scmp.eq.s32.totalorder %s17, 0
    %p128 = por %p126, %p127
    %s129 = ssub.s32 %s11, %s18
    %p130 = scmp.eq.s32.totalorder %s129, 0
    %s132 = sadd.s32 %s131, 1
    %s133 = scalar_select %p130, %s131, %s132
    %p136 = pneg %p130
    %p137 = scmp.eq.s32.totalorder %s11, 1
    %p138 = por %p136, %p137
    %p139 = scmp.ne.s32.totalorder %s131, %s134
    %p140 = scmp.eq.s32.totalorder %s11, 0
    %p141 = por %p139, %p140
    %p142 = scmp.ne.s32.totalorder %s131, %s134
    %p143 = scmp.eq.s32.totalorder %s16, 1
    %p144 = por %p142, %p143
    %p145 = scmp.ne.s32.totalorder %s134, %s135
    %p146 = scmp.eq.s32.totalorder %s16, 0
    %p147 = por %p145, %p146
    %p148 = scmp.ne.s32.totalorder %s134, %s135
    %p149 = scmp.eq.s32.totalorder %s17, 1
    %p150 = por %p148, %p149
    %p152 = scmp.ne.s32.totalorder %s135, %s151
    %p153 = scmp.eq.s32.totalorder %s17, 0
    %p154 = por %p152, %p153
    %p155 = scmp.le.s32.totalorder 1, %s11
    %p156 = scmp.lt.s32.totalorder %s11, 3
    %p157 = pnand %p155, %p156
    %p158 = pneg %p157
    // Predicated region
    $region9: #{double_convolution.1} parent=5 // pred_check
      _
    $region10: #{double_convolution.1} parent=5 // pred_check_branch
      %160 = sbr.rel (%p157) target = $region12
    $region11: #{double_convolution.1} parent=5 // pred_region
      %s161 = ssub.s32 %s11, 1
      // Predicated region
      $region13: #{double_convolution.1} parent=11 // pred_check
        %p162 = pneg %p58
      $region14: #{double_convolution.1} parent=11 // pred_check_branch
        %164 = sbr.rel (%p162) target = $region16
      $region15: #{double_convolution.1} parent=11 // pred_region
        _
      $region16: #{double_convolution.1} parent=11 // pred_fallthru
        _
      // Predicated region
      $region17: #{double_convolution.1} parent=11 // pred_check
        %p165 = pneg %p79
      $region18: #{double_convolution.1} parent=11 // pred_check_branch
        %167 = sbr.rel (%p165) target = $region20
      $region19: #{double_convolution.1} parent=11 // pred_region
        _
      $region20: #{double_convolution.1} parent=11 // pred_fallthru
        _
      // Predicated region
      $region21: #{double_convolution.1} parent=11 // pred_check
        %p168 = pneg %p100
      $region22: #{double_convolution.1} parent=11 // pred_check_branch
        %170 = sbr.rel (%p168) target = $region24
      $region23: #{double_convolution.1} parent=11 // pred_region
        _
      $region24: #{double_convolution.1} parent=11 // pred_fallthru
        _
      // Predicated region
      $region25: #{double_convolution.1} parent=11 // pred_check
        %p171 = pneg %p121
      $region26: #{double_convolution.1} parent=11 // pred_check_branch
        %173 = sbr.rel (%p171) target = $region28
      $region27: #{double_convolution.1} parent=11 // pred_region
        _
      $region28: #{double_convolution.1} parent=11 // pred_fallthru
        _
    $region12: #{double_convolution.1} parent=5 // pred_fallthru
      _
    %p174 = scmp.lt.s32.totalorder %s11, 2
    // Predicated region
    $region29: #{double_convolution.1} parent=5 // pred_check
      %p175 = pneg %p174
    $region30: #{double_convolution.1} parent=5 // pred_check_branch
      %177 = sbr.rel (%p175) target = $region32
    $region31: #{double_convolution.1} parent=5 // pred_region
      // Predicated region
      $region33: #{double_convolution.1} parent=31 // pred_check
        %p178 = pneg %p31
      $region34: #{double_convolution.1} parent=31 // pred_check_branch
        %180 = sbr.rel (%p178) target = $region36
      $region35: #{double_convolution.1} parent=31 // pred_region
        %p181 = scmp.lt.s32.totalorder %s11, 1
        %s182 = scalar_select %p181, %s11, 1
        %s183 = smul.addr %s182, 54
        %s184 = smul.addr %s183, 8
        %s185 = scalar_lea.vmem %s0, %s184
      $region36: #{double_convolution.1} parent=31 // pred_fallthru
        _
    $region32: #{double_convolution.1} parent=5 // pred_fallthru
      _
    %p186 = scmp.le.s32.totalorder 1, %s11
    %p187 = scmp.lt.s32.totalorder %s11, 3
    %p188 = pnand %p186, %p187
    %p189 = pneg %p188
    // Predicated region
    $region37: #{double_convolution.1} parent=5 // pred_check
      _
    $region38: #{double_convolution.1} parent=5 // pred_check_branch
      %191 = sbr.rel (%p188) target = $region40
    $region39: #{double_convolution.1} parent=5 // pred_region
      %s192 = ssub.s32 %s11, 1
      %p193 = scmp.lt.s32.totalorder %s16, 1
      %s194 = scalar_select %p193, %s16, 1
      %s195 = smul.addr %s194, 54
      %s196 = smul.addr %s195, 8
      %s197 = scalar_lea.vmem %s0, %s196
      %p198 = pneg %p37
      %p199 = pneg %p34
      %p200 = pneg %p58
      %p201 = pneg %p55
      %p202 = pneg %p79
      %p203 = pneg %p76
      %p204 = pneg %p100
      %p205 = pneg %p97
      %p206 = pneg %p121
      %p207 = pneg %p118
      %p208 = pneg %p147
      %p209 = pneg %p144
      %p210 = scmp.lt.s32.totalorder %s16, 1
      %s211 = scalar_select %p210, %s16, 1
      %s212 = smul.addr %s211, 32
      %s213 = smul.addr %s212, 8
      %s214 = scalar_lea.vmem %s5, %s213
      %p215 = scmp.lt.s32.totalorder %s16, 1
      %s216 = scalar_select %p215, %s16, 1
      %s217 = smul.addr %s216, 54
      %s218 = smul.addr %s217, 8
      %s219 = scalar_lea.vmem %s0, %s218
      %p220 = scmp.lt.s32.totalorder %s16, 1
      %s221 = scalar_select %p220, %s16, 1
      %s222 = smul.addr %s221, 32
      %s223 = smul.addr %s222, 8
      %s224 = scalar_lea.vmem %s5, %s223
      %v225 = vld [vmem:[%s219] sm:$0xff]
      %v226 = vld [vmem:[%s219 + $0x8] sm:$0xff]
      %v227 = vld [vmem:[%s219 + $0x10] sm:$0x3]
      %v228 = vld [vmem:[%s219 + $0x18] sm:$0xff]
      %v229 = vld [vmem:[%s219 + $0x20] sm:$0xff]
      %v230 = vld [vmem:[%s219 + $0x28] sm:$0x3]
      %v231 = vld [vmem:[%s219 + $0x30] sm:$0xff]
      %v232 = vld [vmem:[%s219 + $0x38] sm:$0xff]
      %v233 = vld [vmem:[%s219 + $0x40] sm:$0x3]
      %v234 = vld [vmem:[%s219 + $0x48] sm:$0xff]
      %v235 = vld [vmem:[%s219 + $0x50] sm:$0xff]
      %v236 = vld [vmem:[%s219 + $0x58] sm:$0x3]
      %v237 = vld [vmem:[%s219 + $0x60] sm:$0xff]
      %v238 = vld [vmem:[%s219 + $0x68] sm:$0xff]
      %v239 = vld [vmem:[%s219 + $0x70] sm:$0x3]
      %v240 = vld [vmem:[%s219 + $0x78] sm:$0xff]
      %v241 = vld [vmem:[%s219 + $0x80] sm:$0xff]
      %v242 = vld [vmem:[%s219 + $0x88] sm:$0x3]
      %v243 = vld [vmem:[%s219 + $0x90] sm:$0xff]
      %v244 = vld [vmem:[%s219 + $0x98] sm:$0xff]
      %v245 = vld [vmem:[%s219 + $0xa0] sm:$0x3]
      %v246 = vld [vmem:[%s219 + $0xa8] sm:$0xff]
      %v247 = vld [vmem:[%s219 + $0xb0] sm:$0xff]
      %v248 = vld [vmem:[%s219 + $0xb8] sm:$0x3]
      %v249 = vld [vmem:[%s219 + $0xc0] sm:$0xff]
      %v250 = vld [vmem:[%s219 + $0xc8] sm:$0xff]
      %v251 = vld [vmem:[%s219 + $0xd0] sm:$0x3]
      %v252 = vld [vmem:[%s219 + $0xd8] sm:$0xff]
      %v253 = vld [vmem:[%s219 + $0xe0] sm:$0xff]
      %v254 = vld [vmem:[%s219 + $0xe8] sm:$0x3]
      %v255 = vld [vmem:[%s219 + $0xf0] sm:$0xff]
      %v256 = vld [vmem:[%s219 + $0xf8] sm:$0xff]
      %v257 = vld [vmem:[%s219 + $0x100] sm:$0x3]
      %v258 = vld [vmem:[%s219 + $0x108] sm:$0xff]
      %v259 = vld [vmem:[%s219 + $0x110] sm:$0xff]
      %v260 = vld [vmem:[%s219 + $0x118] sm:$0x3]
      %v261 = vld [vmem:[%s219 + $0x120] sm:$0xff]
      %v262 = vld [vmem:[%s219 + $0x128] sm:$0xff]
      %v263 = vld [vmem:[%s219 + $0x130] sm:$0x3]
      %v264 = vld [vmem:[%s219 + $0x138] sm:$0xff]
      %v265 = vld [vmem:[%s219 + $0x140] sm:$0xff]
      %v266 = vld [vmem:[%s219 + $0x148] sm:$0x3]
      %v267 = vld [vmem:[%s219 + $0x150] sm:$0xff]
      %v268 = vld [vmem:[%s219 + $0x158] sm:$0xff]
      %v269 = vld [vmem:[%s219 + $0x160] sm:$0x3]
      %v270 = vld [vmem:[%s219 + $0x168] sm:$0xff]
      %v271 = vld [vmem:[%s219 + $0x170] sm:$0xff]
      %v272 = vld [vmem:[%s219 + $0x178] sm:$0x3]
      %v273 = vld [vmem:[%s219 + $0x180] sm:$0xff]
      %v274 = vld [vmem:[%s219 + $0x188] sm:$0xff]
      %v275 = vld [vmem:[%s219 + $0x190] sm:$0x3]
      %v276 = vld [vmem:[%s219 + $0x198] sm:$0xff]
      %v277 = vld [vmem:[%s219 + $0x1a0] sm:$0xff]
      %v278 = vld [vmem:[%s219 + $0x1a8] sm:$0x3]
      %v279 = vpack.c.bf16 %v226, %v225
      %v280 = vpack.c.bf16 %v229, %v228
      %v281 = vpack.c.bf16 %v232, %v231
      %v282 = vpack.c.bf16 %v235, %v234
      %v283 = vpack.c.bf16 %v238, %v237
      %v284 = vpack.c.bf16 %v241, %v240
      %v285 = vpack.c.bf16 %v244, %v243
      %v286 = vpack.c.bf16 %v247, %v246
      %v287 = vpack.c.bf16 %v250, %v249
      %v288 = vpack.c.bf16 %v253, %v252
      %v289 = vpack.c.bf16 %v256, %v255
      %v290 = vpack.c.bf16 %v259, %v258
      %v291 = vpack.c.bf16 %v262, %v261
      %v292 = vpack.c.bf16 %v265, %v264
      %v293 = vpack.c.bf16 %v268, %v267
      %v294 = vpack.c.bf16 %v271, %v270
      %v295 = vld [vmem:[%s1] sm:$0xf]
      %v296 = vld [vmem:[%s1 + $0x4] sm:$0xf]
      %v297 = vld [vmem:[%s1 + $0x8] sm:$0xf]
      %v298 = vld [vmem:[%s1 + $0xc] sm:$0xf]
      %v299 = vld [vmem:[%s1 + $0x10] sm:$0xf]
      %v300 = vld [vmem:[%s1 + $0x14] sm:$0xf]
      %v301 = vld [vmem:[%s1 + $0x18] sm:$0xf]
      %v302 = vld [vmem:[%s1 + $0x1c] sm:$0xf]
      %v303 = vld [vmem:[%s1 + $0x20] sm:$0xf]
      %v304 = vld [vmem:[%s1 + $0x24] sm:$0xf]
      %v305 = vld [vmem:[%s1 + $0x28] sm:$0xf]
      %v306 = vld [vmem:[%s1 + $0x2c] sm:$0xf]
      %v307 = vld [vmem:[%s1 + $0x30] sm:$0xf]
      %v308 = vld [vmem:[%s1 + $0x34] sm:$0xf]
      %v309 = vld [vmem:[%s1 + $0x38] sm:$0xf]
      %v310 = vld [vmem:[%s1 + $0x3c] sm:$0xf]
      %vm359 = vcmask 1046528
      %v360 = vrot.slane %v225, 1
      %v361 = vrot.slane %v226, 1
      %v362 = vsel %vm359, %v360, %v361
      %v363 = vrot.slane %v227, 1
      %v364 = vsel %vm359, %v361, %v363
      %v365 = vrot.slane %v228, 1
      %v366 = vrot.slane %v229, 1
      %v367 = vsel %vm359, %v365, %v366
      %v368 = vrot.slane %v230, 1
      %v369 = vsel %vm359, %v366, %v368
      %v370 = vrot.slane %v231, 1
      %v371 = vrot.slane %v232, 1
      %v372 = vsel %vm359, %v370, %v371
      %v373 = vrot.slane %v233, 1
      %v374 = vsel %vm359, %v371, %v373
      %v375 = vrot.slane %v234, 1
      %v376 = vrot.slane %v235, 1
      %v377 = vsel %vm359, %v375, %v376
      %v378 = vrot.slane %v236, 1
      %v379 = vsel %vm359, %v376, %v378
      %v380 = vrot.slane %v237, 1
      %v381 = vrot.slane %v238, 1
      %v382 = vsel %vm359, %v380, %v381
      %v383 = vrot.slane %v239, 1
      %v384 = vsel %vm359, %v381, %v383
      %v385 = vrot.slane %v240, 1
      %v386 = vrot.slane %v241, 1
      %v387 = vsel %vm359, %v385, %v386
      %v388 = vrot.slane %v242, 1
      %v389 = vsel %vm359, %v386, %v388
      %v390 = vrot.slane %v243, 1
      %v391 = vrot.slane %v244, 1
      %v392 = vsel %vm359, %v390, %v391
      %v393 = vrot.slane %v245, 1
      %v394 = vsel %vm359, %v391, %v393
      %v395 = vrot.slane %v246, 1
      %v396 = vrot.slane %v247, 1
      %v397 = vsel %vm359, %v395, %v396
      %v398 = vrot.slane %v248, 1
      %v399 = vsel %vm359, %v396, %v398
      %v400 = vrot.slane %v249, 1
      %v401 = vrot.slane %v250, 1
      %v402 = vsel %vm359, %v400, %v401
      %v403 = vrot.slane %v251, 1
      %v404 = vsel %vm359, %v401, %v403
      %v405 = vrot.slane %v252, 1
      %v406 = vrot.slane %v253, 1
      %v407 = vsel %vm359, %v405, %v406
      %v408 = vrot.slane %v254, 1
      %v409 = vsel %vm359, %v406, %v408
      %v410 = vrot.slane %v255, 1
      %v411 = vrot.slane %v256, 1
      %v412 = vsel %vm359, %v410, %v411
      %v413 = vrot.slane %v257, 1
      %v414 = vsel %vm359, %v411, %v413
      %v415 = vrot.slane %v258, 1
      %v416 = vrot.slane %v259, 1
      %v417 = vsel %vm359, %v415, %v416
      %v418 = vrot.slane %v260, 1
      %v419 = vsel %vm359, %v416, %v418
      %v420 = vrot.slane %v261, 1
      %v421 = vrot.slane %v262, 1
      %v422 = vsel %vm359, %v420, %v421
      %v423 = vrot.slane %v263, 1
      %v424 = vsel %vm359, %v421, %v423
      %v425 = vrot.slane %v264, 1
      %v426 = vrot.slane %v265, 1
      %v427 = vsel %vm359, %v425, %v426
      %v428 = vrot.slane %v266, 1
      %v429 = vsel %vm359, %v426, %v428
      %v430 = vrot.slane %v267, 1
      %v431 = vrot.slane %v268, 1
      %v432 = vsel %vm359, %v430, %v431
      %v433 = vrot.slane %v269, 1
      %v434 = vsel %vm359, %v431, %v433
      %v435 = vrot.slane %v270, 1
      %v436 = vrot.slane %v271, 1
      %v437 = vsel %vm359, %v435, %v436
      %v438 = vrot.slane %v272, 1
      %v439 = vsel %vm359, %v436, %v438
      %v472 = vpack.c.bf16 %v364, %v362
      %v473 = vpack.c.bf16 %v369, %v367
      %v474 = vpack.c.bf16 %v374, %v372
      %v475 = vpack.c.bf16 %v379, %v377
      %v476 = vpack.c.bf16 %v384, %v382
      %v477 = vpack.c.bf16 %v389, %v387
      %v478 = vpack.c.bf16 %v394, %v392
      %v479 = vpack.c.bf16 %v399, %v397
      %v480 = vpack.c.bf16 %v404, %v402
      %v481 = vpack.c.bf16 %v409, %v407
      %v482 = vpack.c.bf16 %v414, %v412
      %v483 = vpack.c.bf16 %v419, %v417
      %v484 = vpack.c.bf16 %v424, %v422
      %v485 = vpack.c.bf16 %v429, %v427
      %v486 = vpack.c.bf16 %v434, %v432
      %v487 = vpack.c.bf16 %v439, %v437
      %s488 = scalar_lea.vmem %s1, 64
      %v489 = vld [vmem:[%s488] sm:$0xf]
      %v490 = vld [vmem:[%s488 + $0x4] sm:$0xf]
      %v491 = vld [vmem:[%s488 + $0x8] sm:$0xf]
      %v492 = vld [vmem:[%s488 + $0xc] sm:$0xf]
      %v493 = vld [vmem:[%s488 + $0x10] sm:$0xf]
      %v494 = vld [vmem:[%s488 + $0x14] sm:$0xf]
      %v495 = vld [vmem:[%s488 + $0x18] sm:$0xf]
      %v496 = vld [vmem:[%s488 + $0x1c] sm:$0xf]
      %v497 = vld [vmem:[%s488 + $0x20] sm:$0xf]
      %v498 = vld [vmem:[%s488 + $0x24] sm:$0xf]
      %v499 = vld [vmem:[%s488 + $0x28] sm:$0xf]
      %v500 = vld [vmem:[%s488 + $0x2c] sm:$0xf]
      %v501 = vld [vmem:[%s488 + $0x30] sm:$0xf]
      %v502 = vld [vmem:[%s488 + $0x34] sm:$0xf]
      %v503 = vld [vmem:[%s488 + $0x38] sm:$0xf]
      %v504 = vld [vmem:[%s488 + $0x3c] sm:$0xf]
      %v521 = vunpack.c.l.b16 %v489
      %v522 = vunpack.c.l.b16 %v490
      %v523 = vunpack.c.l.b16 %v491
      %v524 = vunpack.c.l.b16 %v492
      %v525 = vunpack.c.l.b16 %v493
      %v526 = vunpack.c.l.b16 %v494
      %v527 = vunpack.c.l.b16 %v495
      %v528 = vunpack.c.l.b16 %v496
      %v529 = vunpack.c.l.b16 %v497
      %v530 = vunpack.c.l.b16 %v498
      %v531 = vunpack.c.l.b16 %v499
      %v532 = vunpack.c.l.b16 %v500
      %v533 = vunpack.c.l.b16 %v501
      %v534 = vunpack.c.l.b16 %v502
      %v535 = vunpack.c.l.b16 %v503
      %v536 = vunpack.c.l.b16 %v504
      %v537 = vpack.c.b16 %v522, %v521
      %v538 = vpack.c.b16 %v524, %v523
      %v539 = vpack.c.b16 %v526, %v525
      %v540 = vpack.c.b16 %v528, %v527
      %v541 = vpack.c.b16 %v530, %v529
      %v542 = vpack.c.b16 %v532, %v531
      %v543 = vpack.c.b16 %v534, %v533
      %v544 = vpack.c.b16 %v536, %v535
      %553 = vmatpush.bf16.msra.mxu0 %v544
      %554 = vmatpush.bf16.msra.mxu0 %v543
      %555 = vmatpush.bf16.msra.mxu0 %v542
      %556 = vmatpush.bf16.msra.mxu0 %v541
      %557 = vmatpush.bf16.msra.mxu0 %v540
      %558 = vmatpush.bf16.msra.mxu0 %v539
      %559 = vmatpush.bf16.msra.mxu0 %v538
      %560 = vmatpush.bf16.msra.mxu0 %v537
      %561 = vmatmul.bf16.gmra.mxu0 %v472
      %v562 = vpop.f32.mrf.mxu0
      %v563 = vadd.f32 0.0, %v562
      %v564 = vpop.f32.mrf.mxu0
      %v565 = vadd.f32 0.0, %v564
      %566 = vmatmul.bf16.gmra.mxu0 %v473
      %v567 = vpop.f32.mrf.mxu0
      %v568 = vadd.f32 0.0, %v567
      %v569 = vpop.f32.mrf.mxu0
      %v570 = vadd.f32 0.0, %v569
      %571 = vmatmul.bf16.gmra.mxu0 %v474
      %v572 = vpop.f32.mrf.mxu0
      %v573 = vadd.f32 0.0, %v572
      %v574 = vpop.f32.mrf.mxu0
      %v575 = vadd.f32 0.0, %v574
      %576 = vmatmul.bf16.gmra.mxu0 %v475
      %v577 = vpop.f32.mrf.mxu0
      %v578 = vadd.f32 0.0, %v577
      %v579 = vpop.f32.mrf.mxu0
      %v580 = vadd.f32 0.0, %v579
      %581 = vmatmul.bf16.gmra.mxu0 %v476
      %v582 = vpop.f32.mrf.mxu0
      %v583 = vadd.f32 0.0, %v582
      %v584 = vpop.f32.mrf.mxu0
      %v585 = vadd.f32 0.0, %v584
      %586 = vmatmul.bf16.gmra.mxu0 %v477
      %v587 = vpop.f32.mrf.mxu0
      %v588 = vadd.f32 0.0, %v587
      %v589 = vpop.f32.mrf.mxu0
      %v590 = vadd.f32 0.0, %v589
      %591 = vmatmul.bf16.gmra.mxu0 %v478
      %v592 = vpop.f32.mrf.mxu0
      %v593 = vadd.f32 0.0, %v592
      %v594 = vpop.f32.mrf.mxu0
      %v595 = vadd.f32 0.0, %v594
      %596 = vmatmul.bf16.gmra.mxu0 %v479
      %v597 = vpop.f32.mrf.mxu0
      %v598 = vadd.f32 0.0, %v597
      %v599 = vpop.f32.mrf.mxu0
      %v600 = vadd.f32 0.0, %v599
      %601 = vmatmul.bf16.gmra.mxu0 %v480
      %v602 = vpop.f32.mrf.mxu0
      %v603 = vadd.f32 0.0, %v602
      %v604 = vpop.f32.mrf.mxu0
      %v605 = vadd.f32 0.0, %v604
      %606 = vmatmul.bf16.gmra.mxu0 %v481
      %v607 = vpop.f32.mrf.mxu0
      %v608 = vadd.f32 0.0, %v607
      %v609 = vpop.f32.mrf.mxu0
      %v610 = vadd.f32 0.0, %v609
      %611 = vmatmul.bf16.gmra.mxu0 %v482
      %v612 = vpop.f32.mrf.mxu0
      %v613 = vadd.f32 0.0, %v612
      %v614 = vpop.f32.mrf.mxu0
      %v615 = vadd.f32 0.0, %v614
      %616 = vmatmul.bf16.gmra.mxu0 %v483
      %v617 = vpop.f32.mrf.mxu0
      %v618 = vadd.f32 0.0, %v617
      %v619 = vpop.f32.mrf.mxu0
      %v620 = vadd.f32 0.0, %v619
      %621 = vmatmul.bf16.gmra.mxu0 %v484
      %v622 = vpop.f32.mrf.mxu0
      %v623 = vadd.f32 0.0, %v622
      %v624 = vpop.f32.mrf.mxu0
      %v625 = vadd.f32 0.0, %v624
      %626 = vmatmul.bf16.gmra.mxu0 %v485
      %v627 = vpop.f32.mrf.mxu0
      %v628 = vadd.f32 0.0, %v627
      %v629 = vpop.f32.mrf.mxu0
      %v630 = vadd.f32 0.0, %v629
      %631 = vmatmul.bf16.gmra.mxu0 %v486
      %v632 = vpop.f32.mrf.mxu0
      %v633 = vadd.f32 0.0, %v632
      %v634 = vpop.f32.mrf.mxu0
      %v635 = vadd.f32 0.0, %v634
      %636 = vmatmul.bf16.gmra.mxu0 %v487
      %v637 = vpop.f32.mrf.mxu0
      %v638 = vadd.f32 0.0, %v637
      %v639 = vpop.f32.mrf.mxu0
      %v640 = vadd.f32 0.0, %v639
      %641 = vdwg.mxu0
      %v658 = vunpack.c.l.b16 %v295
      %v659 = vunpack.c.l.b16 %v296
      %v660 = vunpack.c.l.b16 %v297
      %v661 = vunpack.c.l.b16 %v298
      %v662 = vunpack.c.l.b16 %v299
      %v663 = vunpack.c.l.b16 %v300
      %v664 = vunpack.c.l.b16 %v301
      %v665 = vunpack.c.l.b16 %v302
      %v666 = vunpack.c.l.b16 %v303
      %v667 = vunpack.c.l.b16 %v304
      %v668 = vunpack.c.l.b16 %v305
      %v669 = vunpack.c.l.b16 %v306
      %v670 = vunpack.c.l.b16 %v307
      %v671 = vunpack.c.l.b16 %v308
      %v672 = vunpack.c.l.b16 %v309
      %v673 = vunpack.c.l.b16 %v310
      %v674 = vpack.c.b16 %v659, %v658
      %v675 = vpack.c.b16 %v661, %v660
      %v676 = vpack.c.b16 %v663, %v662
      %v677 = vpack.c.b16 %v665, %v664
      %v678 = vpack.c.b16 %v667, %v666
      %v679 = vpack.c.b16 %v669, %v668
      %v680 = vpack.c.b16 %v671, %v670
      %v681 = vpack.c.b16 %v673, %v672
      %690 = vmatpush.bf16.msra.mxu0 %v681
      %691 = vmatpush.bf16.msra.mxu0 %v680
      %692 = vmatpush.bf16.msra.mxu0 %v679
      %693 = vmatpush.bf16.msra.mxu0 %v678
      %694 = vmatpush.bf16.msra.mxu0 %v677
      %695 = vmatpush.bf16.msra.mxu0 %v676
      %696 = vmatpush.bf16.msra.mxu0 %v675
      %697 = vmatpush.bf16.msra.mxu0 %v674
      %698 = vmatmul.bf16.gmra.mxu0 %v279
      %v699 = vpop.f32.mrf.mxu0
      %v700 = vadd.f32 %v563, %v699
      %v701 = vpop.f32.mrf.mxu0
      %v702 = vadd.f32 %v565, %v701
      %703 = vmatmul.bf16.gmra.mxu0 %v280
      %v704 = vpop.f32.mrf.mxu0
      %v705 = vadd.f32 %v568, %v704
      %v706 = vpop.f32.mrf.mxu0
      %v707 = vadd.f32 %v570, %v706
      %708 = vmatmul.bf16.gmra.mxu0 %v281
      %v709 = vpop.f32.mrf.mxu0
      %v710 = vadd.f32 %v573, %v709
      %v711 = vpop.f32.mrf.mxu0
      %v712 = vadd.f32 %v575, %v711
      %713 = vmatmul.bf16.gmra.mxu0 %v282
      %v714 = vpop.f32.mrf.mxu0
      %v715 = vadd.f32 %v578, %v714
      %v716 = vpop.f32.mrf.mxu0
      %v717 = vadd.f32 %v580, %v716
      %718 = vmatmul.bf16.gmra.mxu0 %v283
      %v719 = vpop.f32.mrf.mxu0
      %v720 = vadd.f32 %v583, %v719
      %v721 = vpop.f32.mrf.mxu0
      %v722 = vadd.f32 %v585, %v721
      %723 = vmatmul.bf16.gmra.mxu0 %v284
      %v724 = vpop.f32.mrf.mxu0
      %v725 = vadd.f32 %v588, %v724
      %v726 = vpop.f32.mrf.mxu0
      %v727 = vadd.f32 %v590, %v726
      %728 = vmatmul.bf16.gmra.mxu0 %v285
      %v729 = vpop.f32.mrf.mxu0
      %v730 = vadd.f32 %v593, %v729
      %v731 = vpop.f32.mrf.mxu0
      %v732 = vadd.f32 %v595, %v731
      %733 = vmatmul.bf16.gmra.mxu0 %v286
      %v734 = vpop.f32.mrf.mxu0
      %v735 = vadd.f32 %v598, %v734
      %v736 = vpop.f32.mrf.mxu0
      %v737 = vadd.f32 %v600, %v736
      %738 = vmatmul.bf16.gmra.mxu0 %v287
      %v739 = vpop.f32.mrf.mxu0
      %v740 = vadd.f32 %v603, %v739
      %v741 = vpop.f32.mrf.mxu0
      %v742 = vadd.f32 %v605, %v741
      %743 = vmatmul.bf16.gmra.mxu0 %v288
      %v744 = vpop.f32.mrf.mxu0
      %v745 = vadd.f32 %v608, %v744
      %v746 = vpop.f32.mrf.mxu0
      %v747 = vadd.f32 %v610, %v746
      %748 = vmatmul.bf16.gmra.mxu0 %v289
      %v749 = vpop.f32.mrf.mxu0
      %v750 = vadd.f32 %v613, %v749
      %v751 = vpop.f32.mrf.mxu0
      %v752 = vadd.f32 %v615, %v751
      %753 = vmatmul.bf16.gmra.mxu0 %v290
      %v754 = vpop.f32.mrf.mxu0
      %v755 = vadd.f32 %v618, %v754
      %v756 = vpop.f32.mrf.mxu0
      %v757 = vadd.f32 %v620, %v756
      %758 = vmatmul.bf16.gmra.mxu0 %v291
      %v759 = vpop.f32.mrf.mxu0
      %v760 = vadd.f32 %v623, %v759
      %v761 = vpop.f32.mrf.mxu0
      %v762 = vadd.f32 %v625, %v761
      %763 = vmatmul.bf16.gmra.mxu0 %v292
      %v764 = vpop.f32.mrf.mxu0
      %v765 = vadd.f32 %v628, %v764
      %v766 = vpop.f32.mrf.mxu0
      %v767 = vadd.f32 %v630, %v766
      %768 = vmatmul.bf16.gmra.mxu0 %v293
      %v769 = vpop.f32.mrf.mxu0
      %v770 = vadd.f32 %v633, %v769
      %v771 = vpop.f32.mrf.mxu0
      %v772 = vadd.f32 %v635, %v771
      %773 = vmatmul.bf16.gmra.mxu0 %v294
      %v774 = vpop.f32.mrf.mxu0
      %v775 = vadd.f32 %v638, %v774
      %v776 = vpop.f32.mrf.mxu0
      %v777 = vadd.f32 %v640, %v776
      %778 = vdwg.mxu0
      %vm779 = vcmask 1045504
      %v780 = vrot.slane %v225, 2
      %v781 = vrot.slane %v226, 2
      %v782 = vsel %vm779, %v780, %v781
      %v783 = vrot.slane %v227, 2
      %v784 = vsel %vm779, %v781, %v783
      %v785 = vrot.slane %v228, 2
      %v786 = vrot.slane %v229, 2
      %v787 = vsel %vm779, %v785, %v786
      %v788 = vrot.slane %v230, 2
      %v789 = vsel %vm779, %v786, %v788
      %v790 = vrot.slane %v231, 2
      %v791 = vrot.slane %v232, 2
      %v792 = vsel %vm779, %v790, %v791
      %v793 = vrot.slane %v233, 2
      %v794 = vsel %vm779, %v791, %v793
      %v795 = vrot.slane %v234, 2
      %v796 = vrot.slane %v235, 2
      %v797 = vsel %vm779, %v795, %v796
      %v798 = vrot.slane %v236, 2
      %v799 = vsel %vm779, %v796, %v798
      %v800 = vrot.slane %v237, 2
      %v801 = vrot.slane %v238, 2
      %v802 = vsel %vm779, %v800, %v801
      %v803 = vrot.slane %v239, 2
      %v804 = vsel %vm779, %v801, %v803
      %v805 = vrot.slane %v240, 2
      %v806 = vrot.slane %v241, 2
      %v807 = vsel %vm779, %v805, %v806
      %v808 = vrot.slane %v242, 2
      %v809 = vsel %vm779, %v806, %v808
      %v810 = vrot.slane %v243, 2
      %v811 = vrot.slane %v244, 2
      %v812 = vsel %vm779, %v810, %v811
      %v813 = vrot.slane %v245, 2
      %v814 = vsel %vm779, %v811, %v813
      %v815 = vrot.slane %v246, 2
      %v816 = vrot.slane %v247, 2
      %v817 = vsel %vm779, %v815, %v816
      %v818 = vrot.slane %v248, 2
      %v819 = vsel %vm779, %v816, %v818
      %v820 = vrot.slane %v249, 2
      %v821 = vrot.slane %v250, 2
      %v822 = vsel %vm779, %v820, %v821
      %v823 = vrot.slane %v251, 2
      %v824 = vsel %vm779, %v821, %v823
      %v825 = vrot.slane %v252, 2
      %v826 = vrot.slane %v253, 2
      %v827 = vsel %vm779, %v825, %v826
      %v828 = vrot.slane %v254, 2
      %v829 = vsel %vm779, %v826, %v828
      %v830 = vrot.slane %v255, 2
      %v831 = vrot.slane %v256, 2
      %v832 = vsel %vm779, %v830, %v831
      %v833 = vrot.slane %v257, 2
      %v834 = vsel %vm779, %v831, %v833
      %v835 = vrot.slane %v258, 2
      %v836 = vrot.slane %v259, 2
      %v837 = vsel %vm779, %v835, %v836
      %v838 = vrot.slane %v260, 2
      %v839 = vsel %vm779, %v836, %v838
      %v840 = vrot.slane %v261, 2
      %v841 = vrot.slane %v262, 2
      %v842 = vsel %vm779, %v840, %v841
      %v843 = vrot.slane %v263, 2
      %v844 = vsel %vm779, %v841, %v843
      %v845 = vrot.slane %v264, 2
      %v846 = vrot.slane %v265, 2
      %v847 = vsel %vm779, %v845, %v846
      %v848 = vrot.slane %v266, 2
      %v849 = vsel %vm779, %v846, %v848
      %v850 = vrot.slane %v267, 2
      %v851 = vrot.slane %v268, 2
      %v852 = vsel %vm779, %v850, %v851
      %v853 = vrot.slane %v269, 2
      %v854 = vsel %vm779, %v851, %v853
      %v855 = vrot.slane %v270, 2
      %v856 = vrot.slane %v271, 2
      %v857 = vsel %vm779, %v855, %v856
      %v858 = vrot.slane %v272, 2
      %v859 = vsel %vm779, %v856, %v858
      %v892 = vpack.c.bf16 %v784, %v782
      %v893 = vpack.c.bf16 %v789, %v787
      %v894 = vpack.c.bf16 %v794, %v792
      %v895 = vpack.c.bf16 %v799, %v797
      %v896 = vpack.c.bf16 %v804, %v802
      %v897 = vpack.c.bf16 %v809, %v807
      %v898 = vpack.c.bf16 %v814, %v812
      %v899 = vpack.c.bf16 %v819, %v817
      %v900 = vpack.c.bf16 %v824, %v822
      %v901 = vpack.c.bf16 %v829, %v827
      %v902 = vpack.c.bf16 %v834, %v832
      %v903 = vpack.c.bf16 %v839, %v837
      %v904 = vpack.c.bf16 %v844, %v842
      %v905 = vpack.c.bf16 %v849, %v847
      %v906 = vpack.c.bf16 %v854, %v852
      %v907 = vpack.c.bf16 %v859, %v857
      %s908 = scalar_lea.vmem %s1, 128
      %v909 = vld [vmem:[%s908] sm:$0xf]
      %v910 = vld [vmem:[%s908 + $0x4] sm:$0xf]
      %v911 = vld [vmem:[%s908 + $0x8] sm:$0xf]
      %v912 = vld [vmem:[%s908 + $0xc] sm:$0xf]
      %v913 = vld [vmem:[%s908 + $0x10] sm:$0xf]
      %v914 = vld [vmem:[%s908 + $0x14] sm:$0xf]
      %v915 = vld [vmem:[%s908 + $0x18] sm:$0xf]
      %v916 = vld [vmem:[%s908 + $0x1c] sm:$0xf]
      %v917 = vld [vmem:[%s908 + $0x20] sm:$0xf]
      %v918 = vld [vmem:[%s908 + $0x24] sm:$0xf]
      %v919 = vld [vmem:[%s908 + $0x28] sm:$0xf]
      %v920 = vld [vmem:[%s908 + $0x2c] sm:$0xf]
      %v921 = vld [vmem:[%s908 + $0x30] sm:$0xf]
      %v922 = vld [vmem:[%s908 + $0x34] sm:$0xf]
      %v923 = vld [vmem:[%s908 + $0x38] sm:$0xf]
      %v924 = vld [vmem:[%s908 + $0x3c] sm:$0xf]
      %v941 = vunpack.c.l.b16 %v909
      %v942 = vunpack.c.l.b16 %v910
      %v943 = vunpack.c.l.b16 %v911
      %v944 = vunpack.c.l.b16 %v912
      %v945 = vunpack.c.l.b16 %v913
      %v946 = vunpack.c.l.b16 %v914
      %v947 = vunpack.c.l.b16 %v915
      %v948 = vunpack.c.l.b16 %v916
      %v949 = vunpack.c.l.b16 %v917
      %v950 = vunpack.c.l.b16 %v918
      %v951 = vunpack.c.l.b16 %v919
      %v952 = vunpack.c.l.b16 %v920
      %v953 = vunpack.c.l.b16 %v921
      %v954 = vunpack.c.l.b16 %v922
      %v955 = vunpack.c.l.b16 %v923
      %v956 = vunpack.c.l.b16 %v924
      %v957 = vpack.c.b16 %v942, %v941
      %v958 = vpack.c.b16 %v944, %v943
      %v959 = vpack.c.b16 %v946, %v945
      %v960 = vpack.c.b16 %v948, %v947
      %v961 = vpack.c.b16 %v950, %v949
      %v962 = vpack.c.b16 %v952, %v951
      %v963 = vpack.c.b16 %v954, %v953
      %v964 = vpack.c.b16 %v956, %v955
      %973 = vmatpush.bf16.msra.mxu0 %v964
      %974 = vmatpush.bf16.msra.mxu0 %v963
      %975 = vmatpush.bf16.msra.mxu0 %v962
      %976 = vmatpush.bf16.msra.mxu0 %v961
      %977 = vmatpush.bf16.msra.mxu0 %v960
      %978 = vmatpush.bf16.msra.mxu0 %v959
      %979 = vmatpush.bf16.msra.mxu0 %v958
      %980 = vmatpush.bf16.msra.mxu0 %v957
      %981 = vmatmul.bf16.gmra.mxu0 %v892
      %v982 = vpop.f32.mrf.mxu0
      %v983 = vadd.f32 0.0, %v982
      %v984 = vpop.f32.mrf.mxu0
      %v985 = vadd.f32 0.0, %v984
      %986 = vmatmul.bf16.gmra.mxu0 %v893
      %v987 = vpop.f32.mrf.mxu0
      %v988 = vadd.f32 0.0, %v987
      %v989 = vpop.f32.mrf.mxu0
      %v990 = vadd.f32 0.0, %v989
      %991 = vmatmul.bf16.gmra.mxu0 %v894
      %v992 = vpop.f32.mrf.mxu0
      %v993 = vadd.f32 0.0, %v992
      %v994 = vpop.f32.mrf.mxu0
      %v995 = vadd.f32 0.0, %v994
      %996 = vmatmul.bf16.gmra.mxu0 %v895
      %v997 = vpop.f32.mrf.mxu0
      %v998 = vadd.f32 0.0, %v997
      %v999 = vpop.f32.mrf.mxu0
      %v1000 = vadd.f32 0.0, %v999
      %1001 = vmatmul.bf16.gmra.mxu0 %v896
      %v1002 = vpop.f32.mrf.mxu0
      %v1003 = vadd.f32 0.0, %v1002
      %v1004 = vpop.f32.mrf.mxu0
      %v1005 = vadd.f32 0.0, %v1004
      %1006 = vmatmul.bf16.gmra.mxu0 %v897
      %v1007 = vpop.f32.mrf.mxu0
      %v1008 = vadd.f32 0.0, %v1007
      %v1009 = vpop.f32.mrf.mxu0
      %v1010 = vadd.f32 0.0, %v1009
      %1011 = vmatmul.bf16.gmra.mxu0 %v898
      %v1012 = vpop.f32.mrf.mxu0
      %v1013 = vadd.f32 0.0, %v1012
      %v1014 = vpop.f32.mrf.mxu0
      %v1015 = vadd.f32 0.0, %v1014
      %1016 = vmatmul.bf16.gmra.mxu0 %v899
      %v1017 = vpop.f32.mrf.mxu0
      %v1018 = vadd.f32 0.0, %v1017
      %v1019 = vpop.f32.mrf.mxu0
      %v1020 = vadd.f32 0.0, %v1019
      %1021 = vmatmul.bf16.gmra.mxu0 %v900
      %v1022 = vpop.f32.mrf.mxu0
      %v1023 = vadd.f32 0.0, %v1022
      %v1024 = vpop.f32.mrf.mxu0
      %v1025 = vadd.f32 0.0, %v1024
      %1026 = vmatmul.bf16.gmra.mxu0 %v901
      %v1027 = vpop.f32.mrf.mxu0
      %v1028 = vadd.f32 0.0, %v1027
      %v1029 = vpop.f32.mrf.mxu0
      %v1030 = vadd.f32 0.0, %v1029
      %1031 = vmatmul.bf16.gmra.mxu0 %v902
      %v1032 = vpop.f32.mrf.mxu0
      %v1033 = vadd.f32 0.0, %v1032
      %v1034 = vpop.f32.mrf.mxu0
      %v1035 = vadd.f32 0.0, %v1034
      %1036 = vmatmul.bf16.gmra.mxu0 %v903
      %v1037 = vpop.f32.mrf.mxu0
      %v1038 = vadd.f32 0.0, %v1037
      %v1039 = vpop.f32.mrf.mxu0
      %v1040 = vadd.f32 0.0, %v1039
      %1041 = vmatmul.bf16.gmra.mxu0 %v904
      %v1042 = vpop.f32.mrf.mxu0
      %v1043 = vadd.f32 0.0, %v1042
      %v1044 = vpop.f32.mrf.mxu0
      %v1045 = vadd.f32 0.0, %v1044
      %1046 = vmatmul.bf16.gmra.mxu0 %v905
      %v1047 = vpop.f32.mrf.mxu0
      %v1048 = vadd.f32 0.0, %v1047
      %v1049 = vpop.f32.mrf.mxu0
      %v1050 = vadd.f32 0.0, %v1049
      %1051 = vmatmul.bf16.gmra.mxu0 %v906
      %v1052 = vpop.f32.mrf.mxu0
      %v1053 = vadd.f32 0.0, %v1052
      %v1054 = vpop.f32.mrf.mxu0
      %v1055 = vadd.f32 0.0, %v1054
      %1056 = vmatmul.bf16.gmra.mxu0 %v907
      %v1057 = vpop.f32.mrf.mxu0
      %v1058 = vadd.f32 0.0, %v1057
      %v1059 = vpop.f32.mrf.mxu0
      %v1060 = vadd.f32 0.0, %v1059
      %1061 = vdwg.mxu0
      %v1062 = vadd.f32 %v700, %v983
      %v1063 = vadd.f32 %v702, %v985
      %v1064 = vadd.f32 %v705, %v988
      %v1065 = vadd.f32 %v707, %v990
      %v1066 = vadd.f32 %v710, %v993
      %v1067 = vadd.f32 %v712, %v995
      %v1068 = vadd.f32 %v715, %v998
      %v1069 = vadd.f32 %v717, %v1000
      %v1070 = vadd.f32 %v720, %v1003
      %v1071 = vadd.f32 %v722, %v1005
      %v1072 = vadd.f32 %v725, %v1008
      %v1073 = vadd.f32 %v727, %v1010
      %v1074 = vadd.f32 %v730, %v1013
      %v1075 = vadd.f32 %v732, %v1015
      %v1076 = vadd.f32 %v735, %v1018
      %v1077 = vadd.f32 %v737, %v1020
      %v1078 = vadd.f32 %v740, %v1023
      %v1079 = vadd.f32 %v742, %v1025
      %v1080 = vadd.f32 %v745, %v1028
      %v1081 = vadd.f32 %v747, %v1030
      %v1082 = vadd.f32 %v750, %v1033
      %v1083 = vadd.f32 %v752, %v1035
      %v1084 = vadd.f32 %v755, %v1038
      %v1085 = vadd.f32 %v757, %v1040
      %v1086 = vadd.f32 %v760, %v1043
      %v1087 = vadd.f32 %v762, %v1045
      %v1088 = vadd.f32 %v765, %v1048
      %v1089 = vadd.f32 %v767, %v1050
      %v1090 = vadd.f32 %v770, %v1053
      %v1091 = vadd.f32 %v772, %v1055
      %v1092 = vadd.f32 %v775, %v1058
      %v1093 = vadd.f32 %v777, %v1060
      %v1094 = vpack.c.bf16 %v274, %v273
      %s1095 = scalar_lea.vmem %s1, 192
      %v1096 = vld [vmem:[%s1095] sm:$0xf]
      %v1097 = vld [vmem:[%s1095 + $0x4] sm:$0xf]
      %v1098 = vld [vmem:[%s1095 + $0x8] sm:$0xf]
      %v1099 = vld [vmem:[%s1095 + $0xc] sm:$0xf]
      %v1100 = vld [vmem:[%s1095 + $0x10] sm:$0xf]
      %v1101 = vld [vmem:[%s1095 + $0x14] sm:$0xf]
      %v1102 = vld [vmem:[%s1095 + $0x18] sm:$0xf]
      %v1103 = vld [vmem:[%s1095 + $0x1c] sm:$0xf]
      %v1104 = vld [vmem:[%s1095 + $0x20] sm:$0xf]
      %v1105 = vld [vmem:[%s1095 + $0x24] sm:$0xf]
      %v1106 = vld [vmem:[%s1095 + $0x28] sm:$0xf]
      %v1107 = vld [vmem:[%s1095 + $0x2c] sm:$0xf]
      %v1108 = vld [vmem:[%s1095 + $0x30] sm:$0xf]
      %v1109 = vld [vmem:[%s1095 + $0x34] sm:$0xf]
      %v1110 = vld [vmem:[%s1095 + $0x38] sm:$0xf]
      %v1111 = vld [vmem:[%s1095 + $0x3c] sm:$0xf]
      %v1128 = vunpack.c.l.b16 %v1096
      %v1129 = vunpack.c.l.b16 %v1097
      %v1130 = vunpack.c.l.b16 %v1098
      %v1131 = vunpack.c.l.b16 %v1099
      %v1132 = vunpack.c.l.b16 %v1100
      %v1133 = vunpack.c.l.b16 %v1101
      %v1134 = vunpack.c.l.b16 %v1102
      %v1135 = vunpack.c.l.b16 %v1103
      %v1136 = vunpack.c.l.b16 %v1104
      %v1137 = vunpack.c.l.b16 %v1105
      %v1138 = vunpack.c.l.b16 %v1106
      %v1139 = vunpack.c.l.b16 %v1107
      %v1140 = vunpack.c.l.b16 %v1108
      %v1141 = vunpack.c.l.b16 %v1109
      %v1142 = vunpack.c.l.b16 %v1110
      %v1143 = vunpack.c.l.b16 %v1111
      %v1144 = vpack.c.b16 %v1129, %v1128
      %v1145 = vpack.c.b16 %v1131, %v1130
      %v1146 = vpack.c.b16 %v1133, %v1132
      %v1147 = vpack.c.b16 %v1135, %v1134
      %v1148 = vpack.c.b16 %v1137, %v1136
      %v1149 = vpack.c.b16 %v1139, %v1138
      %v1150 = vpack.c.b16 %v1141, %v1140
      %v1151 = vpack.c.b16 %v1143, %v1142
      %1160 = vmatpush.bf16.msra.mxu0 %v1151
      %1161 = vmatpush.bf16.msra.mxu0 %v1150
      %1162 = vmatpush.bf16.msra.mxu0 %v1149
      %1163 = vmatpush.bf16.msra.mxu0 %v1148
      %1164 = vmatpush.bf16.msra.mxu0 %v1147
      %1165 = vmatpush.bf16.msra.mxu0 %v1146
      %1166 = vmatpush.bf16.msra.mxu0 %v1145
      %1167 = vmatpush.bf16.msra.mxu0 %v1144
      %1168 = vmatmul.bf16.gmra.mxu0 %v280
      %v1169 = vpop.f32.mrf.mxu0
      %v1170 = vadd.f32 0.0, %v1169
      %v1171 = vpop.f32.mrf.mxu0
      %v1172 = vadd.f32 0.0, %v1171
      %1173 = vmatmul.bf16.gmra.mxu0 %v281
      %v1174 = vpop.f32.mrf.mxu0
      %v1175 = vadd.f32 0.0, %v1174
      %v1176 = vpop.f32.mrf.mxu0
      %v1177 = vadd.f32 0.0, %v1176
      %1178 = vmatmul.bf16.gmra.mxu0 %v282
      %v1179 = vpop.f32.mrf.mxu0
      %v1180 = vadd.f32 0.0, %v1179
      %v1181 = vpop.f32.mrf.mxu0
      %v1182 = vadd.f32 0.0, %v1181
      %1183 = vmatmul.bf16.gmra.mxu0 %v283
      %v1184 = vpop.f32.mrf.mxu0
      %v1185 = vadd.f32 0.0, %v1184
      %v1186 = vpop.f32.mrf.mxu0
      %v1187 = vadd.f32 0.0, %v1186
      %1188 = vmatmul.bf16.gmra.mxu0 %v284
      %v1189 = vpop.f32.mrf.mxu0
      %v1190 = vadd.f32 0.0, %v1189
      %v1191 = vpop.f32.mrf.mxu0
      %v1192 = vadd.f32 0.0, %v1191
      %1193 = vmatmul.bf16.gmra.mxu0 %v285
      %v1194 = vpop.f32.mrf.mxu0
      %v1195 = vadd.f32 0.0, %v1194
      %v1196 = vpop.f32.mrf.mxu0
      %v1197 = vadd.f32 0.0, %v1196
      %1198 = vmatmul.bf16.gmra.mxu0 %v286
      %v1199 = vpop.f32.mrf.mxu0
      %v1200 = vadd.f32 0.0, %v1199
      %v1201 = vpop.f32.mrf.mxu0
      %v1202 = vadd.f32 0.0, %v1201
      %1203 = vmatmul.bf16.gmra.mxu0 %v287
      %v1204 = vpop.f32.mrf.mxu0
      %v1205 = vadd.f32 0.0, %v1204
      %v1206 = vpop.f32.mrf.mxu0
      %v1207 = vadd.f32 0.0, %v1206
      %1208 = vmatmul.bf16.gmra.mxu0 %v288
      %v1209 = vpop.f32.mrf.mxu0
      %v1210 = vadd.f32 0.0, %v1209
      %v1211 = vpop.f32.mrf.mxu0
      %v1212 = vadd.f32 0.0, %v1211
      %1213 = vmatmul.bf16.gmra.mxu0 %v289
      %v1214 = vpop.f32.mrf.mxu0
      %v1215 = vadd.f32 0.0, %v1214
      %v1216 = vpop.f32.mrf.mxu0
      %v1217 = vadd.f32 0.0, %v1216
      %1218 = vmatmul.bf16.gmra.mxu0 %v290
      %v1219 = vpop.f32.mrf.mxu0
      %v1220 = vadd.f32 0.0, %v1219
      %v1221 = vpop.f32.mrf.mxu0
      %v1222 = vadd.f32 0.0, %v1221
      %1223 = vmatmul.bf16.gmra.mxu0 %v291
      %v1224 = vpop.f32.mrf.mxu0
      %v1225 = vadd.f32 0.0, %v1224
      %v1226 = vpop.f32.mrf.mxu0
      %v1227 = vadd.f32 0.0, %v1226
      %1228 = vmatmul.bf16.gmra.mxu0 %v292
      %v1229 = vpop.f32.mrf.mxu0
      %v1230 = vadd.f32 0.0, %v1229
      %v1231 = vpop.f32.mrf.mxu0
      %v1232 = vadd.f32 0.0, %v1231
      %1233 = vmatmul.bf16.gmra.mxu0 %v293
      %v1234 = vpop.f32.mrf.mxu0
      %v1235 = vadd.f32 0.0, %v1234
      %v1236 = vpop.f32.mrf.mxu0
      %v1237 = vadd.f32 0.0, %v1236
      %1238 = vmatmul.bf16.gmra.mxu0 %v294
      %v1239 = vpop.f32.mrf.mxu0
      %v1240 = vadd.f32 0.0, %v1239
      %v1241 = vpop.f32.mrf.mxu0
      %v1242 = vadd.f32 0.0, %v1241
      %1243 = vmatmul.bf16.gmra.mxu0 %v1094
      %v1244 = vpop.f32.mrf.mxu0
      %v1245 = vadd.f32 0.0, %v1244
      %v1246 = vpop.f32.mrf.mxu0
      %v1247 = vadd.f32 0.0, %v1246
      %1248 = vdwg.mxu0
      %v1249 = vadd.f32 %v1062, %v1170
      %v1250 = vadd.f32 %v1063, %v1172
      %v1251 = vadd.f32 %v1064, %v1175
      %v1252 = vadd.f32 %v1065, %v1177
      %v1253 = vadd.f32 %v1066, %v1180
      %v1254 = vadd.f32 %v1067, %v1182
      %v1255 = vadd.f32 %v1068, %v1185
      %v1256 = vadd.f32 %v1069, %v1187
      %v1257 = vadd.f32 %v1070, %v1190
      %v1258 = vadd.f32 %v1071, %v1192
      %v1259 = vadd.f32 %v1072, %v1195
      %v1260 = vadd.f32 %v1073, %v1197
      %v1261 = vadd.f32 %v1074, %v1200
      %v1262 = vadd.f32 %v1075, %v1202
      %v1263 = vadd.f32 %v1076, %v1205
      %v1264 = vadd.f32 %v1077, %v1207
      %v1265 = vadd.f32 %v1078, %v1210
      %v1266 = vadd.f32 %v1079, %v1212
      %v1267 = vadd.f32 %v1080, %v1215
      %v1268 = vadd.f32 %v1081, %v1217
      %v1269 = vadd.f32 %v1082, %v1220
      %v1270 = vadd.f32 %v1083, %v1222
      %v1271 = vadd.f32 %v1084, %v1225
      %v1272 = vadd.f32 %v1085, %v1227
      %v1273 = vadd.f32 %v1086, %v1230
      %v1274 = vadd.f32 %v1087, %v1232
      %v1275 = vadd.f32 %v1088, %v1235
      %v1276 = vadd.f32 %v1089, %v1237
      %v1277 = vadd.f32 %v1090, %v1240
      %v1278 = vadd.f32 %v1091, %v1242
      %v1279 = vadd.f32 %v1092, %v1245
      %v1280 = vadd.f32 %v1093, %v1247
      %v1284 = vrot.slane %v273, 1
      %v1285 = vrot.slane %v274, 1
      %v1286 = vsel %vm359, %v1284, %v1285
      %v1287 = vrot.slane %v275, 1
      %v1288 = vsel %vm359, %v1285, %v1287
      %v1291 = vpack.c.bf16 %v1288, %v1286
      %s1292 = scalar_lea.vmem %s1, 256
      %v1293 = vld [vmem:[%s1292] sm:$0xf]
      %v1294 = vld [vmem:[%s1292 + $0x4] sm:$0xf]
      %v1295 = vld [vmem:[%s1292 + $0x8] sm:$0xf]
      %v1296 = vld [vmem:[%s1292 + $0xc] sm:$0xf]
      %v1297 = vld [vmem:[%s1292 + $0x10] sm:$0xf]
      %v1298 = vld [vmem:[%s1292 + $0x14] sm:$0xf]
      %v1299 = vld [vmem:[%s1292 + $0x18] sm:$0xf]
      %v1300 = vld [vmem:[%s1292 + $0x1c] sm:$0xf]
      %v1301 = vld [vmem:[%s1292 + $0x20] sm:$0xf]
      %v1302 = vld [vmem:[%s1292 + $0x24] sm:$0xf]
      %v1303 = vld [vmem:[%s1292 + $0x28] sm:$0xf]
      %v1304 = vld [vmem:[%s1292 + $0x2c] sm:$0xf]
      %v1305 = vld [vmem:[%s1292 + $0x30] sm:$0xf]
      %v1306 = vld [vmem:[%s1292 + $0x34] sm:$0xf]
      %v1307 = vld [vmem:[%s1292 + $0x38] sm:$0xf]
      %v1308 = vld [vmem:[%s1292 + $0x3c] sm:$0xf]
      %v1325 = vunpack.c.l.b16 %v1293
      %v1326 = vunpack.c.l.b16 %v1294
      %v1327 = vunpack.c.l.b16 %v1295
      %v1328 = vunpack.c.l.b16 %v1296
      %v1329 = vunpack.c.l.b16 %v1297
      %v1330 = vunpack.c.l.b16 %v1298
      %v1331 = vunpack.c.l.b16 %v1299
      %v1332 = vunpack.c.l.b16 %v1300
      %v1333 = vunpack.c.l.b16 %v1301
      %v1334 = vunpack.c.l.b16 %v1302
      %v1335 = vunpack.c.l.b16 %v1303
      %v1336 = vunpack.c.l.b16 %v1304
      %v1337 = vunpack.c.l.b16 %v1305
      %v1338 = vunpack.c.l.b16 %v1306
      %v1339 = vunpack.c.l.b16 %v1307
      %v1340 = vunpack.c.l.b16 %v1308
      %v1341 = vpack.c.b16 %v1326, %v1325
      %v1342 = vpack.c.b16 %v1328, %v1327
      %v1343 = vpack.c.b16 %v1330, %v1329
      %v1344 = vpack.c.b16 %v1332, %v1331
      %v1345 = vpack.c.b16 %v1334, %v1333
      %v1346 = vpack.c.b16 %v1336, %v1335
      %v1347 = vpack.c.b16 %v1338, %v1337
      %v1348 = vpack.c.b16 %v1340, %v1339
      %1357 = vmatpush.bf16.msra.mxu0 %v1348
      %1358 = vmatpush.bf16.msra.mxu0 %v1347
      %1359 = vmatpush.bf16.msra.mxu0 %v1346
      %1360 = vmatpush.bf16.msra.mxu0 %v1345
      %1361 = vmatpush.bf16.msra.mxu0 %v1344
      %1362 = vmatpush.bf16.msra.mxu0 %v1343
      %1363 = vmatpush.bf16.msra.mxu0 %v1342
      %1364 = vmatpush.bf16.msra.mxu0 %v1341
      %1365 = vmatmul.bf16.gmra.mxu0 %v473
      %v1366 = vpop.f32.mrf.mxu0
      %v1367 = vadd.f32 0.0, %v1366
      %v1368 = vpop.f32.mrf.mxu0
      %v1369 = vadd.f32 0.0, %v1368
      %1370 = vmatmul.bf16.gmra.mxu0 %v474
      %v1371 = vpop.f32.mrf.mxu0
      %v1372 = vadd.f32 0.0, %v1371
      %v1373 = vpop.f32.mrf.mxu0
      %v1374 = vadd.f32 0.0, %v1373
      %1375 = vmatmul.bf16.gmra.mxu0 %v475
      %v1376 = vpop.f32.mrf.mxu0
      %v1377 = vadd.f32 0.0, %v1376
      %v1378 = vpop.f32.mrf.mxu0
      %v1379 = vadd.f32 0.0, %v1378
      %1380 = vmatmul.bf16.gmra.mxu0 %v476
      %v1381 = vpop.f32.mrf.mxu0
      %v1382 = vadd.f32 0.0, %v1381
      %v1383 = vpop.f32.mrf.mxu0
      %v1384 = vadd.f32 0.0, %v1383
      %1385 = vmatmul.bf16.gmra.mxu0 %v477
      %v1386 = vpop.f32.mrf.mxu0
      %v1387 = vadd.f32 0.0, %v1386
      %v1388 = vpop.f32.mrf.mxu0
      %v1389 = vadd.f32 0.0, %v1388
      %1390 = vmatmul.bf16.gmra.mxu0 %v478
      %v1391 = vpop.f32.mrf.mxu0
      %v1392 = vadd.f32 0.0, %v1391
      %v1393 = vpop.f32.mrf.mxu0
      %v1394 = vadd.f32 0.0, %v1393
      %1395 = vmatmul.bf16.gmra.mxu0 %v479
      %v1396 = vpop.f32.mrf.mxu0
      %v1397 = vadd.f32 0.0, %v1396
      %v1398 = vpop.f32.mrf.mxu0
      %v1399 = vadd.f32 0.0, %v1398
      %1400 = vmatmul.bf16.gmra.mxu0 %v480
      %v1401 = vpop.f32.mrf.mxu0
      %v1402 = vadd.f32 0.0, %v1401
      %v1403 = vpop.f32.mrf.mxu0
      %v1404 = vadd.f32 0.0, %v1403
      %1405 = vmatmul.bf16.gmra.mxu0 %v481
      %v1406 = vpop.f32.mrf.mxu0
      %v1407 = vadd.f32 0.0, %v1406
      %v1408 = vpop.f32.mrf.mxu0
      %v1409 = vadd.f32 0.0, %v1408
      %1410 = vmatmul.bf16.gmra.mxu0 %v482
      %v1411 = vpop.f32.mrf.mxu0
      %v1412 = vadd.f32 0.0, %v1411
      %v1413 = vpop.f32.mrf.mxu0
      %v1414 = vadd.f32 0.0, %v1413
      %1415 = vmatmul.bf16.gmra.mxu0 %v483
      %v1416 = vpop.f32.mrf.mxu0
      %v1417 = vadd.f32 0.0, %v1416
      %v1418 = vpop.f32.mrf.mxu0
      %v1419 = vadd.f32 0.0, %v1418
      %1420 = vmatmul.bf16.gmra.mxu0 %v484
      %v1421 = vpop.f32.mrf.mxu0
      %v1422 = vadd.f32 0.0, %v1421
      %v1423 = vpop.f32.mrf.mxu0
      %v1424 = vadd.f32 0.0, %v1423
      %1425 = vmatmul.bf16.gmra.mxu0 %v485
      %v1426 = vpop.f32.mrf.mxu0
      %v1427 = vadd.f32 0.0, %v1426
      %v1428 = vpop.f32.mrf.mxu0
      %v1429 = vadd.f32 0.0, %v1428
      %1430 = vmatmul.bf16.gmra.mxu0 %v486
      %v1431 = vpop.f32.mrf.mxu0
      %v1432 = vadd.f32 0.0, %v1431
      %v1433 = vpop.f32.mrf.mxu0
      %v1434 = vadd.f32 0.0, %v1433
      %1435 = vmatmul.bf16.gmra.mxu0 %v487
      %v1436 = vpop.f32.mrf.mxu0
      %v1437 = vadd.f32 0.0, %v1436
      %v1438 = vpop.f32.mrf.mxu0
      %v1439 = vadd.f32 0.0, %v1438
      %1440 = vmatmul.bf16.gmra.mxu0 %v1291
      %v1441 = vpop.f32.mrf.mxu0
      %v1442 = vadd.f32 0.0, %v1441
      %v1443 = vpop.f32.mrf.mxu0
      %v1444 = vadd.f32 0.0, %v1443
      %1445 = vdwg.mxu0
      %v1446 = vadd.f32 %v1249, %v1367
      %v1447 = vadd.f32 %v1250, %v1369
      %v1448 = vadd.f32 %v1251, %v1372
      %v1449 = vadd.f32 %v1252, %v1374
      %v1450 = vadd.f32 %v1253, %v1377
      %v1451 = vadd.f32 %v1254, %v1379
      %v1452 = vadd.f32 %v1255, %v1382
      %v1453 = vadd.f32 %v1256, %v1384
      %v1454 = vadd.f32 %v1257, %v1387
      %v1455 = vadd.f32 %v1258, %v1389
      %v1456 = vadd.f32 %v1259, %v1392
      %v1457 = vadd.f32 %v1260, %v1394
      %v1458 = vadd.f32 %v1261, %v1397
      %v1459 = vadd.f32 %v1262, %v1399
      %v1460 = vadd.f32 %v1263, %v1402
      %v1461 = vadd.f32 %v1264, %v1404
      %v1462 = vadd.f32 %v1265, %v1407
      %v1463 = vadd.f32 %v1266, %v1409
      %v1464 = vadd.f32 %v1267, %v1412
      %v1465 = vadd.f32 %v1268, %v1414
      %v1466 = vadd.f32 %v1269, %v1417
      %v1467 = vadd.f32 %v1270, %v1419
      %v1468 = vadd.f32 %v1271, %v1422
      %v1469 = vadd.f32 %v1272, %v1424
      %v1470 = vadd.f32 %v1273, %v1427
      %v1471 = vadd.f32 %v1274, %v1429
      %v1472 = vadd.f32 %v1275, %v1432
      %v1473 = vadd.f32 %v1276, %v1434
      %v1474 = vadd.f32 %v1277, %v1437
      %v1475 = vadd.f32 %v1278, %v1439
      %v1476 = vadd.f32 %v1279, %v1442
      %v1477 = vadd.f32 %v1280, %v1444
      %v1478 = vrot.slane %v273, 2
      %v1479 = vrot.slane %v274, 2
      %v1480 = vsel %vm779, %v1478, %v1479
      %v1481 = vrot.slane %v275, 2
      %v1482 = vsel %vm779, %v1479, %v1481
      %v1485 = vpack.c.bf16 %v1482, %v1480
      %s1486 = scalar_lea.vmem %s1, 320
      %v1487 = vld [vmem:[%s1486] sm:$0xf]
      %v1488 = vld [vmem:[%s1486 + $0x4] sm:$0xf]
      %v1489 = vld [vmem:[%s1486 + $0x8] sm:$0xf]
      %v1490 = vld [vmem:[%s1486 + $0xc] sm:$0xf]
      %v1491 = vld [vmem:[%s1486 + $0x10] sm:$0xf]
      %v1492 = vld [vmem:[%s1486 + $0x14] sm:$0xf]
      %v1493 = vld [vmem:[%s1486 + $0x18] sm:$0xf]
      %v1494 = vld [vmem:[%s1486 + $0x1c] sm:$0xf]
      %v1495 = vld [vmem:[%s1486 + $0x20] sm:$0xf]
      %v1496 = vld [vmem:[%s1486 + $0x24] sm:$0xf]
      %v1497 = vld [vmem:[%s1486 + $0x28] sm:$0xf]
      %v1498 = vld [vmem:[%s1486 + $0x2c] sm:$0xf]
      %v1499 = vld [vmem:[%s1486 + $0x30] sm:$0xf]
      %v1500 = vld [vmem:[%s1486 + $0x34] sm:$0xf]
      %v1501 = vld [vmem:[%s1486 + $0x38] sm:$0xf]
      %v1502 = vld [vmem:[%s1486 + $0x3c] sm:$0xf]
      %v1519 = vunpack.c.l.b16 %v1487
      %v1520 = vunpack.c.l.b16 %v1488
      %v1521 = vunpack.c.l.b16 %v1489
      %v1522 = vunpack.c.l.b16 %v1490
      %v1523 = vunpack.c.l.b16 %v1491
      %v1524 = vunpack.c.l.b16 %v1492
      %v1525 = vunpack.c.l.b16 %v1493
      %v1526 = vunpack.c.l.b16 %v1494
      %v1527 = vunpack.c.l.b16 %v1495
      %v1528 = vunpack.c.l.b16 %v1496
      %v1529 = vunpack.c.l.b16 %v1497
      %v1530 = vunpack.c.l.b16 %v1498
      %v1531 = vunpack.c.l.b16 %v1499
      %v1532 = vunpack.c.l.b16 %v1500
      %v1533 = vunpack.c.l.b16 %v1501
      %v1534 = vunpack.c.l.b16 %v1502
      %v1535 = vpack.c.b16 %v1520, %v1519
      %v1536 = vpack.c.b16 %v1522, %v1521
      %v1537 = vpack.c.b16 %v1524, %v1523
      %v1538 = vpack.c.b16 %v1526, %v1525
      %v1539 = vpack.c.b16 %v1528, %v1527
      %v1540 = vpack.c.b16 %v1530, %v1529
      %v1541 = vpack.c.b16 %v1532, %v1531
      %v1542 = vpack.c.b16 %v1534, %v1533
      %1551 = vmatpush.bf16.msra.mxu0 %v1542
      %1552 = vmatpush.bf16.msra.mxu0 %v1541
      %1553 = vmatpush.bf16.msra.mxu0 %v1540
      %1554 = vmatpush.bf16.msra.mxu0 %v1539
      %1555 = vmatpush.bf16.msra.mxu0 %v1538
      %1556 = vmatpush.bf16.msra.mxu0 %v1537
      %1557 = vmatpush.bf16.msra.mxu0 %v1536
      %1558 = vmatpush.bf16.msra.mxu0 %v1535
      %1559 = vmatmul.bf16.gmra.mxu0 %v893
      %v1560 = vpop.f32.mrf.mxu0
      %v1561 = vadd.f32 0.0, %v1560
      %v1562 = vpop.f32.mrf.mxu0
      %v1563 = vadd.f32 0.0, %v1562
      %1564 = vmatmul.bf16.gmra.mxu0 %v894
      %v1565 = vpop.f32.mrf.mxu0
      %v1566 = vadd.f32 0.0, %v1565
      %v1567 = vpop.f32.mrf.mxu0
      %v1568 = vadd.f32 0.0, %v1567
      %1569 = vmatmul.bf16.gmra.mxu0 %v895
      %v1570 = vpop.f32.mrf.mxu0
      %v1571 = vadd.f32 0.0, %v1570
      %v1572 = vpop.f32.mrf.mxu0
      %v1573 = vadd.f32 0.0, %v1572
      %1574 = vmatmul.bf16.gmra.mxu0 %v896
      %v1575 = vpop.f32.mrf.mxu0
      %v1576 = vadd.f32 0.0, %v1575
      %v1577 = vpop.f32.mrf.mxu0
      %v1578 = vadd.f32 0.0, %v1577
      %1579 = vmatmul.bf16.gmra.mxu0 %v897
      %v1580 = vpop.f32.mrf.mxu0
      %v1581 = vadd.f32 0.0, %v1580
      %v1582 = vpop.f32.mrf.mxu0
      %v1583 = vadd.f32 0.0, %v1582
      %1584 = vmatmul.bf16.gmra.mxu0 %v898
      %v1585 = vpop.f32.mrf.mxu0
      %v1586 = vadd.f32 0.0, %v1585
      %v1587 = vpop.f32.mrf.mxu0
      %v1588 = vadd.f32 0.0, %v1587
      %1589 = vmatmul.bf16.gmra.mxu0 %v899
      %v1590 = vpop.f32.mrf.mxu0
      %v1591 = vadd.f32 0.0, %v1590
      %v1592 = vpop.f32.mrf.mxu0
      %v1593 = vadd.f32 0.0, %v1592
      %1594 = vmatmul.bf16.gmra.mxu0 %v900
      %v1595 = vpop.f32.mrf.mxu0
      %v1596 = vadd.f32 0.0, %v1595
      %v1597 = vpop.f32.mrf.mxu0
      %v1598 = vadd.f32 0.0, %v1597
      %1599 = vmatmul.bf16.gmra.mxu0 %v901
      %v1600 = vpop.f32.mrf.mxu0
      %v1601 = vadd.f32 0.0, %v1600
      %v1602 = vpop.f32.mrf.mxu0
      %v1603 = vadd.f32 0.0, %v1602
      %1604 = vmatmul.bf16.gmra.mxu0 %v902
      %v1605 = vpop.f32.mrf.mxu0
      %v1606 = vadd.f32 0.0, %v1605
      %v1607 = vpop.f32.mrf.mxu0
      %v1608 = vadd.f32 0.0, %v1607
      %1609 = vmatmul.bf16.gmra.mxu0 %v903
      %v1610 = vpop.f32.mrf.mxu0
      %v1611 = vadd.f32 0.0, %v1610
      %v1612 = vpop.f32.mrf.mxu0
      %v1613 = vadd.f32 0.0, %v1612
      %1614 = vmatmul.bf16.gmra.mxu0 %v904
      %v1615 = vpop.f32.mrf.mxu0
      %v1616 = vadd.f32 0.0, %v1615
      %v1617 = vpop.f32.mrf.mxu0
      %v1618 = vadd.f32 0.0, %v1617
      %1619 = vmatmul.bf16.gmra.mxu0 %v905
      %v1620 = vpop.f32.mrf.mxu0
      %v1621 = vadd.f32 0.0, %v1620
      %v1622 = vpop.f32.mrf.mxu0
      %v1623 = vadd.f32 0.0, %v1622
      %1624 = vmatmul.bf16.gmra.mxu0 %v906
      %v1625 = vpop.f32.mrf.mxu0
      %v1626 = vadd.f32 0.0, %v1625
      %v1627 = vpop.f32.mrf.mxu0
      %v1628 = vadd.f32 0.0, %v1627
      %1629 = vmatmul.bf16.gmra.mxu0 %v907
      %v1630 = vpop.f32.mrf.mxu0
      %v1631 = vadd.f32 0.0, %v1630
      %v1632 = vpop.f32.mrf.mxu0
      %v1633 = vadd.f32 0.0, %v1632
      %1634 = vmatmul.bf16.gmra.mxu0 %v1485
      %v1635 = vpop.f32.mrf.mxu0
      %v1636 = vadd.f32 0.0, %v1635
      %v1637 = vpop.f32.mrf.mxu0
      %v1638 = vadd.f32 0.0, %v1637
      %1639 = vdwg.mxu0
      %v1640 = vadd.f32 %v1446, %v1561
      %v1641 = vadd.f32 %v1447, %v1563
      %v1642 = vadd.f32 %v1448, %v1566
      %v1643 = vadd.f32 %v1449, %v1568
      %v1644 = vadd.f32 %v1450, %v1571
      %v1645 = vadd.f32 %v1451, %v1573
      %v1646 = vadd.f32 %v1452, %v1576
      %v1647 = vadd.f32 %v1453, %v1578
      %v1648 = vadd.f32 %v1454, %v1581
      %v1649 = vadd.f32 %v1455, %v1583
      %v1650 = vadd.f32 %v1456, %v1586
      %v1651 = vadd.f32 %v1457, %v1588
      %v1652 = vadd.f32 %v1458, %v1591
      %v1653 = vadd.f32 %v1459, %v1593
      %v1654 = vadd.f32 %v1460, %v1596
      %v1655 = vadd.f32 %v1461, %v1598
      %v1656 = vadd.f32 %v1462, %v1601
      %v1657 = vadd.f32 %v1463, %v1603
      %v1658 = vadd.f32 %v1464, %v1606
      %v1659 = vadd.f32 %v1465, %v1608
      %v1660 = vadd.f32 %v1466, %v1611
      %v1661 = vadd.f32 %v1467, %v1613
      %v1662 = vadd.f32 %v1468, %v1616
      %v1663 = vadd.f32 %v1469, %v1618
      %v1664 = vadd.f32 %v1470, %v1621
      %v1665 = vadd.f32 %v1471, %v1623
      %v1666 = vadd.f32 %v1472, %v1626
      %v1667 = vadd.f32 %v1473, %v1628
      %v1668 = vadd.f32 %v1474, %v1631
      %v1669 = vadd.f32 %v1475, %v1633
      %v1670 = vadd.f32 %v1476, %v1636
      %v1671 = vadd.f32 %v1477, %v1638
      %v1672 = vpack.c.bf16 %v277, %v276
      %s1673 = scalar_lea.vmem %s1, 384
      %v1674 = vld [vmem:[%s1673] sm:$0xf]
      %v1675 = vld [vmem:[%s1673 + $0x4] sm:$0xf]
      %v1676 = vld [vmem:[%s1673 + $0x8] sm:$0xf]
      %v1677 = vld [vmem:[%s1673 + $0xc] sm:$0xf]
      %v1678 = vld [vmem:[%s1673 + $0x10] sm:$0xf]
      %v1679 = vld [vmem:[%s1673 + $0x14] sm:$0xf]
      %v1680 = vld [vmem:[%s1673 + $0x18] sm:$0xf]
      %v1681 = vld [vmem:[%s1673 + $0x1c] sm:$0xf]
      %v1682 = vld [vmem:[%s1673 + $0x20] sm:$0xf]
      %v1683 = vld [vmem:[%s1673 + $0x24] sm:$0xf]
      %v1684 = vld [vmem:[%s1673 + $0x28] sm:$0xf]
      %v1685 = vld [vmem:[%s1673 + $0x2c] sm:$0xf]
      %v1686 = vld [vmem:[%s1673 + $0x30] sm:$0xf]
      %v1687 = vld [vmem:[%s1673 + $0x34] sm:$0xf]
      %v1688 = vld [vmem:[%s1673 + $0x38] sm:$0xf]
      %v1689 = vld [vmem:[%s1673 + $0x3c] sm:$0xf]
      %v1706 = vunpack.c.l.b16 %v1674
      %v1707 = vunpack.c.l.b16 %v1675
      %v1708 = vunpack.c.l.b16 %v1676
      %v1709 = vunpack.c.l.b16 %v1677
      %v1710 = vunpack.c.l.b16 %v1678
      %v1711 = vunpack.c.l.b16 %v1679
      %v1712 = vunpack.c.l.b16 %v1680
      %v1713 = vunpack.c.l.b16 %v1681
      %v1714 = vunpack.c.l.b16 %v1682
      %v1715 = vunpack.c.l.b16 %v1683
      %v1716 = vunpack.c.l.b16 %v1684
      %v1717 = vunpack.c.l.b16 %v1685
      %v1718 = vunpack.c.l.b16 %v1686
      %v1719 = vunpack.c.l.b16 %v1687
      %v1720 = vunpack.c.l.b16 %v1688
      %v1721 = vunpack.c.l.b16 %v1689
      %v1722 = vpack.c.b16 %v1707, %v1706
      %v1723 = vpack.c.b16 %v1709, %v1708
      %v1724 = vpack.c.b16 %v1711, %v1710
      %v1725 = vpack.c.b16 %v1713, %v1712
      %v1726 = vpack.c.b16 %v1715, %v1714
      %v1727 = vpack.c.b16 %v1717, %v1716
      %v1728 = vpack.c.b16 %v1719, %v1718
      %v1729 = vpack.c.b16 %v1721, %v1720
      %1738 = vmatpush.bf16.msra.mxu0 %v1729
      %1739 = vmatpush.bf16.msra.mxu0 %v1728
      %1740 = vmatpush.bf16.msra.mxu0 %v1727
      %1741 = vmatpush.bf16.msra.mxu0 %v1726
      %1742 = vmatpush.bf16.msra.mxu0 %v1725
      %1743 = vmatpush.bf16.msra.mxu0 %v1724
      %1744 = vmatpush.bf16.msra.mxu0 %v1723
      %1745 = vmatpush.bf16.msra.mxu0 %v1722
      %1746 = vmatmul.bf16.gmra.mxu0 %v281
      %v1747 = vpop.f32.mrf.mxu0
      %v1748 = vadd.f32 0.0, %v1747
      %v1749 = vpop.f32.mrf.mxu0
      %v1750 = vadd.f32 0.0, %v1749
      %1751 = vmatmul.bf16.gmra.mxu0 %v282
      %v1752 = vpop.f32.mrf.mxu0
      %v1753 = vadd.f32 0.0, %v1752
      %v1754 = vpop.f32.mrf.mxu0
      %v1755 = vadd.f32 0.0, %v1754
      %1756 = vmatmul.bf16.gmra.mxu0 %v283
      %v1757 = vpop.f32.mrf.mxu0
      %v1758 = vadd.f32 0.0, %v1757
      %v1759 = vpop.f32.mrf.mxu0
      %v1760 = vadd.f32 0.0, %v1759
      %1761 = vmatmul.bf16.gmra.mxu0 %v284
      %v1762 = vpop.f32.mrf.mxu0
      %v1763 = vadd.f32 0.0, %v1762
      %v1764 = vpop.f32.mrf.mxu0
      %v1765 = vadd.f32 0.0, %v1764
      %1766 = vmatmul.bf16.gmra.mxu0 %v285
      %v1767 = vpop.f32.mrf.mxu0
      %v1768 = vadd.f32 0.0, %v1767
      %v1769 = vpop.f32.mrf.mxu0
      %v1770 = vadd.f32 0.0, %v1769
      %1771 = vmatmul.bf16.gmra.mxu0 %v286
      %v1772 = vpop.f32.mrf.mxu0
      %v1773 = vadd.f32 0.0, %v1772
      %v1774 = vpop.f32.mrf.mxu0
      %v1775 = vadd.f32 0.0, %v1774
      %1776 = vmatmul.bf16.gmra.mxu0 %v287
      %v1777 = vpop.f32.mrf.mxu0
      %v1778 = vadd.f32 0.0, %v1777
      %v1779 = vpop.f32.mrf.mxu0
      %v1780 = vadd.f32 0.0, %v1779
      %1781 = vmatmul.bf16.gmra.mxu0 %v288
      %v1782 = vpop.f32.mrf.mxu0
      %v1783 = vadd.f32 0.0, %v1782
      %v1784 = vpop.f32.mrf.mxu0
      %v1785 = vadd.f32 0.0, %v1784
      %1786 = vmatmul.bf16.gmra.mxu0 %v289
      %v1787 = vpop.f32.mrf.mxu0
      %v1788 = vadd.f32 0.0, %v1787
      %v1789 = vpop.f32.mrf.mxu0
      %v1790 = vadd.f32 0.0, %v1789
      %1791 = vmatmul.bf16.gmra.mxu0 %v290
      %v1792 = vpop.f32.mrf.mxu0
      %v1793 = vadd.f32 0.0, %v1792
      %v1794 = vpop.f32.mrf.mxu0
      %v1795 = vadd.f32 0.0, %v1794
      %1796 = vmatmul.bf16.gmra.mxu0 %v291
      %v1797 = vpop.f32.mrf.mxu0
      %v1798 = vadd.f32 0.0, %v1797
      %v1799 = vpop.f32.mrf.mxu0
      %v1800 = vadd.f32 0.0, %v1799
      %1801 = vmatmul.bf16.gmra.mxu0 %v292
      %v1802 = vpop.f32.mrf.mxu0
      %v1803 = vadd.f32 0.0, %v1802
      %v1804 = vpop.f32.mrf.mxu0
      %v1805 = vadd.f32 0.0, %v1804
      %1806 = vmatmul.bf16.gmra.mxu0 %v293
      %v1807 = vpop.f32.mrf.mxu0
      %v1808 = vadd.f32 0.0, %v1807
      %v1809 = vpop.f32.mrf.mxu0
      %v1810 = vadd.f32 0.0, %v1809
      %1811 = vmatmul.bf16.gmra.mxu0 %v294
      %v1812 = vpop.f32.mrf.mxu0
      %v1813 = vadd.f32 0.0, %v1812
      %v1814 = vpop.f32.mrf.mxu0
      %v1815 = vadd.f32 0.0, %v1814
      %1816 = vmatmul.bf16.gmra.mxu0 %v1094
      %v1817 = vpop.f32.mrf.mxu0
      %v1818 = vadd.f32 0.0, %v1817
      %v1819 = vpop.f32.mrf.mxu0
      %v1820 = vadd.f32 0.0, %v1819
      %1821 = vmatmul.bf16.gmra.mxu0 %v1672
      %v1822 = vpop.f32.mrf.mxu0
      %v1823 = vadd.f32 0.0, %v1822
      %v1824 = vpop.f32.mrf.mxu0
      %v1825 = vadd.f32 0.0, %v1824
      %1826 = vdwg.mxu0
      %v1827 = vadd.f32 %v1640, %v1748
      %v1828 = vadd.f32 %v1641, %v1750
      %v1829 = vadd.f32 %v1642, %v1753
      %v1830 = vadd.f32 %v1643, %v1755
      %v1831 = vadd.f32 %v1644, %v1758
      %v1832 = vadd.f32 %v1645, %v1760
      %v1833 = vadd.f32 %v1646, %v1763
      %v1834 = vadd.f32 %v1647, %v1765
      %v1835 = vadd.f32 %v1648, %v1768
      %v1836 = vadd.f32 %v1649, %v1770
      %v1837 = vadd.f32 %v1650, %v1773
      %v1838 = vadd.f32 %v1651, %v1775
      %v1839 = vadd.f32 %v1652, %v1778
      %v1840 = vadd.f32 %v1653, %v1780
      %v1841 = vadd.f32 %v1654, %v1783
      %v1842 = vadd.f32 %v1655, %v1785
      %v1843 = vadd.f32 %v1656, %v1788
      %v1844 = vadd.f32 %v1657, %v1790
      %v1845 = vadd.f32 %v1658, %v1793
      %v1846 = vadd.f32 %v1659, %v1795
      %v1847 = vadd.f32 %v1660, %v1798
      %v1848 = vadd.f32 %v1661, %v1800
      %v1849 = vadd.f32 %v1662, %v1803
      %v1850 = vadd.f32 %v1663, %v1805
      %v1851 = vadd.f32 %v1664, %v1808
      %v1852 = vadd.f32 %v1665, %v1810
      %v1853 = vadd.f32 %v1666, %v1813
      %v1854 = vadd.f32 %v1667, %v1815
      %v1855 = vadd.f32 %v1668, %v1818
      %v1856 = vadd.f32 %v1669, %v1820
      %v1857 = vadd.f32 %v1670, %v1823
      %v1858 = vadd.f32 %v1671, %v1825
      %v1862 = vrot.slane %v276, 1
      %v1863 = vrot.slane %v277, 1
      %v1864 = vsel %vm359, %v1862, %v1863
      %v1865 = vrot.slane %v278, 1
      %v1866 = vsel %vm359, %v1863, %v1865
      %v1869 = vpack.c.bf16 %v1866, %v1864
      %s1870 = scalar_lea.vmem %s1, 448
      %v1871 = vld [vmem:[%s1870] sm:$0xf]
      %v1872 = vld [vmem:[%s1870 + $0x4] sm:$0xf]
      %v1873 = vld [vmem:[%s1870 + $0x8] sm:$0xf]
      %v1874 = vld [vmem:[%s1870 + $0xc] sm:$0xf]
      %v1875 = vld [vmem:[%s1870 + $0x10] sm:$0xf]
      %v1876 = vld [vmem:[%s1870 + $0x14] sm:$0xf]
      %v1877 = vld [vmem:[%s1870 + $0x18] sm:$0xf]
      %v1878 = vld [vmem:[%s1870 + $0x1c] sm:$0xf]
      %v1879 = vld [vmem:[%s1870 + $0x20] sm:$0xf]
      %v1880 = vld [vmem:[%s1870 + $0x24] sm:$0xf]
      %v1881 = vld [vmem:[%s1870 + $0x28] sm:$0xf]
      %v1882 = vld [vmem:[%s1870 + $0x2c] sm:$0xf]
      %v1883 = vld [vmem:[%s1870 + $0x30] sm:$0xf]
      %v1884 = vld [vmem:[%s1870 + $0x34] sm:$0xf]
      %v1885 = vld [vmem:[%s1870 + $0x38] sm:$0xf]
      %v1886 = vld [vmem:[%s1870 + $0x3c] sm:$0xf]
      %v1903 = vunpack.c.l.b16 %v1871
      %v1904 = vunpack.c.l.b16 %v1872
      %v1905 = vunpack.c.l.b16 %v1873
      %v1906 = vunpack.c.l.b16 %v1874
      %v1907 = vunpack.c.l.b16 %v1875
      %v1908 = vunpack.c.l.b16 %v1876
      %v1909 = vunpack.c.l.b16 %v1877
      %v1910 = vunpack.c.l.b16 %v1878
      %v1911 = vunpack.c.l.b16 %v1879
      %v1912 = vunpack.c.l.b16 %v1880
      %v1913 = vunpack.c.l.b16 %v1881
      %v1914 = vunpack.c.l.b16 %v1882
      %v1915 = vunpack.c.l.b16 %v1883
      %v1916 = vunpack.c.l.b16 %v1884
      %v1917 = vunpack.c.l.b16 %v1885
      %v1918 = vunpack.c.l.b16 %v1886
      %v1919 = vpack.c.b16 %v1904, %v1903
      %v1920 = vpack.c.b16 %v1906, %v1905
      %v1921 = vpack.c.b16 %v1908, %v1907
      %v1922 = vpack.c.b16 %v1910, %v1909
      %v1923 = vpack.c.b16 %v1912, %v1911
      %v1924 = vpack.c.b16 %v1914, %v1913
      %v1925 = vpack.c.b16 %v1916, %v1915
      %v1926 = vpack.c.b16 %v1918, %v1917
      %1935 = vmatpush.bf16.msra.mxu0 %v1926
      %1936 = vmatpush.bf16.msra.mxu0 %v1925
      %1937 = vmatpush.bf16.msra.mxu0 %v1924
      %1938 = vmatpush.bf16.msra.mxu0 %v1923
      %1939 = vmatpush.bf16.msra.mxu0 %v1922
      %1940 = vmatpush.bf16.msra.mxu0 %v1921
      %1941 = vmatpush.bf16.msra.mxu0 %v1920
      %1942 = vmatpush.bf16.msra.mxu0 %v1919
      %1943 = vmatmul.bf16.gmra.mxu0 %v474
      %v1944 = vpop.f32.mrf.mxu0
      %v1945 = vadd.f32 0.0, %v1944
      %v1946 = vpop.f32.mrf.mxu0
      %v1947 = vadd.f32 0.0, %v1946
      %1948 = vmatmul.bf16.gmra.mxu0 %v475
      %v1949 = vpop.f32.mrf.mxu0
      %v1950 = vadd.f32 0.0, %v1949
      %v1951 = vpop.f32.mrf.mxu0
      %v1952 = vadd.f32 0.0, %v1951
      %1953 = vmatmul.bf16.gmra.mxu0 %v476
      %v1954 = vpop.f32.mrf.mxu0
      %v1955 = vadd.f32 0.0, %v1954
      %v1956 = vpop.f32.mrf.mxu0
      %v1957 = vadd.f32 0.0, %v1956
      %1958 = vmatmul.bf16.gmra.mxu0 %v477
      %v1959 = vpop.f32.mrf.mxu0
      %v1960 = vadd.f32 0.0, %v1959
      %v1961 = vpop.f32.mrf.mxu0
      %v1962 = vadd.f32 0.0, %v1961
      %1963 = vmatmul.bf16.gmra.mxu0 %v478
      %v1964 = vpop.f32.mrf.mxu0
      %v1965 = vadd.f32 0.0, %v1964
      %v1966 = vpop.f32.mrf.mxu0
      %v1967 = vadd.f32 0.0, %v1966
      %1968 = vmatmul.bf16.gmra.mxu0 %v479
      %v1969 = vpop.f32.mrf.mxu0
      %v1970 = vadd.f32 0.0, %v1969
      %v1971 = vpop.f32.mrf.mxu0
      %v1972 = vadd.f32 0.0, %v1971
      %1973 = vmatmul.bf16.gmra.mxu0 %v480
      %v1974 = vpop.f32.mrf.mxu0
      %v1975 = vadd.f32 0.0, %v1974
      %v1976 = vpop.f32.mrf.mxu0
      %v1977 = vadd.f32 0.0, %v1976
      %1978 = vmatmul.bf16.gmra.mxu0 %v481
      %v1979 = vpop.f32.mrf.mxu0
      %v1980 = vadd.f32 0.0, %v1979
      %v1981 = vpop.f32.mrf.mxu0
      %v1982 = vadd.f32 0.0, %v1981
      %1983 = vmatmul.bf16.gmra.mxu0 %v482
      %v1984 = vpop.f32.mrf.mxu0
      %v1985 = vadd.f32 0.0, %v1984
      %v1986 = vpop.f32.mrf.mxu0
      %v1987 = vadd.f32 0.0, %v1986
      %1988 = vmatmul.bf16.gmra.mxu0 %v483
      %v1989 = vpop.f32.mrf.mxu0
      %v1990 = vadd.f32 0.0, %v1989
      %v1991 = vpop.f32.mrf.mxu0
      %v1992 = vadd.f32 0.0, %v1991
      %1993 = vmatmul.bf16.gmra.mxu0 %v484
      %v1994 = vpop.f32.mrf.mxu0
      %v1995 = vadd.f32 0.0, %v1994
      %v1996 = vpop.f32.mrf.mxu0
      %v1997 = vadd.f32 0.0, %v1996
      %1998 = vmatmul.bf16.gmra.mxu0 %v485
      %v1999 = vpop.f32.mrf.mxu0
      %v2000 = vadd.f32 0.0, %v1999
      %v2001 = vpop.f32.mrf.mxu0
      %v2002 = vadd.f32 0.0, %v2001
      %2003 = vmatmul.bf16.gmra.mxu0 %v486
      %v2004 = vpop.f32.mrf.mxu0
      %v2005 = vadd.f32 0.0, %v2004
      %v2006 = vpop.f32.mrf.mxu0
      %v2007 = vadd.f32 0.0, %v2006
      %2008 = vmatmul.bf16.gmra.mxu0 %v487
      %v2009 = vpop.f32.mrf.mxu0
      %v2010 = vadd.f32 0.0, %v2009
      %v2011 = vpop.f32.mrf.mxu0
      %v2012 = vadd.f32 0.0, %v2011
      %2013 = vmatmul.bf16.gmra.mxu0 %v1291
      %v2014 = vpop.f32.mrf.mxu0
      %v2015 = vadd.f32 0.0, %v2014
      %v2016 = vpop.f32.mrf.mxu0
      %v2017 = vadd.f32 0.0, %v2016
      %2018 = vmatmul.bf16.gmra.mxu0 %v1869
      %v2019 = vpop.f32.mrf.mxu0
      %v2020 = vadd.f32 0.0, %v2019
      %v2021 = vpop.f32.mrf.mxu0
      %v2022 = vadd.f32 0.0, %v2021
      %2023 = vdwg.mxu0
      %v2024 = vadd.f32 %v1827, %v1945
      %v2025 = vadd.f32 %v1828, %v1947
      %v2026 = vadd.f32 %v1829, %v1950
      %v2027 = vadd.f32 %v1830, %v1952
      %v2028 = vadd.f32 %v1831, %v1955
      %v2029 = vadd.f32 %v1832, %v1957
      %v2030 = vadd.f32 %v1833, %v1960
      %v2031 = vadd.f32 %v1834, %v1962
      %v2032 = vadd.f32 %v1835, %v1965
      %v2033 = vadd.f32 %v1836, %v1967
      %v2034 = vadd.f32 %v1837, %v1970
      %v2035 = vadd.f32 %v1838, %v1972
      %v2036 = vadd.f32 %v1839, %v1975
      %v2037 = vadd.f32 %v1840, %v1977
      %v2038 = vadd.f32 %v1841, %v1980
      %v2039 = vadd.f32 %v1842, %v1982
      %v2040 = vadd.f32 %v1843, %v1985
      %v2041 = vadd.f32 %v1844, %v1987
      %v2042 = vadd.f32 %v1845, %v1990
      %v2043 = vadd.f32 %v1846, %v1992
      %v2044 = vadd.f32 %v1847, %v1995
      %v2045 = vadd.f32 %v1848, %v1997
      %v2046 = vadd.f32 %v1849, %v2000
      %v2047 = vadd.f32 %v1850, %v2002
      %v2048 = vadd.f32 %v1851, %v2005
      %v2049 = vadd.f32 %v1852, %v2007
      %v2050 = vadd.f32 %v1853, %v2010
      %v2051 = vadd.f32 %v1854, %v2012
      %v2052 = vadd.f32 %v1855, %v2015
      %v2053 = vadd.f32 %v1856, %v2017
      %v2054 = vadd.f32 %v1857, %v2020
      %v2055 = vadd.f32 %v1858, %v2022
      %v2056 = vrot.slane %v276, 2
      %v2057 = vrot.slane %v277, 2
      %v2058 = vsel %vm779, %v2056, %v2057
      %v2059 = vrot.slane %v278, 2
      %v2060 = vsel %vm779, %v2057, %v2059
      %v2063 = vpack.c.bf16 %v2060, %v2058
      %s2064 = scalar_lea.vmem %s1, 512
      %v2065 = vld [vmem:[%s2064] sm:$0xf]
      %v2066 = vld [vmem:[%s2064 + $0x4] sm:$0xf]
      %v2067 = vld [vmem:[%s2064 + $0x8] sm:$0xf]
      %v2068 = vld [vmem:[%s2064 + $0xc] sm:$0xf]
      %v2069 = vld [vmem:[%s2064 + $0x10] sm:$0xf]
      %v2070 = vld [vmem:[%s2064 + $0x14] sm:$0xf]
      %v2071 = vld [vmem:[%s2064 + $0x18] sm:$0xf]
      %v2072 = vld [vmem:[%s2064 + $0x1c] sm:$0xf]
      %v2073 = vld [vmem:[%s2064 + $0x20] sm:$0xf]
      %v2074 = vld [vmem:[%s2064 + $0x24] sm:$0xf]
      %v2075 = vld [vmem:[%s2064 + $0x28] sm:$0xf]
      %v2076 = vld [vmem:[%s2064 + $0x2c] sm:$0xf]
      %v2077 = vld [vmem:[%s2064 + $0x30] sm:$0xf]
      %v2078 = vld [vmem:[%s2064 + $0x34] sm:$0xf]
      %v2079 = vld [vmem:[%s2064 + $0x38] sm:$0xf]
      %v2080 = vld [vmem:[%s2064 + $0x3c] sm:$0xf]
      %v2097 = vunpack.c.l.b16 %v2065
      %v2098 = vunpack.c.l.b16 %v2066
      %v2099 = vunpack.c.l.b16 %v2067
      %v2100 = vunpack.c.l.b16 %v2068
      %v2101 = vunpack.c.l.b16 %v2069
      %v2102 = vunpack.c.l.b16 %v2070
      %v2103 = vunpack.c.l.b16 %v2071
      %v2104 = vunpack.c.l.b16 %v2072
      %v2105 = vunpack.c.l.b16 %v2073
      %v2106 = vunpack.c.l.b16 %v2074
      %v2107 = vunpack.c.l.b16 %v2075
      %v2108 = vunpack.c.l.b16 %v2076
      %v2109 = vunpack.c.l.b16 %v2077
      %v2110 = vunpack.c.l.b16 %v2078
      %v2111 = vunpack.c.l.b16 %v2079
      %v2112 = vunpack.c.l.b16 %v2080
      %v2113 = vpack.c.b16 %v2098, %v2097
      %v2114 = vpack.c.b16 %v2100, %v2099
      %v2115 = vpack.c.b16 %v2102, %v2101
      %v2116 = vpack.c.b16 %v2104, %v2103
      %v2117 = vpack.c.b16 %v2106, %v2105
      %v2118 = vpack.c.b16 %v2108, %v2107
      %v2119 = vpack.c.b16 %v2110, %v2109
      %v2120 = vpack.c.b16 %v2112, %v2111
      %2129 = vmatpush.bf16.msra.mxu0 %v2120
      %2130 = vmatpush.bf16.msra.mxu0 %v2119
      %2131 = vmatpush.bf16.msra.mxu0 %v2118
      %2132 = vmatpush.bf16.msra.mxu0 %v2117
      %2133 = vmatpush.bf16.msra.mxu0 %v2116
      %2134 = vmatpush.bf16.msra.mxu0 %v2115
      %2135 = vmatpush.bf16.msra.mxu0 %v2114
      %2136 = vmatpush.bf16.msra.mxu0 %v2113
      %2137 = vmatmul.bf16.gmra.mxu0 %v894
      %v2138 = vpop.f32.mrf.mxu0
      %v2139 = vadd.f32 0.0, %v2138
      %v2140 = vpop.f32.mrf.mxu0
      %v2141 = vadd.f32 0.0, %v2140
      %2142 = vmatmul.bf16.gmra.mxu0 %v895
      %v2143 = vpop.f32.mrf.mxu0
      %v2144 = vadd.f32 0.0, %v2143
      %v2145 = vpop.f32.mrf.mxu0
      %v2146 = vadd.f32 0.0, %v2145
      %2147 = vmatmul.bf16.gmra.mxu0 %v896
      %v2148 = vpop.f32.mrf.mxu0
      %v2149 = vadd.f32 0.0, %v2148
      %v2150 = vpop.f32.mrf.mxu0
      %v2151 = vadd.f32 0.0, %v2150
      %2152 = vmatmul.bf16.gmra.mxu0 %v897
      %v2153 = vpop.f32.mrf.mxu0
      %v2154 = vadd.f32 0.0, %v2153
      %v2155 = vpop.f32.mrf.mxu0
      %v2156 = vadd.f32 0.0, %v2155
      %2157 = vmatmul.bf16.gmra.mxu0 %v898
      %v2158 = vpop.f32.mrf.mxu0
      %v2159 = vadd.f32 0.0, %v2158
      %v2160 = vpop.f32.mrf.mxu0
      %v2161 = vadd.f32 0.0, %v2160
      %2162 = vmatmul.bf16.gmra.mxu0 %v899
      %v2163 = vpop.f32.mrf.mxu0
      %v2164 = vadd.f32 0.0, %v2163
      %v2165 = vpop.f32.mrf.mxu0
      %v2166 = vadd.f32 0.0, %v2165
      %2167 = vmatmul.bf16.gmra.mxu0 %v900
      %v2168 = vpop.f32.mrf.mxu0
      %v2169 = vadd.f32 0.0, %v2168
      %v2170 = vpop.f32.mrf.mxu0
      %v2171 = vadd.f32 0.0, %v2170
      %2172 = vmatmul.bf16.gmra.mxu0 %v901
      %v2173 = vpop.f32.mrf.mxu0
      %v2174 = vadd.f32 0.0, %v2173
      %v2175 = vpop.f32.mrf.mxu0
      %v2176 = vadd.f32 0.0, %v2175
      %2177 = vmatmul.bf16.gmra.mxu0 %v902
      %v2178 = vpop.f32.mrf.mxu0
      %v2179 = vadd.f32 0.0, %v2178
      %v2180 = vpop.f32.mrf.mxu0
      %v2181 = vadd.f32 0.0, %v2180
      %2182 = vmatmul.bf16.gmra.mxu0 %v903
      %v2183 = vpop.f32.mrf.mxu0
      %v2184 = vadd.f32 0.0, %v2183
      %v2185 = vpop.f32.mrf.mxu0
      %v2186 = vadd.f32 0.0, %v2185
      %2187 = vmatmul.bf16.gmra.mxu0 %v904
      %v2188 = vpop.f32.mrf.mxu0
      %v2189 = vadd.f32 0.0, %v2188
      %v2190 = vpop.f32.mrf.mxu0
      %v2191 = vadd.f32 0.0, %v2190
      %2192 = vmatmul.bf16.gmra.mxu0 %v905
      %v2193 = vpop.f32.mrf.mxu0
      %v2194 = vadd.f32 0.0, %v2193
      %v2195 = vpop.f32.mrf.mxu0
      %v2196 = vadd.f32 0.0, %v2195
      %2197 = vmatmul.bf16.gmra.mxu0 %v906
      %v2198 = vpop.f32.mrf.mxu0
      %v2199 = vadd.f32 0.0, %v2198
      %v2200 = vpop.f32.mrf.mxu0
      %v2201 = vadd.f32 0.0, %v2200
      %2202 = vmatmul.bf16.gmra.mxu0 %v907
      %v2203 = vpop.f32.mrf.mxu0
      %v2204 = vadd.f32 0.0, %v2203
      %v2205 = vpop.f32.mrf.mxu0
      %v2206 = vadd.f32 0.0, %v2205
      %2207 = vmatmul.bf16.gmra.mxu0 %v1485
      %v2208 = vpop.f32.mrf.mxu0
      %v2209 = vadd.f32 0.0, %v2208
      %v2210 = vpop.f32.mrf.mxu0
      %v2211 = vadd.f32 0.0, %v2210
      %2212 = vmatmul.bf16.gmra.mxu0 %v2063
      %v2213 = vpop.f32.mrf.mxu0
      %v2214 = vadd.f32 0.0, %v2213
      %v2215 = vpop.f32.mrf.mxu0
      %v2216 = vadd.f32 0.0, %v2215
      %2217 = vdwg.mxu0
      %v2218 = vadd.f32 %v2024, %v2139
      %v2219 = vadd.f32 %v2025, %v2141
      %v2220 = vadd.f32 %v2026, %v2144
      %v2221 = vadd.f32 %v2027, %v2146
      %v2222 = vadd.f32 %v2028, %v2149
      %v2223 = vadd.f32 %v2029, %v2151
      %v2224 = vadd.f32 %v2030, %v2154
      %v2225 = vadd.f32 %v2031, %v2156
      %v2226 = vadd.f32 %v2032, %v2159
      %v2227 = vadd.f32 %v2033, %v2161
      %v2228 = vadd.f32 %v2034, %v2164
      %v2229 = vadd.f32 %v2035, %v2166
      %v2230 = vadd.f32 %v2036, %v2169
      %v2231 = vadd.f32 %v2037, %v2171
      %v2232 = vadd.f32 %v2038, %v2174
      %v2233 = vadd.f32 %v2039, %v2176
      %v2234 = vadd.f32 %v2040, %v2179
      %v2235 = vadd.f32 %v2041, %v2181
      %v2236 = vadd.f32 %v2042, %v2184
      %v2237 = vadd.f32 %v2043, %v2186
      %v2238 = vadd.f32 %v2044, %v2189
      %v2239 = vadd.f32 %v2045, %v2191
      %v2240 = vadd.f32 %v2046, %v2194
      %v2241 = vadd.f32 %v2047, %v2196
      %v2242 = vadd.f32 %v2048, %v2199
      %v2243 = vadd.f32 %v2049, %v2201
      %v2244 = vadd.f32 %v2050, %v2204
      %v2245 = vadd.f32 %v2051, %v2206
      %v2246 = vadd.f32 %v2052, %v2209
      %v2247 = vadd.f32 %v2053, %v2211
      %v2248 = vadd.f32 %v2054, %v2214
      %v2249 = vadd.f32 %v2055, %v2216
      %v2250 = vld [vmem:[%s2] sm:$0x1]
      %v2252 = vperm.slane %v2250, 0
      %v2254 = vadd.f32 %v2218, %v2252
      %v2255 = vadd.f32 %v2219, %v2252
      %v2256 = vadd.f32 %v2220, %v2252
      %v2257 = vadd.f32 %v2221, %v2252
      %v2258 = vadd.f32 %v2222, %v2252
      %v2259 = vadd.f32 %v2223, %v2252
      %v2260 = vadd.f32 %v2224, %v2252
      %v2261 = vadd.f32 %v2225, %v2252
      %v2262 = vadd.f32 %v2226, %v2252
      %v2263 = vadd.f32 %v2227, %v2252
      %v2264 = vadd.f32 %v2228, %v2252
      %v2265 = vadd.f32 %v2229, %v2252
      %v2266 = vadd.f32 %v2230, %v2252
      %v2267 = vadd.f32 %v2231, %v2252
      %v2268 = vadd.f32 %v2232, %v2252
      %v2269 = vadd.f32 %v2233, %v2252
      %v2270 = vadd.f32 %v2234, %v2252
      %v2271 = vadd.f32 %v2235, %v2252
      %v2272 = vadd.f32 %v2236, %v2252
      %v2273 = vadd.f32 %v2237, %v2252
      %v2274 = vadd.f32 %v2238, %v2252
      %v2275 = vadd.f32 %v2239, %v2252
      %v2276 = vadd.f32 %v2240, %v2252
      %v2277 = vadd.f32 %v2241, %v2252
      %v2278 = vadd.f32 %v2242, %v2252
      %v2279 = vadd.f32 %v2243, %v2252
      %v2280 = vadd.f32 %v2244, %v2252
      %v2281 = vadd.f32 %v2245, %v2252
      %v2282 = vadd.f32 %v2246, %v2252
      %v2283 = vadd.f32 %v2247, %v2252
      %v2284 = vadd.f32 %v2248, %v2252
      %v2285 = vadd.f32 %v2249, %v2252
      %v2286 = vmax.f32 %v2254, 0.0
      %v2287 = vmax.f32 %v2255, 0.0
      %v2288 = vmax.f32 %v2256, 0.0
      %v2289 = vmax.f32 %v2257, 0.0
      %v2290 = vmax.f32 %v2258, 0.0
      %v2291 = vmax.f32 %v2259, 0.0
      %v2292 = vmax.f32 %v2260, 0.0
      %v2293 = vmax.f32 %v2261, 0.0
      %v2294 = vmax.f32 %v2262, 0.0
      %v2295 = vmax.f32 %v2263, 0.0
      %v2296 = vmax.f32 %v2264, 0.0
      %v2297 = vmax.f32 %v2265, 0.0
      %v2298 = vmax.f32 %v2266, 0.0
      %v2299 = vmax.f32 %v2267, 0.0
      %v2300 = vmax.f32 %v2268, 0.0
      %v2301 = vmax.f32 %v2269, 0.0
      %v2302 = vmax.f32 %v2270, 0.0
      %v2303 = vmax.f32 %v2271, 0.0
      %v2304 = vmax.f32 %v2272, 0.0
      %v2305 = vmax.f32 %v2273, 0.0
      %v2306 = vmax.f32 %v2274, 0.0
      %v2307 = vmax.f32 %v2275, 0.0
      %v2308 = vmax.f32 %v2276, 0.0
      %v2309 = vmax.f32 %v2277, 0.0
      %v2310 = vmax.f32 %v2278, 0.0
      %v2311 = vmax.f32 %v2279, 0.0
      %v2312 = vmax.f32 %v2280, 0.0
      %v2313 = vmax.f32 %v2281, 0.0
      %v2314 = vmax.f32 %v2282, 0.0
      %v2315 = vmax.f32 %v2283, 0.0
      %v2316 = vmax.f32 %v2284, 0.0
      %v2317 = vmax.f32 %v2285, 0.0
      %2318 = vst [vmem:[#allocation2] sm:$0xff] 0.0
      %2319 = vst [vmem:[#allocation2 + $0x8] sm:$0xff] 0.0
      %2320 = vst [vmem:[#allocation2 + $0x10] sm:$0xff] 0.0
      %2321 = vst [vmem:[#allocation2 + $0x18] sm:$0xff] 0.0
      %2322 = vst [vmem:[#allocation2 + $0x20] sm:$0xff] 0.0
      %2323 = vst [vmem:[#allocation2 + $0x28] sm:$0xff] 0.0
      %2324 = vst [vmem:[#allocation2 + $0x30] sm:$0xff] 0.0
      %2325 = vst [vmem:[#allocation2 + $0x38] sm:$0xff] 0.0
      %2326 = vst [vmem:[#allocation2 + $0x40] sm:$0xff] 0.0
      %2327 = vst [vmem:[#allocation2 + $0x48] sm:$0xff] 0.0
      %2328 = vst [vmem:[#allocation2 + $0x50] sm:$0xff] 0.0
      %2329 = vst [vmem:[#allocation2 + $0x58] sm:$0xff] 0.0
      %2330 = vst [vmem:[#allocation2 + $0x60] sm:$0xff] 0.0
      %2331 = vst [vmem:[#allocation2 + $0x68] sm:$0xff] 0.0
      %2332 = vst [vmem:[#allocation2 + $0x70] sm:$0xff] 0.0
      %2333 = vst [vmem:[#allocation2 + $0x78] sm:$0xff] 0.0
      %2334 = vst [vmem:[#allocation2 + $0x80] sm:$0xff] 0.0
      %2335 = vst [vmem:[#allocation2 + $0x88] sm:$0xff] 0.0
      %2336 = vst [vmem:[#allocation2 + $0x90] sm:$0xff] 0.0
      %2337 = vst [vmem:[#allocation2 + $0x98] sm:$0xff] 0.0
      %2338 = vst [vmem:[#allocation2 + $0xa0] sm:$0xff] 0.0
      %2339 = vst [vmem:[#allocation2 + $0xa8] sm:$0xff] 0.0
      %2340 = vst [vmem:[#allocation2 + $0xb0] sm:$0xff] 0.0
      %2341 = vst [vmem:[#allocation2 + $0xb8] sm:$0xff] 0.0
      %2342 = vst [vmem:[#allocation2 + $0xc0] sm:$0xff] 0.0
      %2343 = vst [vmem:[#allocation2 + $0xc8] sm:$0xff] 0.0
      %2344 = vst [vmem:[#allocation2 + $0xd0] sm:$0xff] 0.0
      %2345 = vst [vmem:[#allocation2 + $0xd8] sm:$0xff] 0.0
      %2346 = vst [vmem:[#allocation2 + $0xe0] sm:$0xff] 0.0
      %2347 = vst [vmem:[#allocation2 + $0xe8] sm:$0xff] 0.0
      %2348 = vst [vmem:[#allocation2 + $0xf0] sm:$0xff] 0.0
      %2349 = vst [vmem:[#allocation2 + $0xf8] sm:$0xff] 0.0
      %2350 = vst [vmem:[#allocation2 + $0x100] sm:$0xff] 0.0
      %2351 = vst [vmem:[#allocation2 + $0x108] sm:$0xff] 0.0
      %2352 = vst [vmem:[#allocation2 + $0x110] sm:$0xff] 0.0
      %2353 = vst [vmem:[#allocation2 + $0x118] sm:$0xff] 0.0
      %2354 = vst [vmem:[#allocation2 + $0x120] sm:$0xff] 0.0
      %2355 = vst [vmem:[#allocation2 + $0x128] sm:$0xff] 0.0
      %2356 = vst [vmem:[#allocation2 + $0x130] sm:$0xff] 0.0
      %2357 = vst [vmem:[#allocation2 + $0x138] sm:$0xff] 0.0
      %2358 = vst [vmem:[#allocation2 + $0x140] sm:$0xff] 0.0
      %2359 = vst [vmem:[#allocation2 + $0x148] sm:$0xff] 0.0
      %2360 = vst [vmem:[#allocation2 + $0x150] sm:$0xff] 0.0
      %2361 = vst [vmem:[#allocation2 + $0x158] sm:$0xff] 0.0
      %2362 = vst [vmem:[#allocation2 + $0x160] sm:$0xff] 0.0
      %2363 = vst [vmem:[#allocation2 + $0x168] sm:$0xff] 0.0
      %2364 = vst [vmem:[#allocation2 + $0x170] sm:$0xff] 0.0
      %2365 = vst [vmem:[#allocation2 + $0x178] sm:$0xff] 0.0
      %2366 = vst [vmem:[#allocation2 + $0x180] sm:$0xff] 0.0
      %2367 = vst [vmem:[#allocation2 + $0x188] sm:$0xff] 0.0
      %2368 = vst [vmem:[#allocation2 + $0x190] sm:$0xff] 0.0
      %2369 = vst [vmem:[#allocation2 + $0x198] sm:$0xff] 0.0
      %2370 = vst [vmem:[#allocation2 + $0x1a0] sm:$0xff] 0.0
      %2371 = vst [vmem:[#allocation2 + $0x1a8] sm:$0xff] 0.0
      %2372 = vst [vmem:[#allocation2 + $0x1b0] sm:$0xff] 0.0
      %2373 = vst [vmem:[#allocation2 + $0x1b8] sm:$0xff] 0.0
      %2374 = vst [vmem:[#allocation2 + $0x1c0] sm:$0xff] 0.0
      %2375 = vst [vmem:[#allocation2 + $0x1c8] sm:$0xff] 0.0
      %2376 = vst [vmem:[#allocation2 + $0x1d0] sm:$0xff] 0.0
      %2377 = vst [vmem:[#allocation2 + $0x1d8] sm:$0xff] 0.0
      %2378 = vst [vmem:[#allocation2 + $0x1e0] sm:$0xff] 0.0
      %2379 = vst [vmem:[#allocation2 + $0x1e8] sm:$0xff] 0.0
      %2380 = vst [vmem:[#allocation2 + $0x1f0] sm:$0xff] 0.0
      %2381 = vst [vmem:[#allocation2 + $0x1f8] sm:$0xff] 0.0
      %2382 = vst [vmem:[#allocation2 + $0x200] sm:$0xff] 0.0
      %2383 = vst [vmem:[#allocation2 + $0x208] sm:$0xff] 0.0
      %2384 = vst [vmem:[#allocation2 + $0x210] sm:$0xff] 0.0
      %2385 = vst [vmem:[#allocation2 + $0x218] sm:$0xff] 0.0
      %2386 = vst [vmem:[#allocation2 + $0x220] sm:$0xff] 0.0
      %2387 = vst [vmem:[#allocation2 + $0x228] sm:$0xff] 0.0
      %2388 = vst [vmem:[#allocation2 + $0x230] sm:$0xff] 0.0
      %2389 = vst [vmem:[#allocation2 + $0x238] sm:$0xff] 0.0
      %s2390 = scalar_lea.vmem [#allocation2], 32
      %2391 = vst [vmem:[%s2390 + $0x8] sm:$0xff] %v2286
      %2392 = vst [vmem:[%s2390 + $0x10] sm:$0xff] %v2287
      %2393 = vst [vmem:[%s2390 + $0x28] sm:$0xff] %v2288
      %2394 = vst [vmem:[%s2390 + $0x30] sm:$0xff] %v2289
      %2395 = vst [vmem:[%s2390 + $0x48] sm:$0xff] %v2290
      %2396 = vst [vmem:[%s2390 + $0x50] sm:$0xff] %v2291
      %2397 = vst [vmem:[%s2390 + $0x68] sm:$0xff] %v2292
      %2398 = vst [vmem:[%s2390 + $0x70] sm:$0xff] %v2293
      %2399 = vst [vmem:[%s2390 + $0x88] sm:$0xff] %v2294
      %2400 = vst [vmem:[%s2390 + $0x90] sm:$0xff] %v2295
      %2401 = vst [vmem:[%s2390 + $0xa8] sm:$0xff] %v2296
      %2402 = vst [vmem:[%s2390 + $0xb0] sm:$0xff] %v2297
      %2403 = vst [vmem:[%s2390 + $0xc8] sm:$0xff] %v2298
      %2404 = vst [vmem:[%s2390 + $0xd0] sm:$0xff] %v2299
      %2405 = vst [vmem:[%s2390 + $0xe8] sm:$0xff] %v2300
      %2406 = vst [vmem:[%s2390 + $0xf0] sm:$0xff] %v2301
      %2407 = vst [vmem:[%s2390 + $0x108] sm:$0xff] %v2302
      %2408 = vst [vmem:[%s2390 + $0x110] sm:$0xff] %v2303
      %2409 = vst [vmem:[%s2390 + $0x128] sm:$0xff] %v2304
      %2410 = vst [vmem:[%s2390 + $0x130] sm:$0xff] %v2305
      %2411 = vst [vmem:[%s2390 + $0x148] sm:$0xff] %v2306
      %2412 = vst [vmem:[%s2390 + $0x150] sm:$0xff] %v2307
      %2413 = vst [vmem:[%s2390 + $0x168] sm:$0xff] %v2308
      %2414 = vst [vmem:[%s2390 + $0x170] sm:$0xff] %v2309
      %2415 = vst [vmem:[%s2390 + $0x188] sm:$0xff] %v2310
      %2416 = vst [vmem:[%s2390 + $0x190] sm:$0xff] %v2311
      %2417 = vst [vmem:[%s2390 + $0x1a8] sm:$0xff] %v2312
      %2418 = vst [vmem:[%s2390 + $0x1b0] sm:$0xff] %v2313
      %2419 = vst [vmem:[%s2390 + $0x1c8] sm:$0xff] %v2314
      %2420 = vst [vmem:[%s2390 + $0x1d0] sm:$0xff] %v2315
      %2421 = vst [vmem:[%s2390 + $0x1e8] sm:$0xff] %v2316
      %2422 = vst [vmem:[%s2390 + $0x1f0] sm:$0xff] %v2317
      %v2423 = vld [vmem:[#allocation2 + $0x7] sm:$0xff]
      %v2424 = vld [vmem:[#allocation2 + $0xf] sm:$0xff]
      %v2425 = vld [vmem:[#allocation2 + $0x27] sm:$0xff]
      %v2426 = vld [vmem:[#allocation2 + $0x2f] sm:$0xff]
      %v2427 = vld [vmem:[#allocation2 + $0x47] sm:$0xff]
      %v2428 = vld [vmem:[#allocation2 + $0x4f] sm:$0xff]
      %v2429 = vld [vmem:[#allocation2 + $0x67] sm:$0xff]
      %v2430 = vld [vmem:[#allocation2 + $0x6f] sm:$0xff]
      %v2431 = vld [vmem:[#allocation2 + $0x87] sm:$0xff]
      %v2432 = vld [vmem:[#allocation2 + $0x8f] sm:$0xff]
      %v2433 = vld [vmem:[#allocation2 + $0xa7] sm:$0xff]
      %v2434 = vld [vmem:[#allocation2 + $0xaf] sm:$0xff]
      %v2435 = vld [vmem:[#allocation2 + $0xc7] sm:$0xff]
      %v2436 = vld [vmem:[#allocation2 + $0xcf] sm:$0xff]
      %v2437 = vld [vmem:[#allocation2 + $0xe7] sm:$0xff]
      %v2438 = vld [vmem:[#allocation2 + $0xef] sm:$0xff]
      %v2439 = vld [vmem:[#allocation2 + $0x107] sm:$0xff]
      %v2440 = vld [vmem:[#allocation2 + $0x10f] sm:$0xff]
      %v2441 = vld [vmem:[#allocation2 + $0x127] sm:$0xff]
      %v2442 = vld [vmem:[#allocation2 + $0x12f] sm:$0xff]
      %v2443 = vld [vmem:[#allocation2 + $0x147] sm:$0xff]
      %v2444 = vld [vmem:[#allocation2 + $0x14f] sm:$0xff]
      %v2445 = vld [vmem:[#allocation2 + $0x167] sm:$0xff]
      %v2446 = vld [vmem:[#allocation2 + $0x16f] sm:$0xff]
      %v2447 = vld [vmem:[#allocation2 + $0x187] sm:$0xff]
      %v2448 = vld [vmem:[#allocation2 + $0x18f] sm:$0xff]
      %v2449 = vld [vmem:[#allocation2 + $0x1a7] sm:$0xff]
      %v2450 = vld [vmem:[#allocation2 + $0x1af] sm:$0xff]
      %v2451 = vld [vmem:[#allocation2 + $0x1c7] sm:$0xff]
      %v2452 = vld [vmem:[#allocation2 + $0x1cf] sm:$0xff]
      %v2453 = vld [vmem:[#allocation2 + $0x1e7] sm:$0xff]
      %v2454 = vld [vmem:[#allocation2 + $0x1ef] sm:$0xff]
      %v2455 = vpack.c.bf16 %v2424, %v2423
      %v2456 = vpack.c.bf16 %v2426, %v2425
      %v2457 = vpack.c.bf16 %v2428, %v2427
      %v2458 = vpack.c.bf16 %v2430, %v2429
      %v2459 = vpack.c.bf16 %v2432, %v2431
      %v2460 = vpack.c.bf16 %v2434, %v2433
      %v2461 = vpack.c.bf16 %v2436, %v2435
      %v2462 = vpack.c.bf16 %v2438, %v2437
      %v2463 = vpack.c.bf16 %v2440, %v2439
      %v2464 = vpack.c.bf16 %v2442, %v2441
      %v2465 = vpack.c.bf16 %v2444, %v2443
      %v2466 = vpack.c.bf16 %v2446, %v2445
      %v2467 = vpack.c.bf16 %v2448, %v2447
      %v2468 = vpack.c.bf16 %v2450, %v2449
      %v2469 = vpack.c.bf16 %v2452, %v2451
      %v2470 = vpack.c.bf16 %v2454, %v2453
      %v2471 = vld [vmem:[%s3] sm:$0xf]
      %v2472 = vld [vmem:[%s3 + $0x4] sm:$0xf]
      %v2473 = vld [vmem:[%s3 + $0x8] sm:$0xf]
      %v2474 = vld [vmem:[%s3 + $0xc] sm:$0xf]
      %v2475 = vld [vmem:[%s3 + $0x10] sm:$0xf]
      %v2476 = vld [vmem:[%s3 + $0x14] sm:$0xf]
      %v2477 = vld [vmem:[%s3 + $0x18] sm:$0xf]
      %v2478 = vld [vmem:[%s3 + $0x1c] sm:$0xf]
      %v2479 = vld [vmem:[%s3 + $0x20] sm:$0xf]
      %v2480 = vld [vmem:[%s3 + $0x24] sm:$0xf]
      %v2481 = vld [vmem:[%s3 + $0x28] sm:$0xf]
      %v2482 = vld [vmem:[%s3 + $0x2c] sm:$0xf]
      %v2483 = vld [vmem:[%s3 + $0x30] sm:$0xf]
      %v2484 = vld [vmem:[%s3 + $0x34] sm:$0xf]
      %v2485 = vld [vmem:[%s3 + $0x38] sm:$0xf]
      %v2486 = vld [vmem:[%s3 + $0x3c] sm:$0xf]
      %v2487 = vld [vmem:[#allocation2 + $0x8] sm:$0xff]
      %v2488 = vld [vmem:[#allocation2 + $0x10] sm:$0xff]
      %v2489 = vld [vmem:[#allocation2 + $0x28] sm:$0xff]
      %v2490 = vld [vmem:[#allocation2 + $0x30] sm:$0xff]
      %v2491 = vld [vmem:[#allocation2 + $0x48] sm:$0xff]
      %v2492 = vld [vmem:[#allocation2 + $0x50] sm:$0xff]
      %v2493 = vld [vmem:[#allocation2 + $0x68] sm:$0xff]
      %v2494 = vld [vmem:[#allocation2 + $0x70] sm:$0xff]
      %v2495 = vld [vmem:[#allocation2 + $0x88] sm:$0xff]
      %v2496 = vld [vmem:[#allocation2 + $0x90] sm:$0xff]
      %v2497 = vld [vmem:[#allocation2 + $0xa8] sm:$0xff]
      %v2498 = vld [vmem:[#allocation2 + $0xb0] sm:$0xff]
      %v2499 = vld [vmem:[#allocation2 + $0xc8] sm:$0xff]
      %v2500 = vld [vmem:[#allocation2 + $0xd0] sm:$0xff]
      %v2501 = vld [vmem:[#allocation2 + $0xe8] sm:$0xff]
      %v2502 = vld [vmem:[#allocation2 + $0xf0] sm:$0xff]
      %v2503 = vld [vmem:[#allocation2 + $0x108] sm:$0xff]
      %v2504 = vld [vmem:[#allocation2 + $0x110] sm:$0xff]
      %v2505 = vld [vmem:[#allocation2 + $0x128] sm:$0xff]
      %v2506 = vld [vmem:[#allocation2 + $0x130] sm:$0xff]
      %v2507 = vld [vmem:[#allocation2 + $0x148] sm:$0xff]
      %v2508 = vld [vmem:[#allocation2 + $0x150] sm:$0xff]
      %v2509 = vld [vmem:[#allocation2 + $0x168] sm:$0xff]
      %v2510 = vld [vmem:[#allocation2 + $0x170] sm:$0xff]
      %v2511 = vld [vmem:[#allocation2 + $0x188] sm:$0xff]
      %v2512 = vld [vmem:[#allocation2 + $0x190] sm:$0xff]
      %v2513 = vld [vmem:[#allocation2 + $0x1a8] sm:$0xff]
      %v2514 = vld [vmem:[#allocation2 + $0x1b0] sm:$0xff]
      %v2515 = vld [vmem:[#allocation2 + $0x1c8] sm:$0xff]
      %v2516 = vld [vmem:[#allocation2 + $0x1d0] sm:$0xff]
      %v2517 = vld [vmem:[#allocation2 + $0x1e8] sm:$0xff]
      %v2518 = vld [vmem:[#allocation2 + $0x1f0] sm:$0xff]
      %v2519 = vpack.c.bf16 %v2488, %v2487
      %v2520 = vpack.c.bf16 %v2490, %v2489
      %v2521 = vpack.c.bf16 %v2492, %v2491
      %v2522 = vpack.c.bf16 %v2494, %v2493
      %v2523 = vpack.c.bf16 %v2496, %v2495
      %v2524 = vpack.c.bf16 %v2498, %v2497
      %v2525 = vpack.c.bf16 %v2500, %v2499
      %v2526 = vpack.c.bf16 %v2502, %v2501
      %v2527 = vpack.c.bf16 %v2504, %v2503
      %v2528 = vpack.c.bf16 %v2506, %v2505
      %v2529 = vpack.c.bf16 %v2508, %v2507
      %v2530 = vpack.c.bf16 %v2510, %v2509
      %v2531 = vpack.c.bf16 %v2512, %v2511
      %v2532 = vpack.c.bf16 %v2514, %v2513
      %v2533 = vpack.c.bf16 %v2516, %v2515
      %v2534 = vpack.c.bf16 %v2518, %v2517
      %s2535 = scalar_lea.vmem %s3, 64
      %v2536 = vld [vmem:[%s2535] sm:$0xf]
      %v2537 = vld [vmem:[%s2535 + $0x4] sm:$0xf]
      %v2538 = vld [vmem:[%s2535 + $0x8] sm:$0xf]
      %v2539 = vld [vmem:[%s2535 + $0xc] sm:$0xf]
      %v2540 = vld [vmem:[%s2535 + $0x10] sm:$0xf]
      %v2541 = vld [vmem:[%s2535 + $0x14] sm:$0xf]
      %v2542 = vld [vmem:[%s2535 + $0x18] sm:$0xf]
      %v2543 = vld [vmem:[%s2535 + $0x1c] sm:$0xf]
      %v2544 = vld [vmem:[%s2535 + $0x20] sm:$0xf]
      %v2545 = vld [vmem:[%s2535 + $0x24] sm:$0xf]
      %v2546 = vld [vmem:[%s2535 + $0x28] sm:$0xf]
      %v2547 = vld [vmem:[%s2535 + $0x2c] sm:$0xf]
      %v2548 = vld [vmem:[%s2535 + $0x30] sm:$0xf]
      %v2549 = vld [vmem:[%s2535 + $0x34] sm:$0xf]
      %v2550 = vld [vmem:[%s2535 + $0x38] sm:$0xf]
      %v2551 = vld [vmem:[%s2535 + $0x3c] sm:$0xf]
      %v2568 = vunpack.c.l.b16 %v2536
      %v2569 = vunpack.c.l.b16 %v2537
      %v2570 = vunpack.c.l.b16 %v2538
      %v2571 = vunpack.c.l.b16 %v2539
      %v2572 = vunpack.c.l.b16 %v2540
      %v2573 = vunpack.c.l.b16 %v2541
      %v2574 = vunpack.c.l.b16 %v2542
      %v2575 = vunpack.c.l.b16 %v2543
      %v2576 = vunpack.c.l.b16 %v2544
      %v2577 = vunpack.c.l.b16 %v2545
      %v2578 = vunpack.c.l.b16 %v2546
      %v2579 = vunpack.c.l.b16 %v2547
      %v2580 = vunpack.c.l.b16 %v2548
      %v2581 = vunpack.c.l.b16 %v2549
      %v2582 = vunpack.c.l.b16 %v2550
      %v2583 = vunpack.c.l.b16 %v2551
      %v2584 = vpack.c.b16 %v2569, %v2568
      %v2585 = vpack.c.b16 %v2571, %v2570
      %v2586 = vpack.c.b16 %v2573, %v2572
      %v2587 = vpack.c.b16 %v2575, %v2574
      %v2588 = vpack.c.b16 %v2577, %v2576
      %v2589 = vpack.c.b16 %v2579, %v2578
      %v2590 = vpack.c.b16 %v2581, %v2580
      %v2591 = vpack.c.b16 %v2583, %v2582
      %2600 = vmatpush.bf16.msra.mxu0 %v2591
      %2601 = vmatpush.bf16.msra.mxu0 %v2590
      %2602 = vmatpush.bf16.msra.mxu0 %v2589
      %2603 = vmatpush.bf16.msra.mxu0 %v2588
      %2604 = vmatpush.bf16.msra.mxu0 %v2587
      %2605 = vmatpush.bf16.msra.mxu0 %v2586
      %2606 = vmatpush.bf16.msra.mxu0 %v2585
      %2607 = vmatpush.bf16.msra.mxu0 %v2584
      %2608 = vmatmul.bf16.gmra.mxu0 %v2519
      %v2609 = vpop.f32.mrf.mxu0
      %v2610 = vadd.f32 0.0, %v2609
      %v2611 = vpop.f32.mrf.mxu0
      %v2612 = vadd.f32 0.0, %v2611
      %2613 = vmatmul.bf16.gmra.mxu0 %v2520
      %v2614 = vpop.f32.mrf.mxu0
      %v2615 = vadd.f32 0.0, %v2614
      %v2616 = vpop.f32.mrf.mxu0
      %v2617 = vadd.f32 0.0, %v2616
      %2618 = vmatmul.bf16.gmra.mxu0 %v2521
      %v2619 = vpop.f32.mrf.mxu0
      %v2620 = vadd.f32 0.0, %v2619
      %v2621 = vpop.f32.mrf.mxu0
      %v2622 = vadd.f32 0.0, %v2621
      %2623 = vmatmul.bf16.gmra.mxu0 %v2522
      %v2624 = vpop.f32.mrf.mxu0
      %v2625 = vadd.f32 0.0, %v2624
      %v2626 = vpop.f32.mrf.mxu0
      %v2627 = vadd.f32 0.0, %v2626
      %2628 = vmatmul.bf16.gmra.mxu0 %v2523
      %v2629 = vpop.f32.mrf.mxu0
      %v2630 = vadd.f32 0.0, %v2629
      %v2631 = vpop.f32.mrf.mxu0
      %v2632 = vadd.f32 0.0, %v2631
      %2633 = vmatmul.bf16.gmra.mxu0 %v2524
      %v2634 = vpop.f32.mrf.mxu0
      %v2635 = vadd.f32 0.0, %v2634
      %v2636 = vpop.f32.mrf.mxu0
      %v2637 = vadd.f32 0.0, %v2636
      %2638 = vmatmul.bf16.gmra.mxu0 %v2525
      %v2639 = vpop.f32.mrf.mxu0
      %v2640 = vadd.f32 0.0, %v2639
      %v2641 = vpop.f32.mrf.mxu0
      %v2642 = vadd.f32 0.0, %v2641
      %2643 = vmatmul.bf16.gmra.mxu0 %v2526
      %v2644 = vpop.f32.mrf.mxu0
      %v2645 = vadd.f32 0.0, %v2644
      %v2646 = vpop.f32.mrf.mxu0
      %v2647 = vadd.f32 0.0, %v2646
      %2648 = vmatmul.bf16.gmra.mxu0 %v2527
      %v2649 = vpop.f32.mrf.mxu0
      %v2650 = vadd.f32 0.0, %v2649
      %v2651 = vpop.f32.mrf.mxu0
      %v2652 = vadd.f32 0.0, %v2651
      %2653 = vmatmul.bf16.gmra.mxu0 %v2528
      %v2654 = vpop.f32.mrf.mxu0
      %v2655 = vadd.f32 0.0, %v2654
      %v2656 = vpop.f32.mrf.mxu0
      %v2657 = vadd.f32 0.0, %v2656
      %2658 = vmatmul.bf16.gmra.mxu0 %v2529
      %v2659 = vpop.f32.mrf.mxu0
      %v2660 = vadd.f32 0.0, %v2659
      %v2661 = vpop.f32.mrf.mxu0
      %v2662 = vadd.f32 0.0, %v2661
      %2663 = vmatmul.bf16.gmra.mxu0 %v2530
      %v2664 = vpop.f32.mrf.mxu0
      %v2665 = vadd.f32 0.0, %v2664
      %v2666 = vpop.f32.mrf.mxu0
      %v2667 = vadd.f32 0.0, %v2666
      %2668 = vmatmul.bf16.gmra.mxu0 %v2531
      %v2669 = vpop.f32.mrf.mxu0
      %v2670 = vadd.f32 0.0, %v2669
      %v2671 = vpop.f32.mrf.mxu0
      %v2672 = vadd.f32 0.0, %v2671
      %2673 = vmatmul.bf16.gmra.mxu0 %v2532
      %v2674 = vpop.f32.mrf.mxu0
      %v2675 = vadd.f32 0.0, %v2674
      %v2676 = vpop.f32.mrf.mxu0
      %v2677 = vadd.f32 0.0, %v2676
      %2678 = vmatmul.bf16.gmra.mxu0 %v2533
      %v2679 = vpop.f32.mrf.mxu0
      %v2680 = vadd.f32 0.0, %v2679
      %v2681 = vpop.f32.mrf.mxu0
      %v2682 = vadd.f32 0.0, %v2681
      %2683 = vmatmul.bf16.gmra.mxu0 %v2534
      %v2684 = vpop.f32.mrf.mxu0
      %v2685 = vadd.f32 0.0, %v2684
      %v2686 = vpop.f32.mrf.mxu0
      %v2687 = vadd.f32 0.0, %v2686
      %2688 = vdwg.mxu0
      %v2705 = vunpack.c.l.b16 %v2471
      %v2706 = vunpack.c.l.b16 %v2472
      %v2707 = vunpack.c.l.b16 %v2473
      %v2708 = vunpack.c.l.b16 %v2474
      %v2709 = vunpack.c.l.b16 %v2475
      %v2710 = vunpack.c.l.b16 %v2476
      %v2711 = vunpack.c.l.b16 %v2477
      %v2712 = vunpack.c.l.b16 %v2478
      %v2713 = vunpack.c.l.b16 %v2479
      %v2714 = vunpack.c.l.b16 %v2480
      %v2715 = vunpack.c.l.b16 %v2481
      %v2716 = vunpack.c.l.b16 %v2482
      %v2717 = vunpack.c.l.b16 %v2483
      %v2718 = vunpack.c.l.b16 %v2484
      %v2719 = vunpack.c.l.b16 %v2485
      %v2720 = vunpack.c.l.b16 %v2486
      %v2721 = vpack.c.b16 %v2706, %v2705
      %v2722 = vpack.c.b16 %v2708, %v2707
      %v2723 = vpack.c.b16 %v2710, %v2709
      %v2724 = vpack.c.b16 %v2712, %v2711
      %v2725 = vpack.c.b16 %v2714, %v2713
      %v2726 = vpack.c.b16 %v2716, %v2715
      %v2727 = vpack.c.b16 %v2718, %v2717
      %v2728 = vpack.c.b16 %v2720, %v2719
      %2737 = vmatpush.bf16.msra.mxu0 %v2728
      %2738 = vmatpush.bf16.msra.mxu0 %v2727
      %2739 = vmatpush.bf16.msra.mxu0 %v2726
      %2740 = vmatpush.bf16.msra.mxu0 %v2725
      %2741 = vmatpush.bf16.msra.mxu0 %v2724
      %2742 = vmatpush.bf16.msra.mxu0 %v2723
      %2743 = vmatpush.bf16.msra.mxu0 %v2722
      %2744 = vmatpush.bf16.msra.mxu0 %v2721
      %2745 = vmatmul.bf16.gmra.mxu0 %v2455
      %v2746 = vpop.f32.mrf.mxu0
      %v2747 = vadd.f32 %v2610, %v2746
      %v2748 = vpop.f32.mrf.mxu0
      %v2749 = vadd.f32 %v2612, %v2748
      %2750 = vmatmul.bf16.gmra.mxu0 %v2456
      %v2751 = vpop.f32.mrf.mxu0
      %v2752 = vadd.f32 %v2615, %v2751
      %v2753 = vpop.f32.mrf.mxu0
      %v2754 = vadd.f32 %v2617, %v2753
      %2755 = vmatmul.bf16.gmra.mxu0 %v2457
      %v2756 = vpop.f32.mrf.mxu0
      %v2757 = vadd.f32 %v2620, %v2756
      %v2758 = vpop.f32.mrf.mxu0
      %v2759 = vadd.f32 %v2622, %v2758
      %2760 = vmatmul.bf16.gmra.mxu0 %v2458
      %v2761 = vpop.f32.mrf.mxu0
      %v2762 = vadd.f32 %v2625, %v2761
      %v2763 = vpop.f32.mrf.mxu0
      %v2764 = vadd.f32 %v2627, %v2763
      %2765 = vmatmul.bf16.gmra.mxu0 %v2459
      %v2766 = vpop.f32.mrf.mxu0
      %v2767 = vadd.f32 %v2630, %v2766
      %v2768 = vpop.f32.mrf.mxu0
      %v2769 = vadd.f32 %v2632, %v2768
      %2770 = vmatmul.bf16.gmra.mxu0 %v2460
      %v2771 = vpop.f32.mrf.mxu0
      %v2772 = vadd.f32 %v2635, %v2771
      %v2773 = vpop.f32.mrf.mxu0
      %v2774 = vadd.f32 %v2637, %v2773
      %2775 = vmatmul.bf16.gmra.mxu0 %v2461
      %v2776 = vpop.f32.mrf.mxu0
      %v2777 = vadd.f32 %v2640, %v2776
      %v2778 = vpop.f32.mrf.mxu0
      %v2779 = vadd.f32 %v2642, %v2778
      %2780 = vmatmul.bf16.gmra.mxu0 %v2462
      %v2781 = vpop.f32.mrf.mxu0
      %v2782 = vadd.f32 %v2645, %v2781
      %v2783 = vpop.f32.mrf.mxu0
      %v2784 = vadd.f32 %v2647, %v2783
      %2785 = vmatmul.bf16.gmra.mxu0 %v2463
      %v2786 = vpop.f32.mrf.mxu0
      %v2787 = vadd.f32 %v2650, %v2786
      %v2788 = vpop.f32.mrf.mxu0
      %v2789 = vadd.f32 %v2652, %v2788
      %2790 = vmatmul.bf16.gmra.mxu0 %v2464
      %v2791 = vpop.f32.mrf.mxu0
      %v2792 = vadd.f32 %v2655, %v2791
      %v2793 = vpop.f32.mrf.mxu0
      %v2794 = vadd.f32 %v2657, %v2793
      %2795 = vmatmul.bf16.gmra.mxu0 %v2465
      %v2796 = vpop.f32.mrf.mxu0
      %v2797 = vadd.f32 %v2660, %v2796
      %v2798 = vpop.f32.mrf.mxu0
      %v2799 = vadd.f32 %v2662, %v2798
      %2800 = vmatmul.bf16.gmra.mxu0 %v2466
      %v2801 = vpop.f32.mrf.mxu0
      %v2802 = vadd.f32 %v2665, %v2801
      %v2803 = vpop.f32.mrf.mxu0
      %v2804 = vadd.f32 %v2667, %v2803
      %2805 = vmatmul.bf16.gmra.mxu0 %v2467
      %v2806 = vpop.f32.mrf.mxu0
      %v2807 = vadd.f32 %v2670, %v2806
      %v2808 = vpop.f32.mrf.mxu0
      %v2809 = vadd.f32 %v2672, %v2808
      %2810 = vmatmul.bf16.gmra.mxu0 %v2468
      %v2811 = vpop.f32.mrf.mxu0
      %v2812 = vadd.f32 %v2675, %v2811
      %v2813 = vpop.f32.mrf.mxu0
      %v2814 = vadd.f32 %v2677, %v2813
      %2815 = vmatmul.bf16.gmra.mxu0 %v2469
      %v2816 = vpop.f32.mrf.mxu0
      %v2817 = vadd.f32 %v2680, %v2816
      %v2818 = vpop.f32.mrf.mxu0
      %v2819 = vadd.f32 %v2682, %v2818
      %2820 = vmatmul.bf16.gmra.mxu0 %v2470
      %v2821 = vpop.f32.mrf.mxu0
      %v2822 = vadd.f32 %v2685, %v2821
      %v2823 = vpop.f32.mrf.mxu0
      %v2824 = vadd.f32 %v2687, %v2823
      %2825 = vdwg.mxu0
      %v2826 = vld [vmem:[#allocation2 + $0x9] sm:$0xff]
      %v2827 = vld [vmem:[#allocation2 + $0x11] sm:$0xff]
      %v2828 = vld [vmem:[#allocation2 + $0x29] sm:$0xff]
      %v2829 = vld [vmem:[#allocation2 + $0x31] sm:$0xff]
      %v2830 = vld [vmem:[#allocation2 + $0x49] sm:$0xff]
      %v2831 = vld [vmem:[#allocation2 + $0x51] sm:$0xff]
      %v2832 = vld [vmem:[#allocation2 + $0x69] sm:$0xff]
      %v2833 = vld [vmem:[#allocation2 + $0x71] sm:$0xff]
      %v2834 = vld [vmem:[#allocation2 + $0x89] sm:$0xff]
      %v2835 = vld [vmem:[#allocation2 + $0x91] sm:$0xff]
      %v2836 = vld [vmem:[#allocation2 + $0xa9] sm:$0xff]
      %v2837 = vld [vmem:[#allocation2 + $0xb1] sm:$0xff]
      %v2838 = vld [vmem:[#allocation2 + $0xc9] sm:$0xff]
      %v2839 = vld [vmem:[#allocation2 + $0xd1] sm:$0xff]
      %v2840 = vld [vmem:[#allocation2 + $0xe9] sm:$0xff]
      %v2841 = vld [vmem:[#allocation2 + $0xf1] sm:$0xff]
      %v2842 = vld [vmem:[#allocation2 + $0x109] sm:$0xff]
      %v2843 = vld [vmem:[#allocation2 + $0x111] sm:$0xff]
      %v2844 = vld [vmem:[#allocation2 + $0x129] sm:$0xff]
      %v2845 = vld [vmem:[#allocation2 + $0x131] sm:$0xff]
      %v2846 = vld [vmem:[#allocation2 + $0x149] sm:$0xff]
      %v2847 = vld [vmem:[#allocation2 + $0x151] sm:$0xff]
      %v2848 = vld [vmem:[#allocation2 + $0x169] sm:$0xff]
      %v2849 = vld [vmem:[#allocation2 + $0x171] sm:$0xff]
      %v2850 = vld [vmem:[#allocation2 + $0x189] sm:$0xff]
      %v2851 = vld [vmem:[#allocation2 + $0x191] sm:$0xff]
      %v2852 = vld [vmem:[#allocation2 + $0x1a9] sm:$0xff]
      %v2853 = vld [vmem:[#allocation2 + $0x1b1] sm:$0xff]
      %v2854 = vld [vmem:[#allocation2 + $0x1c9] sm:$0xff]
      %v2855 = vld [vmem:[#allocation2 + $0x1d1] sm:$0xff]
      %v2856 = vld [vmem:[#allocation2 + $0x1e9] sm:$0xff]
      %v2857 = vld [vmem:[#allocation2 + $0x1f1] sm:$0xff]
      %v2858 = vpack.c.bf16 %v2827, %v2826
      %v2859 = vpack.c.bf16 %v2829, %v2828
      %v2860 = vpack.c.bf16 %v2831, %v2830
      %v2861 = vpack.c.bf16 %v2833, %v2832
      %v2862 = vpack.c.bf16 %v2835, %v2834
      %v2863 = vpack.c.bf16 %v2837, %v2836
      %v2864 = vpack.c.bf16 %v2839, %v2838
      %v2865 = vpack.c.bf16 %v2841, %v2840
      %v2866 = vpack.c.bf16 %v2843, %v2842
      %v2867 = vpack.c.bf16 %v2845, %v2844
      %v2868 = vpack.c.bf16 %v2847, %v2846
      %v2869 = vpack.c.bf16 %v2849, %v2848
      %v2870 = vpack.c.bf16 %v2851, %v2850
      %v2871 = vpack.c.bf16 %v2853, %v2852
      %v2872 = vpack.c.bf16 %v2855, %v2854
      %v2873 = vpack.c.bf16 %v2857, %v2856
      %s2874 = scalar_lea.vmem %s3, 128
      %v2875 = vld [vmem:[%s2874] sm:$0xf]
      %v2876 = vld [vmem:[%s2874 + $0x4] sm:$0xf]
      %v2877 = vld [vmem:[%s2874 + $0x8] sm:$0xf]
      %v2878 = vld [vmem:[%s2874 + $0xc] sm:$0xf]
      %v2879 = vld [vmem:[%s2874 + $0x10] sm:$0xf]
      %v2880 = vld [vmem:[%s2874 + $0x14] sm:$0xf]
      %v2881 = vld [vmem:[%s2874 + $0x18] sm:$0xf]
      %v2882 = vld [vmem:[%s2874 + $0x1c] sm:$0xf]
      %v2883 = vld [vmem:[%s2874 + $0x20] sm:$0xf]
      %v2884 = vld [vmem:[%s2874 + $0x24] sm:$0xf]
      %v2885 = vld [vmem:[%s2874 + $0x28] sm:$0xf]
      %v2886 = vld [vmem:[%s2874 + $0x2c] sm:$0xf]
      %v2887 = vld [vmem:[%s2874 + $0x30] sm:$0xf]
      %v2888 = vld [vmem:[%s2874 + $0x34] sm:$0xf]
      %v2889 = vld [vmem:[%s2874 + $0x38] sm:$0xf]
      %v2890 = vld [vmem:[%s2874 + $0x3c] sm:$0xf]
      %v2907 = vunpack.c.l.b16 %v2875
      %v2908 = vunpack.c.l.b16 %v2876
      %v2909 = vunpack.c.l.b16 %v2877
      %v2910 = vunpack.c.l.b16 %v2878
      %v2911 = vunpack.c.l.b16 %v2879
      %v2912 = vunpack.c.l.b16 %v2880
      %v2913 = vunpack.c.l.b16 %v2881
      %v2914 = vunpack.c.l.b16 %v2882
      %v2915 = vunpack.c.l.b16 %v2883
      %v2916 = vunpack.c.l.b16 %v2884
      %v2917 = vunpack.c.l.b16 %v2885
      %v2918 = vunpack.c.l.b16 %v2886
      %v2919 = vunpack.c.l.b16 %v2887
      %v2920 = vunpack.c.l.b16 %v2888
      %v2921 = vunpack.c.l.b16 %v2889
      %v2922 = vunpack.c.l.b16 %v2890
      %v2923 = vpack.c.b16 %v2908, %v2907
      %v2924 = vpack.c.b16 %v2910, %v2909
      %v2925 = vpack.c.b16 %v2912, %v2911
      %v2926 = vpack.c.b16 %v2914, %v2913
      %v2927 = vpack.c.b16 %v2916, %v2915
      %v2928 = vpack.c.b16 %v2918, %v2917
      %v2929 = vpack.c.b16 %v2920, %v2919
      %v2930 = vpack.c.b16 %v2922, %v2921
      %2939 = vmatpush.bf16.msra.mxu0 %v2930
      %2940 = vmatpush.bf16.msra.mxu0 %v2929
      %2941 = vmatpush.bf16.msra.mxu0 %v2928
      %2942 = vmatpush.bf16.msra.mxu0 %v2927
      %2943 = vmatpush.bf16.msra.mxu0 %v2926
      %2944 = vmatpush.bf16.msra.mxu0 %v2925
      %2945 = vmatpush.bf16.msra.mxu0 %v2924
      %2946 = vmatpush.bf16.msra.mxu0 %v2923
      %2947 = vmatmul.bf16.gmra.mxu0 %v2858
      %v2948 = vpop.f32.mrf.mxu0
      %v2949 = vadd.f32 0.0, %v2948
      %v2950 = vpop.f32.mrf.mxu0
      %v2951 = vadd.f32 0.0, %v2950
      %2952 = vmatmul.bf16.gmra.mxu0 %v2859
      %v2953 = vpop.f32.mrf.mxu0
      %v2954 = vadd.f32 0.0, %v2953
      %v2955 = vpop.f32.mrf.mxu0
      %v2956 = vadd.f32 0.0, %v2955
      %2957 = vmatmul.bf16.gmra.mxu0 %v2860
      %v2958 = vpop.f32.mrf.mxu0
      %v2959 = vadd.f32 0.0, %v2958
      %v2960 = vpop.f32.mrf.mxu0
      %v2961 = vadd.f32 0.0, %v2960
      %2962 = vmatmul.bf16.gmra.mxu0 %v2861
      %v2963 = vpop.f32.mrf.mxu0
      %v2964 = vadd.f32 0.0, %v2963
      %v2965 = vpop.f32.mrf.mxu0
      %v2966 = vadd.f32 0.0, %v2965
      %2967 = vmatmul.bf16.gmra.mxu0 %v2862
      %v2968 = vpop.f32.mrf.mxu0
      %v2969 = vadd.f32 0.0, %v2968
      %v2970 = vpop.f32.mrf.mxu0
      %v2971 = vadd.f32 0.0, %v2970
      %2972 = vmatmul.bf16.gmra.mxu0 %v2863
      %v2973 = vpop.f32.mrf.mxu0
      %v2974 = vadd.f32 0.0, %v2973
      %v2975 = vpop.f32.mrf.mxu0
      %v2976 = vadd.f32 0.0, %v2975
      %2977 = vmatmul.bf16.gmra.mxu0 %v2864
      %v2978 = vpop.f32.mrf.mxu0
      %v2979 = vadd.f32 0.0, %v2978
      %v2980 = vpop.f32.mrf.mxu0
      %v2981 = vadd.f32 0.0, %v2980
      %2982 = vmatmul.bf16.gmra.mxu0 %v2865
      %v2983 = vpop.f32.mrf.mxu0
      %v2984 = vadd.f32 0.0, %v2983
      %v2985 = vpop.f32.mrf.mxu0
      %v2986 = vadd.f32 0.0, %v2985
      %2987 = vmatmul.bf16.gmra.mxu0 %v2866
      %v2988 = vpop.f32.mrf.mxu0
      %v2989 = vadd.f32 0.0, %v2988
      %v2990 = vpop.f32.mrf.mxu0
      %v2991 = vadd.f32 0.0, %v2990
      %2992 = vmatmul.bf16.gmra.mxu0 %v2867
      %v2993 = vpop.f32.mrf.mxu0
      %v2994 = vadd.f32 0.0, %v2993
      %v2995 = vpop.f32.mrf.mxu0
      %v2996 = vadd.f32 0.0, %v2995
      %2997 = vmatmul.bf16.gmra.mxu0 %v2868
      %v2998 = vpop.f32.mrf.mxu0
      %v2999 = vadd.f32 0.0, %v2998
      %v3000 = vpop.f32.mrf.mxu0
      %v3001 = vadd.f32 0.0, %v3000
      %3002 = vmatmul.bf16.gmra.mxu0 %v2869
      %v3003 = vpop.f32.mrf.mxu0
      %v3004 = vadd.f32 0.0, %v3003
      %v3005 = vpop.f32.mrf.mxu0
      %v3006 = vadd.f32 0.0, %v3005
      %3007 = vmatmul.bf16.gmra.mxu0 %v2870
      %v3008 = vpop.f32.mrf.mxu0
      %v3009 = vadd.f32 0.0, %v3008
      %v3010 = vpop.f32.mrf.mxu0
      %v3011 = vadd.f32 0.0, %v3010
      %3012 = vmatmul.bf16.gmra.mxu0 %v2871
      %v3013 = vpop.f32.mrf.mxu0
      %v3014 = vadd.f32 0.0, %v3013
      %v3015 = vpop.f32.mrf.mxu0
      %v3016 = vadd.f32 0.0, %v3015
      %3017 = vmatmul.bf16.gmra.mxu0 %v2872
      %v3018 = vpop.f32.mrf.mxu0
      %v3019 = vadd.f32 0.0, %v3018
      %v3020 = vpop.f32.mrf.mxu0
      %v3021 = vadd.f32 0.0, %v3020
      %3022 = vmatmul.bf16.gmra.mxu0 %v2873
      %v3023 = vpop.f32.mrf.mxu0
      %v3024 = vadd.f32 0.0, %v3023
      %v3025 = vpop.f32.mrf.mxu0
      %v3026 = vadd.f32 0.0, %v3025
      %3027 = vdwg.mxu0
      %v3028 = vadd.f32 %v2747, %v2949
      %v3029 = vadd.f32 %v2749, %v2951
      %v3030 = vadd.f32 %v2752, %v2954
      %v3031 = vadd.f32 %v2754, %v2956
      %v3032 = vadd.f32 %v2757, %v2959
      %v3033 = vadd.f32 %v2759, %v2961
      %v3034 = vadd.f32 %v2762, %v2964
      %v3035 = vadd.f32 %v2764, %v2966
      %v3036 = vadd.f32 %v2767, %v2969
      %v3037 = vadd.f32 %v2769, %v2971
      %v3038 = vadd.f32 %v2772, %v2974
      %v3039 = vadd.f32 %v2774, %v2976
      %v3040 = vadd.f32 %v2777, %v2979
      %v3041 = vadd.f32 %v2779, %v2981
      %v3042 = vadd.f32 %v2782, %v2984
      %v3043 = vadd.f32 %v2784, %v2986
      %v3044 = vadd.f32 %v2787, %v2989
      %v3045 = vadd.f32 %v2789, %v2991
      %v3046 = vadd.f32 %v2792, %v2994
      %v3047 = vadd.f32 %v2794, %v2996
      %v3048 = vadd.f32 %v2797, %v2999
      %v3049 = vadd.f32 %v2799, %v3001
      %v3050 = vadd.f32 %v2802, %v3004
      %v3051 = vadd.f32 %v2804, %v3006
      %v3052 = vadd.f32 %v2807, %v3009
      %v3053 = vadd.f32 %v2809, %v3011
      %v3054 = vadd.f32 %v2812, %v3014
      %v3055 = vadd.f32 %v2814, %v3016
      %v3056 = vadd.f32 %v2817, %v3019
      %v3057 = vadd.f32 %v2819, %v3021
      %v3058 = vadd.f32 %v2822, %v3024
      %v3059 = vadd.f32 %v2824, %v3026
      %v3060 = vld [vmem:[%s2390 + $0x7] sm:$0xff]
      %v3061 = vld [vmem:[%s2390 + $0xf] sm:$0xff]
      %v3062 = vld [vmem:[%s2390 + $0x27] sm:$0xff]
      %v3063 = vld [vmem:[%s2390 + $0x2f] sm:$0xff]
      %v3064 = vld [vmem:[%s2390 + $0x47] sm:$0xff]
      %v3065 = vld [vmem:[%s2390 + $0x4f] sm:$0xff]
      %v3066 = vld [vmem:[%s2390 + $0x67] sm:$0xff]
      %v3067 = vld [vmem:[%s2390 + $0x6f] sm:$0xff]
      %v3068 = vld [vmem:[%s2390 + $0x87] sm:$0xff]
      %v3069 = vld [vmem:[%s2390 + $0x8f] sm:$0xff]
      %v3070 = vld [vmem:[%s2390 + $0xa7] sm:$0xff]
      %v3071 = vld [vmem:[%s2390 + $0xaf] sm:$0xff]
      %v3072 = vld [vmem:[%s2390 + $0xc7] sm:$0xff]
      %v3073 = vld [vmem:[%s2390 + $0xcf] sm:$0xff]
      %v3074 = vld [vmem:[%s2390 + $0xe7] sm:$0xff]
      %v3075 = vld [vmem:[%s2390 + $0xef] sm:$0xff]
      %v3076 = vld [vmem:[%s2390 + $0x107] sm:$0xff]
      %v3077 = vld [vmem:[%s2390 + $0x10f] sm:$0xff]
      %v3078 = vld [vmem:[%s2390 + $0x127] sm:$0xff]
      %v3079 = vld [vmem:[%s2390 + $0x12f] sm:$0xff]
      %v3080 = vld [vmem:[%s2390 + $0x147] sm:$0xff]
      %v3081 = vld [vmem:[%s2390 + $0x14f] sm:$0xff]
      %v3082 = vld [vmem:[%s2390 + $0x167] sm:$0xff]
      %v3083 = vld [vmem:[%s2390 + $0x16f] sm:$0xff]
      %v3084 = vld [vmem:[%s2390 + $0x187] sm:$0xff]
      %v3085 = vld [vmem:[%s2390 + $0x18f] sm:$0xff]
      %v3086 = vld [vmem:[%s2390 + $0x1a7] sm:$0xff]
      %v3087 = vld [vmem:[%s2390 + $0x1af] sm:$0xff]
      %v3088 = vld [vmem:[%s2390 + $0x1c7] sm:$0xff]
      %v3089 = vld [vmem:[%s2390 + $0x1cf] sm:$0xff]
      %v3090 = vld [vmem:[%s2390 + $0x1e7] sm:$0xff]
      %v3091 = vld [vmem:[%s2390 + $0x1ef] sm:$0xff]
      %v3092 = vpack.c.bf16 %v3061, %v3060
      %v3093 = vpack.c.bf16 %v3063, %v3062
      %v3094 = vpack.c.bf16 %v3065, %v3064
      %v3095 = vpack.c.bf16 %v3067, %v3066
      %v3096 = vpack.c.bf16 %v3069, %v3068
      %v3097 = vpack.c.bf16 %v3071, %v3070
      %v3098 = vpack.c.bf16 %v3073, %v3072
      %v3099 = vpack.c.bf16 %v3075, %v3074
      %v3100 = vpack.c.bf16 %v3077, %v3076
      %v3101 = vpack.c.bf16 %v3079, %v3078
      %v3102 = vpack.c.bf16 %v3081, %v3080
      %v3103 = vpack.c.bf16 %v3083, %v3082
      %v3104 = vpack.c.bf16 %v3085, %v3084
      %v3105 = vpack.c.bf16 %v3087, %v3086
      %v3106 = vpack.c.bf16 %v3089, %v3088
      %v3107 = vpack.c.bf16 %v3091, %v3090
      %s3108 = scalar_lea.vmem %s3, 192
      %v3109 = vld [vmem:[%s3108] sm:$0xf]
      %v3110 = vld [vmem:[%s3108 + $0x4] sm:$0xf]
      %v3111 = vld [vmem:[%s3108 + $0x8] sm:$0xf]
      %v3112 = vld [vmem:[%s3108 + $0xc] sm:$0xf]
      %v3113 = vld [vmem:[%s3108 + $0x10] sm:$0xf]
      %v3114 = vld [vmem:[%s3108 + $0x14] sm:$0xf]
      %v3115 = vld [vmem:[%s3108 + $0x18] sm:$0xf]
      %v3116 = vld [vmem:[%s3108 + $0x1c] sm:$0xf]
      %v3117 = vld [vmem:[%s3108 + $0x20] sm:$0xf]
      %v3118 = vld [vmem:[%s3108 + $0x24] sm:$0xf]
      %v3119 = vld [vmem:[%s3108 + $0x28] sm:$0xf]
      %v3120 = vld [vmem:[%s3108 + $0x2c] sm:$0xf]
      %v3121 = vld [vmem:[%s3108 + $0x30] sm:$0xf]
      %v3122 = vld [vmem:[%s3108 + $0x34] sm:$0xf]
      %v3123 = vld [vmem:[%s3108 + $0x38] sm:$0xf]
      %v3124 = vld [vmem:[%s3108 + $0x3c] sm:$0xf]
      %v3141 = vunpack.c.l.b16 %v3109
      %v3142 = vunpack.c.l.b16 %v3110
      %v3143 = vunpack.c.l.b16 %v3111
      %v3144 = vunpack.c.l.b16 %v3112
      %v3145 = vunpack.c.l.b16 %v3113
      %v3146 = vunpack.c.l.b16 %v3114
      %v3147 = vunpack.c.l.b16 %v3115
      %v3148 = vunpack.c.l.b16 %v3116
      %v3149 = vunpack.c.l.b16 %v3117
      %v3150 = vunpack.c.l.b16 %v3118
      %v3151 = vunpack.c.l.b16 %v3119
      %v3152 = vunpack.c.l.b16 %v3120
      %v3153 = vunpack.c.l.b16 %v3121
      %v3154 = vunpack.c.l.b16 %v3122
      %v3155 = vunpack.c.l.b16 %v3123
      %v3156 = vunpack.c.l.b16 %v3124
      %v3157 = vpack.c.b16 %v3142, %v3141
      %v3158 = vpack.c.b16 %v3144, %v3143
      %v3159 = vpack.c.b16 %v3146, %v3145
      %v3160 = vpack.c.b16 %v3148, %v3147
      %v3161 = vpack.c.b16 %v3150, %v3149
      %v3162 = vpack.c.b16 %v3152, %v3151
      %v3163 = vpack.c.b16 %v3154, %v3153
      %v3164 = vpack.c.b16 %v3156, %v3155
      %3173 = vmatpush.bf16.msra.mxu0 %v3164
      %3174 = vmatpush.bf16.msra.mxu0 %v3163
      %3175 = vmatpush.bf16.msra.mxu0 %v3162
      %3176 = vmatpush.bf16.msra.mxu0 %v3161
      %3177 = vmatpush.bf16.msra.mxu0 %v3160
      %3178 = vmatpush.bf16.msra.mxu0 %v3159
      %3179 = vmatpush.bf16.msra.mxu0 %v3158
      %3180 = vmatpush.bf16.msra.mxu0 %v3157
      %3181 = vmatmul.bf16.gmra.mxu0 %v3092
      %v3182 = vpop.f32.mrf.mxu0
      %v3183 = vadd.f32 0.0, %v3182
      %v3184 = vpop.f32.mrf.mxu0
      %v3185 = vadd.f32 0.0, %v3184
      %3186 = vmatmul.bf16.gmra.mxu0 %v3093
      %v3187 = vpop.f32.mrf.mxu0
      %v3188 = vadd.f32 0.0, %v3187
      %v3189 = vpop.f32.mrf.mxu0
      %v3190 = vadd.f32 0.0, %v3189
      %3191 = vmatmul.bf16.gmra.mxu0 %v3094
      %v3192 = vpop.f32.mrf.mxu0
      %v3193 = vadd.f32 0.0, %v3192
      %v3194 = vpop.f32.mrf.mxu0
      %v3195 = vadd.f32 0.0, %v3194
      %3196 = vmatmul.bf16.gmra.mxu0 %v3095
      %v3197 = vpop.f32.mrf.mxu0
      %v3198 = vadd.f32 0.0, %v3197
      %v3199 = vpop.f32.mrf.mxu0
      %v3200 = vadd.f32 0.0, %v3199
      %3201 = vmatmul.bf16.gmra.mxu0 %v3096
      %v3202 = vpop.f32.mrf.mxu0
      %v3203 = vadd.f32 0.0, %v3202
      %v3204 = vpop.f32.mrf.mxu0
      %v3205 = vadd.f32 0.0, %v3204
      %3206 = vmatmul.bf16.gmra.mxu0 %v3097
      %v3207 = vpop.f32.mrf.mxu0
      %v3208 = vadd.f32 0.0, %v3207
      %v3209 = vpop.f32.mrf.mxu0
      %v3210 = vadd.f32 0.0, %v3209
      %3211 = vmatmul.bf16.gmra.mxu0 %v3098
      %v3212 = vpop.f32.mrf.mxu0
      %v3213 = vadd.f32 0.0, %v3212
      %v3214 = vpop.f32.mrf.mxu0
      %v3215 = vadd.f32 0.0, %v3214
      %3216 = vmatmul.bf16.gmra.mxu0 %v3099
      %v3217 = vpop.f32.mrf.mxu0
      %v3218 = vadd.f32 0.0, %v3217
      %v3219 = vpop.f32.mrf.mxu0
      %v3220 = vadd.f32 0.0, %v3219
      %3221 = vmatmul.bf16.gmra.mxu0 %v3100
      %v3222 = vpop.f32.mrf.mxu0
      %v3223 = vadd.f32 0.0, %v3222
      %v3224 = vpop.f32.mrf.mxu0
      %v3225 = vadd.f32 0.0, %v3224
      %3226 = vmatmul.bf16.gmra.mxu0 %v3101
      %v3227 = vpop.f32.mrf.mxu0
      %v3228 = vadd.f32 0.0, %v3227
      %v3229 = vpop.f32.mrf.mxu0
      %v3230 = vadd.f32 0.0, %v3229
      %3231 = vmatmul.bf16.gmra.mxu0 %v3102
      %v3232 = vpop.f32.mrf.mxu0
      %v3233 = vadd.f32 0.0, %v3232
      %v3234 = vpop.f32.mrf.mxu0
      %v3235 = vadd.f32 0.0, %v3234
      %3236 = vmatmul.bf16.gmra.mxu0 %v3103
      %v3237 = vpop.f32.mrf.mxu0
      %v3238 = vadd.f32 0.0, %v3237
      %v3239 = vpop.f32.mrf.mxu0
      %v3240 = vadd.f32 0.0, %v3239
      %3241 = vmatmul.bf16.gmra.mxu0 %v3104
      %v3242 = vpop.f32.mrf.mxu0
      %v3243 = vadd.f32 0.0, %v3242
      %v3244 = vpop.f32.mrf.mxu0
      %v3245 = vadd.f32 0.0, %v3244
      %3246 = vmatmul.bf16.gmra.mxu0 %v3105
      %v3247 = vpop.f32.mrf.mxu0
      %v3248 = vadd.f32 0.0, %v3247
      %v3249 = vpop.f32.mrf.mxu0
      %v3250 = vadd.f32 0.0, %v3249
      %3251 = vmatmul.bf16.gmra.mxu0 %v3106
      %v3252 = vpop.f32.mrf.mxu0
      %v3253 = vadd.f32 0.0, %v3252
      %v3254 = vpop.f32.mrf.mxu0
      %v3255 = vadd.f32 0.0, %v3254
      %3256 = vmatmul.bf16.gmra.mxu0 %v3107
      %v3257 = vpop.f32.mrf.mxu0
      %v3258 = vadd.f32 0.0, %v3257
      %v3259 = vpop.f32.mrf.mxu0
      %v3260 = vadd.f32 0.0, %v3259
      %3261 = vdwg.mxu0
      %v3262 = vadd.f32 %v3028, %v3183
      %v3263 = vadd.f32 %v3029, %v3185
      %v3264 = vadd.f32 %v3030, %v3188
      %v3265 = vadd.f32 %v3031, %v3190
      %v3266 = vadd.f32 %v3032, %v3193
      %v3267 = vadd.f32 %v3033, %v3195
      %v3268 = vadd.f32 %v3034, %v3198
      %v3269 = vadd.f32 %v3035, %v3200
      %v3270 = vadd.f32 %v3036, %v3203
      %v3271 = vadd.f32 %v3037, %v3205
      %v3272 = vadd.f32 %v3038, %v3208
      %v3273 = vadd.f32 %v3039, %v3210
      %v3274 = vadd.f32 %v3040, %v3213
      %v3275 = vadd.f32 %v3041, %v3215
      %v3276 = vadd.f32 %v3042, %v3218
      %v3277 = vadd.f32 %v3043, %v3220
      %v3278 = vadd.f32 %v3044, %v3223
      %v3279 = vadd.f32 %v3045, %v3225
      %v3280 = vadd.f32 %v3046, %v3228
      %v3281 = vadd.f32 %v3047, %v3230
      %v3282 = vadd.f32 %v3048, %v3233
      %v3283 = vadd.f32 %v3049, %v3235
      %v3284 = vadd.f32 %v3050, %v3238
      %v3285 = vadd.f32 %v3051, %v3240
      %v3286 = vadd.f32 %v3052, %v3243
      %v3287 = vadd.f32 %v3053, %v3245
      %v3288 = vadd.f32 %v3054, %v3248
      %v3289 = vadd.f32 %v3055, %v3250
      %v3290 = vadd.f32 %v3056, %v3253
      %v3291 = vadd.f32 %v3057, %v3255
      %v3292 = vadd.f32 %v3058, %v3258
      %v3293 = vadd.f32 %v3059, %v3260
      %v3294 = vld [vmem:[%s2390 + $0x8] sm:$0xff]
      %v3295 = vld [vmem:[%s2390 + $0x10] sm:$0xff]
      %v3296 = vld [vmem:[%s2390 + $0x28] sm:$0xff]
      %v3297 = vld [vmem:[%s2390 + $0x30] sm:$0xff]
      %v3298 = vld [vmem:[%s2390 + $0x48] sm:$0xff]
      %v3299 = vld [vmem:[%s2390 + $0x50] sm:$0xff]
      %v3300 = vld [vmem:[%s2390 + $0x68] sm:$0xff]
      %v3301 = vld [vmem:[%s2390 + $0x70] sm:$0xff]
      %v3302 = vld [vmem:[%s2390 + $0x88] sm:$0xff]
      %v3303 = vld [vmem:[%s2390 + $0x90] sm:$0xff]
      %v3304 = vld [vmem:[%s2390 + $0xa8] sm:$0xff]
      %v3305 = vld [vmem:[%s2390 + $0xb0] sm:$0xff]
      %v3306 = vld [vmem:[%s2390 + $0xc8] sm:$0xff]
      %v3307 = vld [vmem:[%s2390 + $0xd0] sm:$0xff]
      %v3308 = vld [vmem:[%s2390 + $0xe8] sm:$0xff]
      %v3309 = vld [vmem:[%s2390 + $0xf0] sm:$0xff]
      %v3310 = vld [vmem:[%s2390 + $0x108] sm:$0xff]
      %v3311 = vld [vmem:[%s2390 + $0x110] sm:$0xff]
      %v3312 = vld [vmem:[%s2390 + $0x128] sm:$0xff]
      %v3313 = vld [vmem:[%s2390 + $0x130] sm:$0xff]
      %v3314 = vld [vmem:[%s2390 + $0x148] sm:$0xff]
      %v3315 = vld [vmem:[%s2390 + $0x150] sm:$0xff]
      %v3316 = vld [vmem:[%s2390 + $0x168] sm:$0xff]
      %v3317 = vld [vmem:[%s2390 + $0x170] sm:$0xff]
      %v3318 = vld [vmem:[%s2390 + $0x188] sm:$0xff]
      %v3319 = vld [vmem:[%s2390 + $0x190] sm:$0xff]
      %v3320 = vld [vmem:[%s2390 + $0x1a8] sm:$0xff]
      %v3321 = vld [vmem:[%s2390 + $0x1b0] sm:$0xff]
      %v3322 = vld [vmem:[%s2390 + $0x1c8] sm:$0xff]
      %v3323 = vld [vmem:[%s2390 + $0x1d0] sm:$0xff]
      %v3324 = vld [vmem:[%s2390 + $0x1e8] sm:$0xff]
      %v3325 = vld [vmem:[%s2390 + $0x1f0] sm:$0xff]
      %v3326 = vpack.c.bf16 %v3295, %v3294
      %v3327 = vpack.c.bf16 %v3297, %v3296
      %v3328 = vpack.c.bf16 %v3299, %v3298
      %v3329 = vpack.c.bf16 %v3301, %v3300
      %v3330 = vpack.c.bf16 %v3303, %v3302
      %v3331 = vpack.c.bf16 %v3305, %v3304
      %v3332 = vpack.c.bf16 %v3307, %v3306
      %v3333 = vpack.c.bf16 %v3309, %v3308
      %v3334 = vpack.c.bf16 %v3311, %v3310
      %v3335 = vpack.c.bf16 %v3313, %v3312
      %v3336 = vpack.c.bf16 %v3315, %v3314
      %v3337 = vpack.c.bf16 %v3317, %v3316
      %v3338 = vpack.c.bf16 %v3319, %v3318
      %v3339 = vpack.c.bf16 %v3321, %v3320
      %v3340 = vpack.c.bf16 %v3323, %v3322
      %v3341 = vpack.c.bf16 %v3325, %v3324
      %s3342 = scalar_lea.vmem %s3, 256
      %v3343 = vld [vmem:[%s3342] sm:$0xf]
      %v3344 = vld [vmem:[%s3342 + $0x4] sm:$0xf]
      %v3345 = vld [vmem:[%s3342 + $0x8] sm:$0xf]
      %v3346 = vld [vmem:[%s3342 + $0xc] sm:$0xf]
      %v3347 = vld [vmem:[%s3342 + $0x10] sm:$0xf]
      %v3348 = vld [vmem:[%s3342 + $0x14] sm:$0xf]
      %v3349 = vld [vmem:[%s3342 + $0x18] sm:$0xf]
      %v3350 = vld [vmem:[%s3342 + $0x1c] sm:$0xf]
      %v3351 = vld [vmem:[%s3342 + $0x20] sm:$0xf]
      %v3352 = vld [vmem:[%s3342 + $0x24] sm:$0xf]
      %v3353 = vld [vmem:[%s3342 + $0x28] sm:$0xf]
      %v3354 = vld [vmem:[%s3342 + $0x2c] sm:$0xf]
      %v3355 = vld [vmem:[%s3342 + $0x30] sm:$0xf]
      %v3356 = vld [vmem:[%s3342 + $0x34] sm:$0xf]
      %v3357 = vld [vmem:[%s3342 + $0x38] sm:$0xf]
      %v3358 = vld [vmem:[%s3342 + $0x3c] sm:$0xf]
      %v3375 = vunpack.c.l.b16 %v3343
      %v3376 = vunpack.c.l.b16 %v3344
      %v3377 = vunpack.c.l.b16 %v3345
      %v3378 = vunpack.c.l.b16 %v3346
      %v3379 = vunpack.c.l.b16 %v3347
      %v3380 = vunpack.c.l.b16 %v3348
      %v3381 = vunpack.c.l.b16 %v3349
      %v3382 = vunpack.c.l.b16 %v3350
      %v3383 = vunpack.c.l.b16 %v3351
      %v3384 = vunpack.c.l.b16 %v3352
      %v3385 = vunpack.c.l.b16 %v3353
      %v3386 = vunpack.c.l.b16 %v3354
      %v3387 = vunpack.c.l.b16 %v3355
      %v3388 = vunpack.c.l.b16 %v3356
      %v3389 = vunpack.c.l.b16 %v3357
      %v3390 = vunpack.c.l.b16 %v3358
      %v3391 = vpack.c.b16 %v3376, %v3375
      %v3392 = vpack.c.b16 %v3378, %v3377
      %v3393 = vpack.c.b16 %v3380, %v3379
      %v3394 = vpack.c.b16 %v3382, %v3381
      %v3395 = vpack.c.b16 %v3384, %v3383
      %v3396 = vpack.c.b16 %v3386, %v3385
      %v3397 = vpack.c.b16 %v3388, %v3387
      %v3398 = vpack.c.b16 %v3390, %v3389
      %3407 = vmatpush.bf16.msra.mxu0 %v3398
      %3408 = vmatpush.bf16.msra.mxu0 %v3397
      %3409 = vmatpush.bf16.msra.mxu0 %v3396
      %3410 = vmatpush.bf16.msra.mxu0 %v3395
      %3411 = vmatpush.bf16.msra.mxu0 %v3394
      %3412 = vmatpush.bf16.msra.mxu0 %v3393
      %3413 = vmatpush.bf16.msra.mxu0 %v3392
      %3414 = vmatpush.bf16.msra.mxu0 %v3391
      %3415 = vmatmul.bf16.gmra.mxu0 %v3326
      %v3416 = vpop.f32.mrf.mxu0
      %v3417 = vadd.f32 0.0, %v3416
      %v3418 = vpop.f32.mrf.mxu0
      %v3419 = vadd.f32 0.0, %v3418
      %3420 = vmatmul.bf16.gmra.mxu0 %v3327
      %v3421 = vpop.f32.mrf.mxu0
      %v3422 = vadd.f32 0.0, %v3421
      %v3423 = vpop.f32.mrf.mxu0
      %v3424 = vadd.f32 0.0, %v3423
      %3425 = vmatmul.bf16.gmra.mxu0 %v3328
      %v3426 = vpop.f32.mrf.mxu0
      %v3427 = vadd.f32 0.0, %v3426
      %v3428 = vpop.f32.mrf.mxu0
      %v3429 = vadd.f32 0.0, %v3428
      %3430 = vmatmul.bf16.gmra.mxu0 %v3329
      %v3431 = vpop.f32.mrf.mxu0
      %v3432 = vadd.f32 0.0, %v3431
      %v3433 = vpop.f32.mrf.mxu0
      %v3434 = vadd.f32 0.0, %v3433
      %3435 = vmatmul.bf16.gmra.mxu0 %v3330
      %v3436 = vpop.f32.mrf.mxu0
      %v3437 = vadd.f32 0.0, %v3436
      %v3438 = vpop.f32.mrf.mxu0
      %v3439 = vadd.f32 0.0, %v3438
      %3440 = vmatmul.bf16.gmra.mxu0 %v3331
      %v3441 = vpop.f32.mrf.mxu0
      %v3442 = vadd.f32 0.0, %v3441
      %v3443 = vpop.f32.mrf.mxu0
      %v3444 = vadd.f32 0.0, %v3443
      %3445 = vmatmul.bf16.gmra.mxu0 %v3332
      %v3446 = vpop.f32.mrf.mxu0
      %v3447 = vadd.f32 0.0, %v3446
      %v3448 = vpop.f32.mrf.mxu0
      %v3449 = vadd.f32 0.0, %v3448
      %3450 = vmatmul.bf16.gmra.mxu0 %v3333
      %v3451 = vpop.f32.mrf.mxu0
      %v3452 = vadd.f32 0.0, %v3451
      %v3453 = vpop.f32.mrf.mxu0
      %v3454 = vadd.f32 0.0, %v3453
      %3455 = vmatmul.bf16.gmra.mxu0 %v3334
      %v3456 = vpop.f32.mrf.mxu0
      %v3457 = vadd.f32 0.0, %v3456
      %v3458 = vpop.f32.mrf.mxu0
      %v3459 = vadd.f32 0.0, %v3458
      %3460 = vmatmul.bf16.gmra.mxu0 %v3335
      %v3461 = vpop.f32.mrf.mxu0
      %v3462 = vadd.f32 0.0, %v3461
      %v3463 = vpop.f32.mrf.mxu0
      %v3464 = vadd.f32 0.0, %v3463
      %3465 = vmatmul.bf16.gmra.mxu0 %v3336
      %v3466 = vpop.f32.mrf.mxu0
      %v3467 = vadd.f32 0.0, %v3466
      %v3468 = vpop.f32.mrf.mxu0
      %v3469 = vadd.f32 0.0, %v3468
      %3470 = vmatmul.bf16.gmra.mxu0 %v3337
      %v3471 = vpop.f32.mrf.mxu0
      %v3472 = vadd.f32 0.0, %v3471
      %v3473 = vpop.f32.mrf.mxu0
      %v3474 = vadd.f32 0.0, %v3473
      %3475 = vmatmul.bf16.gmra.mxu0 %v3338
      %v3476 = vpop.f32.mrf.mxu0
      %v3477 = vadd.f32 0.0, %v3476
      %v3478 = vpop.f32.mrf.mxu0
      %v3479 = vadd.f32 0.0, %v3478
      %3480 = vmatmul.bf16.gmra.mxu0 %v3339
      %v3481 = vpop.f32.mrf.mxu0
      %v3482 = vadd.f32 0.0, %v3481
      %v3483 = vpop.f32.mrf.mxu0
      %v3484 = vadd.f32 0.0, %v3483
      %3485 = vmatmul.bf16.gmra.mxu0 %v3340
      %v3486 = vpop.f32.mrf.mxu0
      %v3487 = vadd.f32 0.0, %v3486
      %v3488 = vpop.f32.mrf.mxu0
      %v3489 = vadd.f32 0.0, %v3488
      %3490 = vmatmul.bf16.gmra.mxu0 %v3341
      %v3491 = vpop.f32.mrf.mxu0
      %v3492 = vadd.f32 0.0, %v3491
      %v3493 = vpop.f32.mrf.mxu0
      %v3494 = vadd.f32 0.0, %v3493
      %3495 = vdwg.mxu0
      %v3496 = vadd.f32 %v3262, %v3417
      %v3497 = vadd.f32 %v3263, %v3419
      %v3498 = vadd.f32 %v3264, %v3422
      %v3499 = vadd.f32 %v3265, %v3424
      %v3500 = vadd.f32 %v3266, %v3427
      %v3501 = vadd.f32 %v3267, %v3429
      %v3502 = vadd.f32 %v3268, %v3432
      %v3503 = vadd.f32 %v3269, %v3434
      %v3504 = vadd.f32 %v3270, %v3437
      %v3505 = vadd.f32 %v3271, %v3439
      %v3506 = vadd.f32 %v3272, %v3442
      %v3507 = vadd.f32 %v3273, %v3444
      %v3508 = vadd.f32 %v3274, %v3447
      %v3509 = vadd.f32 %v3275, %v3449
      %v3510 = vadd.f32 %v3276, %v3452
      %v3511 = vadd.f32 %v3277, %v3454
      %v3512 = vadd.f32 %v3278, %v3457
      %v3513 = vadd.f32 %v3279, %v3459
      %v3514 = vadd.f32 %v3280, %v3462
      %v3515 = vadd.f32 %v3281, %v3464
      %v3516 = vadd.f32 %v3282, %v3467
      %v3517 = vadd.f32 %v3283, %v3469
      %v3518 = vadd.f32 %v3284, %v3472
      %v3519 = vadd.f32 %v3285, %v3474
      %v3520 = vadd.f32 %v3286, %v3477
      %v3521 = vadd.f32 %v3287, %v3479
      %v3522 = vadd.f32 %v3288, %v3482
      %v3523 = vadd.f32 %v3289, %v3484
      %v3524 = vadd.f32 %v3290, %v3487
      %v3525 = vadd.f32 %v3291, %v3489
      %v3526 = vadd.f32 %v3292, %v3492
      %v3527 = vadd.f32 %v3293, %v3494
      %v3528 = vld [vmem:[%s2390 + $0x9] sm:$0xff]
      %v3529 = vld [vmem:[%s2390 + $0x11] sm:$0xff]
      %v3530 = vld [vmem:[%s2390 + $0x29] sm:$0xff]
      %v3531 = vld [vmem:[%s2390 + $0x31] sm:$0xff]
      %v3532 = vld [vmem:[%s2390 + $0x49] sm:$0xff]
      %v3533 = vld [vmem:[%s2390 + $0x51] sm:$0xff]
      %v3534 = vld [vmem:[%s2390 + $0x69] sm:$0xff]
      %v3535 = vld [vmem:[%s2390 + $0x71] sm:$0xff]
      %v3536 = vld [vmem:[%s2390 + $0x89] sm:$0xff]
      %v3537 = vld [vmem:[%s2390 + $0x91] sm:$0xff]
      %v3538 = vld [vmem:[%s2390 + $0xa9] sm:$0xff]
      %v3539 = vld [vmem:[%s2390 + $0xb1] sm:$0xff]
      %v3540 = vld [vmem:[%s2390 + $0xc9] sm:$0xff]
      %v3541 = vld [vmem:[%s2390 + $0xd1] sm:$0xff]
      %v3542 = vld [vmem:[%s2390 + $0xe9] sm:$0xff]
      %v3543 = vld [vmem:[%s2390 + $0xf1] sm:$0xff]
      %v3544 = vld [vmem:[%s2390 + $0x109] sm:$0xff]
      %v3545 = vld [vmem:[%s2390 + $0x111] sm:$0xff]
      %v3546 = vld [vmem:[%s2390 + $0x129] sm:$0xff]
      %v3547 = vld [vmem:[%s2390 + $0x131] sm:$0xff]
      %v3548 = vld [vmem:[%s2390 + $0x149] sm:$0xff]
      %v3549 = vld [vmem:[%s2390 + $0x151] sm:$0xff]
      %v3550 = vld [vmem:[%s2390 + $0x169] sm:$0xff]
      %v3551 = vld [vmem:[%s2390 + $0x171] sm:$0xff]
      %v3552 = vld [vmem:[%s2390 + $0x189] sm:$0xff]
      %v3553 = vld [vmem:[%s2390 + $0x191] sm:$0xff]
      %v3554 = vld [vmem:[%s2390 + $0x1a9] sm:$0xff]
      %v3555 = vld [vmem:[%s2390 + $0x1b1] sm:$0xff]
      %v3556 = vld [vmem:[%s2390 + $0x1c9] sm:$0xff]
      %v3557 = vld [vmem:[%s2390 + $0x1d1] sm:$0xff]
      %v3558 = vld [vmem:[%s2390 + $0x1e9] sm:$0xff]
      %v3559 = vld [vmem:[%s2390 + $0x1f1] sm:$0xff]
      %v3560 = vpack.c.bf16 %v3529, %v3528
      %v3561 = vpack.c.bf16 %v3531, %v3530
      %v3562 = vpack.c.bf16 %v3533, %v3532
      %v3563 = vpack.c.bf16 %v3535, %v3534
      %v3564 = vpack.c.bf16 %v3537, %v3536
      %v3565 = vpack.c.bf16 %v3539, %v3538
      %v3566 = vpack.c.bf16 %v3541, %v3540
      %v3567 = vpack.c.bf16 %v3543, %v3542
      %v3568 = vpack.c.bf16 %v3545, %v3544
      %v3569 = vpack.c.bf16 %v3547, %v3546
      %v3570 = vpack.c.bf16 %v3549, %v3548
      %v3571 = vpack.c.bf16 %v3551, %v3550
      %v3572 = vpack.c.bf16 %v3553, %v3552
      %v3573 = vpack.c.bf16 %v3555, %v3554
      %v3574 = vpack.c.bf16 %v3557, %v3556
      %v3575 = vpack.c.bf16 %v3559, %v3558
      %s3576 = scalar_lea.vmem %s3, 320
      %v3577 = vld [vmem:[%s3576] sm:$0xf]
      %v3578 = vld [vmem:[%s3576 + $0x4] sm:$0xf]
      %v3579 = vld [vmem:[%s3576 + $0x8] sm:$0xf]
      %v3580 = vld [vmem:[%s3576 + $0xc] sm:$0xf]
      %v3581 = vld [vmem:[%s3576 + $0x10] sm:$0xf]
      %v3582 = vld [vmem:[%s3576 + $0x14] sm:$0xf]
      %v3583 = vld [vmem:[%s3576 + $0x18] sm:$0xf]
      %v3584 = vld [vmem:[%s3576 + $0x1c] sm:$0xf]
      %v3585 = vld [vmem:[%s3576 + $0x20] sm:$0xf]
      %v3586 = vld [vmem:[%s3576 + $0x24] sm:$0xf]
      %v3587 = vld [vmem:[%s3576 + $0x28] sm:$0xf]
      %v3588 = vld [vmem:[%s3576 + $0x2c] sm:$0xf]
      %v3589 = vld [vmem:[%s3576 + $0x30] sm:$0xf]
      %v3590 = vld [vmem:[%s3576 + $0x34] sm:$0xf]
      %v3591 = vld [vmem:[%s3576 + $0x38] sm:$0xf]
      %v3592 = vld [vmem:[%s3576 + $0x3c] sm:$0xf]
      %v3609 = vunpack.c.l.b16 %v3577
      %v3610 = vunpack.c.l.b16 %v3578
      %v3611 = vunpack.c.l.b16 %v3579
      %v3612 = vunpack.c.l.b16 %v3580
      %v3613 = vunpack.c.l.b16 %v3581
      %v3614 = vunpack.c.l.b16 %v3582
      %v3615 = vunpack.c.l.b16 %v3583
      %v3616 = vunpack.c.l.b16 %v3584
      %v3617 = vunpack.c.l.b16 %v3585
      %v3618 = vunpack.c.l.b16 %v3586
      %v3619 = vunpack.c.l.b16 %v3587
      %v3620 = vunpack.c.l.b16 %v3588
      %v3621 = vunpack.c.l.b16 %v3589
      %v3622 = vunpack.c.l.b16 %v3590
      %v3623 = vunpack.c.l.b16 %v3591
      %v3624 = vunpack.c.l.b16 %v3592
      %v3625 = vpack.c.b16 %v3610, %v3609
      %v3626 = vpack.c.b16 %v3612, %v3611
      %v3627 = vpack.c.b16 %v3614, %v3613
      %v3628 = vpack.c.b16 %v3616, %v3615
      %v3629 = vpack.c.b16 %v3618, %v3617
      %v3630 = vpack.c.b16 %v3620, %v3619
      %v3631 = vpack.c.b16 %v3622, %v3621
      %v3632 = vpack.c.b16 %v3624, %v3623
      %3641 = vmatpush.bf16.msra.mxu0 %v3632
      %3642 = vmatpush.bf16.msra.mxu0 %v3631
      %3643 = vmatpush.bf16.msra.mxu0 %v3630
      %3644 = vmatpush.bf16.msra.mxu0 %v3629
      %3645 = vmatpush.bf16.msra.mxu0 %v3628
      %3646 = vmatpush.bf16.msra.mxu0 %v3627
      %3647 = vmatpush.bf16.msra.mxu0 %v3626
      %3648 = vmatpush.bf16.msra.mxu0 %v3625
      %3649 = vmatmul.bf16.gmra.mxu0 %v3560
      %v3650 = vpop.f32.mrf.mxu0
      %v3651 = vadd.f32 0.0, %v3650
      %v3652 = vpop.f32.mrf.mxu0
      %v3653 = vadd.f32 0.0, %v3652
      %3654 = vmatmul.bf16.gmra.mxu0 %v3561
      %v3655 = vpop.f32.mrf.mxu0
      %v3656 = vadd.f32 0.0, %v3655
      %v3657 = vpop.f32.mrf.mxu0
      %v3658 = vadd.f32 0.0, %v3657
      %3659 = vmatmul.bf16.gmra.mxu0 %v3562
      %v3660 = vpop.f32.mrf.mxu0
      %v3661 = vadd.f32 0.0, %v3660
      %v3662 = vpop.f32.mrf.mxu0
      %v3663 = vadd.f32 0.0, %v3662
      %3664 = vmatmul.bf16.gmra.mxu0 %v3563
      %v3665 = vpop.f32.mrf.mxu0
      %v3666 = vadd.f32 0.0, %v3665
      %v3667 = vpop.f32.mrf.mxu0
      %v3668 = vadd.f32 0.0, %v3667
      %3669 = vmatmul.bf16.gmra.mxu0 %v3564
      %v3670 = vpop.f32.mrf.mxu0
      %v3671 = vadd.f32 0.0, %v3670
      %v3672 = vpop.f32.mrf.mxu0
      %v3673 = vadd.f32 0.0, %v3672
      %3674 = vmatmul.bf16.gmra.mxu0 %v3565
      %v3675 = vpop.f32.mrf.mxu0
      %v3676 = vadd.f32 0.0, %v3675
      %v3677 = vpop.f32.mrf.mxu0
      %v3678 = vadd.f32 0.0, %v3677
      %3679 = vmatmul.bf16.gmra.mxu0 %v3566
      %v3680 = vpop.f32.mrf.mxu0
      %v3681 = vadd.f32 0.0, %v3680
      %v3682 = vpop.f32.mrf.mxu0
      %v3683 = vadd.f32 0.0, %v3682
      %3684 = vmatmul.bf16.gmra.mxu0 %v3567
      %v3685 = vpop.f32.mrf.mxu0
      %v3686 = vadd.f32 0.0, %v3685
      %v3687 = vpop.f32.mrf.mxu0
      %v3688 = vadd.f32 0.0, %v3687
      %3689 = vmatmul.bf16.gmra.mxu0 %v3568
      %v3690 = vpop.f32.mrf.mxu0
      %v3691 = vadd.f32 0.0, %v3690
      %v3692 = vpop.f32.mrf.mxu0
      %v3693 = vadd.f32 0.0, %v3692
      %3694 = vmatmul.bf16.gmra.mxu0 %v3569
      %v3695 = vpop.f32.mrf.mxu0
      %v3696 = vadd.f32 0.0, %v3695
      %v3697 = vpop.f32.mrf.mxu0
      %v3698 = vadd.f32 0.0, %v3697
      %3699 = vmatmul.bf16.gmra.mxu0 %v3570
      %v3700 = vpop.f32.mrf.mxu0
      %v3701 = vadd.f32 0.0, %v3700
      %v3702 = vpop.f32.mrf.mxu0
      %v3703 = vadd.f32 0.0, %v3702
      %3704 = vmatmul.bf16.gmra.mxu0 %v3571
      %v3705 = vpop.f32.mrf.mxu0
      %v3706 = vadd.f32 0.0, %v3705
      %v3707 = vpop.f32.mrf.mxu0
      %v3708 = vadd.f32 0.0, %v3707
      %3709 = vmatmul.bf16.gmra.mxu0 %v3572
      %v3710 = vpop.f32.mrf.mxu0
      %v3711 = vadd.f32 0.0, %v3710
      %v3712 = vpop.f32.mrf.mxu0
      %v3713 = vadd.f32 0.0, %v3712
      %3714 = vmatmul.bf16.gmra.mxu0 %v3573
      %v3715 = vpop.f32.mrf.mxu0
      %v3716 = vadd.f32 0.0, %v3715
      %v3717 = vpop.f32.mrf.mxu0
      %v3718 = vadd.f32 0.0, %v3717
      %3719 = vmatmul.bf16.gmra.mxu0 %v3574
      %v3720 = vpop.f32.mrf.mxu0
      %v3721 = vadd.f32 0.0, %v3720
      %v3722 = vpop.f32.mrf.mxu0
      %v3723 = vadd.f32 0.0, %v3722
      %3724 = vmatmul.bf16.gmra.mxu0 %v3575
      %v3725 = vpop.f32.mrf.mxu0
      %v3726 = vadd.f32 0.0, %v3725
      %v3727 = vpop.f32.mrf.mxu0
      %v3728 = vadd.f32 0.0, %v3727
      %3729 = vdwg.mxu0
      %v3730 = vadd.f32 %v3496, %v3651
      %v3731 = vadd.f32 %v3497, %v3653
      %v3732 = vadd.f32 %v3498, %v3656
      %v3733 = vadd.f32 %v3499, %v3658
      %v3734 = vadd.f32 %v3500, %v3661
      %v3735 = vadd.f32 %v3501, %v3663
      %v3736 = vadd.f32 %v3502, %v3666
      %v3737 = vadd.f32 %v3503, %v3668
      %v3738 = vadd.f32 %v3504, %v3671
      %v3739 = vadd.f32 %v3505, %v3673
      %v3740 = vadd.f32 %v3506, %v3676
      %v3741 = vadd.f32 %v3507, %v3678
      %v3742 = vadd.f32 %v3508, %v3681
      %v3743 = vadd.f32 %v3509, %v3683
      %v3744 = vadd.f32 %v3510, %v3686
      %v3745 = vadd.f32 %v3511, %v3688
      %v3746 = vadd.f32 %v3512, %v3691
      %v3747 = vadd.f32 %v3513, %v3693
      %v3748 = vadd.f32 %v3514, %v3696
      %v3749 = vadd.f32 %v3515, %v3698
      %v3750 = vadd.f32 %v3516, %v3701
      %v3751 = vadd.f32 %v3517, %v3703
      %v3752 = vadd.f32 %v3518, %v3706
      %v3753 = vadd.f32 %v3519, %v3708
      %v3754 = vadd.f32 %v3520, %v3711
      %v3755 = vadd.f32 %v3521, %v3713
      %v3756 = vadd.f32 %v3522, %v3716
      %v3757 = vadd.f32 %v3523, %v3718
      %v3758 = vadd.f32 %v3524, %v3721
      %v3759 = vadd.f32 %v3525, %v3723
      %v3760 = vadd.f32 %v3526, %v3726
      %v3761 = vadd.f32 %v3527, %v3728
      %s3762 = scalar_lea.vmem [#allocation2], 64
      %v3763 = vld [vmem:[%s3762 + $0x7] sm:$0xff]
      %v3764 = vld [vmem:[%s3762 + $0xf] sm:$0xff]
      %v3765 = vld [vmem:[%s3762 + $0x27] sm:$0xff]
      %v3766 = vld [vmem:[%s3762 + $0x2f] sm:$0xff]
      %v3767 = vld [vmem:[%s3762 + $0x47] sm:$0xff]
      %v3768 = vld [vmem:[%s3762 + $0x4f] sm:$0xff]
      %v3769 = vld [vmem:[%s3762 + $0x67] sm:$0xff]
      %v3770 = vld [vmem:[%s3762 + $0x6f] sm:$0xff]
      %v3771 = vld [vmem:[%s3762 + $0x87] sm:$0xff]
      %v3772 = vld [vmem:[%s3762 + $0x8f] sm:$0xff]
      %v3773 = vld [vmem:[%s3762 + $0xa7] sm:$0xff]
      %v3774 = vld [vmem:[%s3762 + $0xaf] sm:$0xff]
      %v3775 = vld [vmem:[%s3762 + $0xc7] sm:$0xff]
      %v3776 = vld [vmem:[%s3762 + $0xcf] sm:$0xff]
      %v3777 = vld [vmem:[%s3762 + $0xe7] sm:$0xff]
      %v3778 = vld [vmem:[%s3762 + $0xef] sm:$0xff]
      %v3779 = vld [vmem:[%s3762 + $0x107] sm:$0xff]
      %v3780 = vld [vmem:[%s3762 + $0x10f] sm:$0xff]
      %v3781 = vld [vmem:[%s3762 + $0x127] sm:$0xff]
      %v3782 = vld [vmem:[%s3762 + $0x12f] sm:$0xff]
      %v3783 = vld [vmem:[%s3762 + $0x147] sm:$0xff]
      %v3784 = vld [vmem:[%s3762 + $0x14f] sm:$0xff]
      %v3785 = vld [vmem:[%s3762 + $0x167] sm:$0xff]
      %v3786 = vld [vmem:[%s3762 + $0x16f] sm:$0xff]
      %v3787 = vld [vmem:[%s3762 + $0x187] sm:$0xff]
      %v3788 = vld [vmem:[%s3762 + $0x18f] sm:$0xff]
      %v3789 = vld [vmem:[%s3762 + $0x1a7] sm:$0xff]
      %v3790 = vld [vmem:[%s3762 + $0x1af] sm:$0xff]
      %v3791 = vld [vmem:[%s3762 + $0x1c7] sm:$0xff]
      %v3792 = vld [vmem:[%s3762 + $0x1cf] sm:$0xff]
      %v3793 = vld [vmem:[%s3762 + $0x1e7] sm:$0xff]
      %v3794 = vld [vmem:[%s3762 + $0x1ef] sm:$0xff]
      %v3795 = vpack.c.bf16 %v3764, %v3763
      %v3796 = vpack.c.bf16 %v3766, %v3765
      %v3797 = vpack.c.bf16 %v3768, %v3767
      %v3798 = vpack.c.bf16 %v3770, %v3769
      %v3799 = vpack.c.bf16 %v3772, %v3771
      %v3800 = vpack.c.bf16 %v3774, %v3773
      %v3801 = vpack.c.bf16 %v3776, %v3775
      %v3802 = vpack.c.bf16 %v3778, %v3777
      %v3803 = vpack.c.bf16 %v3780, %v3779
      %v3804 = vpack.c.bf16 %v3782, %v3781
      %v3805 = vpack.c.bf16 %v3784, %v3783
      %v3806 = vpack.c.bf16 %v3786, %v3785
      %v3807 = vpack.c.bf16 %v3788, %v3787
      %v3808 = vpack.c.bf16 %v3790, %v3789
      %v3809 = vpack.c.bf16 %v3792, %v3791
      %v3810 = vpack.c.bf16 %v3794, %v3793
      %s3811 = scalar_lea.vmem %s3, 384
      %v3812 = vld [vmem:[%s3811] sm:$0xf]
      %v3813 = vld [vmem:[%s3811 + $0x4] sm:$0xf]
      %v3814 = vld [vmem:[%s3811 + $0x8] sm:$0xf]
      %v3815 = vld [vmem:[%s3811 + $0xc] sm:$0xf]
      %v3816 = vld [vmem:[%s3811 + $0x10] sm:$0xf]
      %v3817 = vld [vmem:[%s3811 + $0x14] sm:$0xf]
      %v3818 = vld [vmem:[%s3811 + $0x18] sm:$0xf]
      %v3819 = vld [vmem:[%s3811 + $0x1c] sm:$0xf]
      %v3820 = vld [vmem:[%s3811 + $0x20] sm:$0xf]
      %v3821 = vld [vmem:[%s3811 + $0x24] sm:$0xf]
      %v3822 = vld [vmem:[%s3811 + $0x28] sm:$0xf]
      %v3823 = vld [vmem:[%s3811 + $0x2c] sm:$0xf]
      %v3824 = vld [vmem:[%s3811 + $0x30] sm:$0xf]
      %v3825 = vld [vmem:[%s3811 + $0x34] sm:$0xf]
      %v3826 = vld [vmem:[%s3811 + $0x38] sm:$0xf]
      %v3827 = vld [vmem:[%s3811 + $0x3c] sm:$0xf]
      %v3844 = vunpack.c.l.b16 %v3812
      %v3845 = vunpack.c.l.b16 %v3813
      %v3846 = vunpack.c.l.b16 %v3814
      %v3847 = vunpack.c.l.b16 %v3815
      %v3848 = vunpack.c.l.b16 %v3816
      %v3849 = vunpack.c.l.b16 %v3817
      %v3850 = vunpack.c.l.b16 %v3818
      %v3851 = vunpack.c.l.b16 %v3819
      %v3852 = vunpack.c.l.b16 %v3820
      %v3853 = vunpack.c.l.b16 %v3821
      %v3854 = vunpack.c.l.b16 %v3822
      %v3855 = vunpack.c.l.b16 %v3823
      %v3856 = vunpack.c.l.b16 %v3824
      %v3857 = vunpack.c.l.b16 %v3825
      %v3858 = vunpack.c.l.b16 %v3826
      %v3859 = vunpack.c.l.b16 %v3827
      %v3860 = vpack.c.b16 %v3845, %v3844
      %v3861 = vpack.c.b16 %v3847, %v3846
      %v3862 = vpack.c.b16 %v3849, %v3848
      %v3863 = vpack.c.b16 %v3851, %v3850
      %v3864 = vpack.c.b16 %v3853, %v3852
      %v3865 = vpack.c.b16 %v3855, %v3854
      %v3866 = vpack.c.b16 %v3857, %v3856
      %v3867 = vpack.c.b16 %v3859, %v3858
      %3876 = vmatpush.bf16.msra.mxu0 %v3867
      %3877 = vmatpush.bf16.msra.mxu0 %v3866
      %3878 = vmatpush.bf16.msra.mxu0 %v3865
      %3879 = vmatpush.bf16.msra.mxu0 %v3864
      %3880 = vmatpush.bf16.msra.mxu0 %v3863
      %3881 = vmatpush.bf16.msra.mxu0 %v3862
      %3882 = vmatpush.bf16.msra.mxu0 %v3861
      %3883 = vmatpush.bf16.msra.mxu0 %v3860
      %3884 = vmatmul.bf16.gmra.mxu0 %v3795
      %v3885 = vpop.f32.mrf.mxu0
      %v3886 = vadd.f32 0.0, %v3885
      %v3887 = vpop.f32.mrf.mxu0
      %v3888 = vadd.f32 0.0, %v3887
      %3889 = vmatmul.bf16.gmra.mxu0 %v3796
      %v3890 = vpop.f32.mrf.mxu0
      %v3891 = vadd.f32 0.0, %v3890
      %v3892 = vpop.f32.mrf.mxu0
      %v3893 = vadd.f32 0.0, %v3892
      %3894 = vmatmul.bf16.gmra.mxu0 %v3797
      %v3895 = vpop.f32.mrf.mxu0
      %v3896 = vadd.f32 0.0, %v3895
      %v3897 = vpop.f32.mrf.mxu0
      %v3898 = vadd.f32 0.0, %v3897
      %3899 = vmatmul.bf16.gmra.mxu0 %v3798
      %v3900 = vpop.f32.mrf.mxu0
      %v3901 = vadd.f32 0.0, %v3900
      %v3902 = vpop.f32.mrf.mxu0
      %v3903 = vadd.f32 0.0, %v3902
      %3904 = vmatmul.bf16.gmra.mxu0 %v3799
      %v3905 = vpop.f32.mrf.mxu0
      %v3906 = vadd.f32 0.0, %v3905
      %v3907 = vpop.f32.mrf.mxu0
      %v3908 = vadd.f32 0.0, %v3907
      %3909 = vmatmul.bf16.gmra.mxu0 %v3800
      %v3910 = vpop.f32.mrf.mxu0
      %v3911 = vadd.f32 0.0, %v3910
      %v3912 = vpop.f32.mrf.mxu0
      %v3913 = vadd.f32 0.0, %v3912
      %3914 = vmatmul.bf16.gmra.mxu0 %v3801
      %v3915 = vpop.f32.mrf.mxu0
      %v3916 = vadd.f32 0.0, %v3915
      %v3917 = vpop.f32.mrf.mxu0
      %v3918 = vadd.f32 0.0, %v3917
      %3919 = vmatmul.bf16.gmra.mxu0 %v3802
      %v3920 = vpop.f32.mrf.mxu0
      %v3921 = vadd.f32 0.0, %v3920
      %v3922 = vpop.f32.mrf.mxu0
      %v3923 = vadd.f32 0.0, %v3922
      %3924 = vmatmul.bf16.gmra.mxu0 %v3803
      %v3925 = vpop.f32.mrf.mxu0
      %v3926 = vadd.f32 0.0, %v3925
      %v3927 = vpop.f32.mrf.mxu0
      %v3928 = vadd.f32 0.0, %v3927
      %3929 = vmatmul.bf16.gmra.mxu0 %v3804
      %v3930 = vpop.f32.mrf.mxu0
      %v3931 = vadd.f32 0.0, %v3930
      %v3932 = vpop.f32.mrf.mxu0
      %v3933 = vadd.f32 0.0, %v3932
      %3934 = vmatmul.bf16.gmra.mxu0 %v3805
      %v3935 = vpop.f32.mrf.mxu0
      %v3936 = vadd.f32 0.0, %v3935
      %v3937 = vpop.f32.mrf.mxu0
      %v3938 = vadd.f32 0.0, %v3937
      %3939 = vmatmul.bf16.gmra.mxu0 %v3806
      %v3940 = vpop.f32.mrf.mxu0
      %v3941 = vadd.f32 0.0, %v3940
      %v3942 = vpop.f32.mrf.mxu0
      %v3943 = vadd.f32 0.0, %v3942
      %3944 = vmatmul.bf16.gmra.mxu0 %v3807
      %v3945 = vpop.f32.mrf.mxu0
      %v3946 = vadd.f32 0.0, %v3945
      %v3947 = vpop.f32.mrf.mxu0
      %v3948 = vadd.f32 0.0, %v3947
      %3949 = vmatmul.bf16.gmra.mxu0 %v3808
      %v3950 = vpop.f32.mrf.mxu0
      %v3951 = vadd.f32 0.0, %v3950
      %v3952 = vpop.f32.mrf.mxu0
      %v3953 = vadd.f32 0.0, %v3952
      %3954 = vmatmul.bf16.gmra.mxu0 %v3809
      %v3955 = vpop.f32.mrf.mxu0
      %v3956 = vadd.f32 0.0, %v3955
      %v3957 = vpop.f32.mrf.mxu0
      %v3958 = vadd.f32 0.0, %v3957
      %3959 = vmatmul.bf16.gmra.mxu0 %v3810
      %v3960 = vpop.f32.mrf.mxu0
      %v3961 = vadd.f32 0.0, %v3960
      %v3962 = vpop.f32.mrf.mxu0
      %v3963 = vadd.f32 0.0, %v3962
      %3964 = vdwg.mxu0
      %v3965 = vadd.f32 %v3730, %v3886
      %v3966 = vadd.f32 %v3731, %v3888
      %v3967 = vadd.f32 %v3732, %v3891
      %v3968 = vadd.f32 %v3733, %v3893
      %v3969 = vadd.f32 %v3734, %v3896
      %v3970 = vadd.f32 %v3735, %v3898
      %v3971 = vadd.f32 %v3736, %v3901
      %v3972 = vadd.f32 %v3737, %v3903
      %v3973 = vadd.f32 %v3738, %v3906
      %v3974 = vadd.f32 %v3739, %v3908
      %v3975 = vadd.f32 %v3740, %v3911
      %v3976 = vadd.f32 %v3741, %v3913
      %v3977 = vadd.f32 %v3742, %v3916
      %v3978 = vadd.f32 %v3743, %v3918
      %v3979 = vadd.f32 %v3744, %v3921
      %v3980 = vadd.f32 %v3745, %v3923
      %v3981 = vadd.f32 %v3746, %v3926
      %v3982 = vadd.f32 %v3747, %v3928
      %v3983 = vadd.f32 %v3748, %v3931
      %v3984 = vadd.f32 %v3749, %v3933
      %v3985 = vadd.f32 %v3750, %v3936
      %v3986 = vadd.f32 %v3751, %v3938
      %v3987 = vadd.f32 %v3752, %v3941
      %v3988 = vadd.f32 %v3753, %v3943
      %v3989 = vadd.f32 %v3754, %v3946
      %v3990 = vadd.f32 %v3755, %v3948
      %v3991 = vadd.f32 %v3756, %v3951
      %v3992 = vadd.f32 %v3757, %v3953
      %v3993 = vadd.f32 %v3758, %v3956
      %v3994 = vadd.f32 %v3759, %v3958
      %v3995 = vadd.f32 %v3760, %v3961
      %v3996 = vadd.f32 %v3761, %v3963
      %v3997 = vld [vmem:[%s3762 + $0x8] sm:$0xff]
      %v3998 = vld [vmem:[%s3762 + $0x10] sm:$0xff]
      %v3999 = vld [vmem:[%s3762 + $0x28] sm:$0xff]
      %v4000 = vld [vmem:[%s3762 + $0x30] sm:$0xff]
      %v4001 = vld [vmem:[%s3762 + $0x48] sm:$0xff]
      %v4002 = vld [vmem:[%s3762 + $0x50] sm:$0xff]
      %v4003 = vld [vmem:[%s3762 + $0x68] sm:$0xff]
      %v4004 = vld [vmem:[%s3762 + $0x70] sm:$0xff]
      %v4005 = vld [vmem:[%s3762 + $0x88] sm:$0xff]
      %v4006 = vld [vmem:[%s3762 + $0x90] sm:$0xff]
      %v4007 = vld [vmem:[%s3762 + $0xa8] sm:$0xff]
      %v4008 = vld [vmem:[%s3762 + $0xb0] sm:$0xff]
      %v4009 = vld [vmem:[%s3762 + $0xc8] sm:$0xff]
      %v4010 = vld [vmem:[%s3762 + $0xd0] sm:$0xff]
      %v4011 = vld [vmem:[%s3762 + $0xe8] sm:$0xff]
      %v4012 = vld [vmem:[%s3762 + $0xf0] sm:$0xff]
      %v4013 = vld [vmem:[%s3762 + $0x108] sm:$0xff]
      %v4014 = vld [vmem:[%s3762 + $0x110] sm:$0xff]
      %v4015 = vld [vmem:[%s3762 + $0x128] sm:$0xff]
      %v4016 = vld [vmem:[%s3762 + $0x130] sm:$0xff]
      %v4017 = vld [vmem:[%s3762 + $0x148] sm:$0xff]
      %v4018 = vld [vmem:[%s3762 + $0x150] sm:$0xff]
      %v4019 = vld [vmem:[%s3762 + $0x168] sm:$0xff]
      %v4020 = vld [vmem:[%s3762 + $0x170] sm:$0xff]
      %v4021 = vld [vmem:[%s3762 + $0x188] sm:$0xff]
      %v4022 = vld [vmem:[%s3762 + $0x190] sm:$0xff]
      %v4023 = vld [vmem:[%s3762 + $0x1a8] sm:$0xff]
      %v4024 = vld [vmem:[%s3762 + $0x1b0] sm:$0xff]
      %v4025 = vld [vmem:[%s3762 + $0x1c8] sm:$0xff]
      %v4026 = vld [vmem:[%s3762 + $0x1d0] sm:$0xff]
      %v4027 = vld [vmem:[%s3762 + $0x1e8] sm:$0xff]
      %v4028 = vld [vmem:[%s3762 + $0x1f0] sm:$0xff]
      %v4029 = vpack.c.bf16 %v3998, %v3997
      %v4030 = vpack.c.bf16 %v4000, %v3999
      %v4031 = vpack.c.bf16 %v4002, %v4001
      %v4032 = vpack.c.bf16 %v4004, %v4003
      %v4033 = vpack.c.bf16 %v4006, %v4005
      %v4034 = vpack.c.bf16 %v4008, %v4007
      %v4035 = vpack.c.bf16 %v4010, %v4009
      %v4036 = vpack.c.bf16 %v4012, %v4011
      %v4037 = vpack.c.bf16 %v4014, %v4013
      %v4038 = vpack.c.bf16 %v4016, %v4015
      %v4039 = vpack.c.bf16 %v4018, %v4017
      %v4040 = vpack.c.bf16 %v4020, %v4019
      %v4041 = vpack.c.bf16 %v4022, %v4021
      %v4042 = vpack.c.bf16 %v4024, %v4023
      %v4043 = vpack.c.bf16 %v4026, %v4025
      %v4044 = vpack.c.bf16 %v4028, %v4027
      %s4045 = scalar_lea.vmem %s3, 448
      %v4046 = vld [vmem:[%s4045] sm:$0xf]
      %v4047 = vld [vmem:[%s4045 + $0x4] sm:$0xf]
      %v4048 = vld [vmem:[%s4045 + $0x8] sm:$0xf]
      %v4049 = vld [vmem:[%s4045 + $0xc] sm:$0xf]
      %v4050 = vld [vmem:[%s4045 + $0x10] sm:$0xf]
      %v4051 = vld [vmem:[%s4045 + $0x14] sm:$0xf]
      %v4052 = vld [vmem:[%s4045 + $0x18] sm:$0xf]
      %v4053 = vld [vmem:[%s4045 + $0x1c] sm:$0xf]
      %v4054 = vld [vmem:[%s4045 + $0x20] sm:$0xf]
      %v4055 = vld [vmem:[%s4045 + $0x24] sm:$0xf]
      %v4056 = vld [vmem:[%s4045 + $0x28] sm:$0xf]
      %v4057 = vld [vmem:[%s4045 + $0x2c] sm:$0xf]
      %v4058 = vld [vmem:[%s4045 + $0x30] sm:$0xf]
      %v4059 = vld [vmem:[%s4045 + $0x34] sm:$0xf]
      %v4060 = vld [vmem:[%s4045 + $0x38] sm:$0xf]
      %v4061 = vld [vmem:[%s4045 + $0x3c] sm:$0xf]
      %v4078 = vunpack.c.l.b16 %v4046
      %v4079 = vunpack.c.l.b16 %v4047
      %v4080 = vunpack.c.l.b16 %v4048
      %v4081 = vunpack.c.l.b16 %v4049
      %v4082 = vunpack.c.l.b16 %v4050
      %v4083 = vunpack.c.l.b16 %v4051
      %v4084 = vunpack.c.l.b16 %v4052
      %v4085 = vunpack.c.l.b16 %v4053
      %v4086 = vunpack.c.l.b16 %v4054
      %v4087 = vunpack.c.l.b16 %v4055
      %v4088 = vunpack.c.l.b16 %v4056
      %v4089 = vunpack.c.l.b16 %v4057
      %v4090 = vunpack.c.l.b16 %v4058
      %v4091 = vunpack.c.l.b16 %v4059
      %v4092 = vunpack.c.l.b16 %v4060
      %v4093 = vunpack.c.l.b16 %v4061
      %v4094 = vpack.c.b16 %v4079, %v4078
      %v4095 = vpack.c.b16 %v4081, %v4080
      %v4096 = vpack.c.b16 %v4083, %v4082
      %v4097 = vpack.c.b16 %v4085, %v4084
      %v4098 = vpack.c.b16 %v4087, %v4086
      %v4099 = vpack.c.b16 %v4089, %v4088
      %v4100 = vpack.c.b16 %v4091, %v4090
      %v4101 = vpack.c.b16 %v4093, %v4092
      %4110 = vmatpush.bf16.msra.mxu0 %v4101
      %4111 = vmatpush.bf16.msra.mxu0 %v4100
      %4112 = vmatpush.bf16.msra.mxu0 %v4099
      %4113 = vmatpush.bf16.msra.mxu0 %v4098
      %4114 = vmatpush.bf16.msra.mxu0 %v4097
      %4115 = vmatpush.bf16.msra.mxu0 %v4096
      %4116 = vmatpush.bf16.msra.mxu0 %v4095
      %4117 = vmatpush.bf16.msra.mxu0 %v4094
      %4118 = vmatmul.bf16.gmra.mxu0 %v4029
      %v4119 = vpop.f32.mrf.mxu0
      %v4120 = vadd.f32 0.0, %v4119
      %v4121 = vpop.f32.mrf.mxu0
      %v4122 = vadd.f32 0.0, %v4121
      %4123 = vmatmul.bf16.gmra.mxu0 %v4030
      %v4124 = vpop.f32.mrf.mxu0
      %v4125 = vadd.f32 0.0, %v4124
      %v4126 = vpop.f32.mrf.mxu0
      %v4127 = vadd.f32 0.0, %v4126
      %4128 = vmatmul.bf16.gmra.mxu0 %v4031
      %v4129 = vpop.f32.mrf.mxu0
      %v4130 = vadd.f32 0.0, %v4129
      %v4131 = vpop.f32.mrf.mxu0
      %v4132 = vadd.f32 0.0, %v4131
      %4133 = vmatmul.bf16.gmra.mxu0 %v4032
      %v4134 = vpop.f32.mrf.mxu0
      %v4135 = vadd.f32 0.0, %v4134
      %v4136 = vpop.f32.mrf.mxu0
      %v4137 = vadd.f32 0.0, %v4136
      %4138 = vmatmul.bf16.gmra.mxu0 %v4033
      %v4139 = vpop.f32.mrf.mxu0
      %v4140 = vadd.f32 0.0, %v4139
      %v4141 = vpop.f32.mrf.mxu0
      %v4142 = vadd.f32 0.0, %v4141
      %4143 = vmatmul.bf16.gmra.mxu0 %v4034
      %v4144 = vpop.f32.mrf.mxu0
      %v4145 = vadd.f32 0.0, %v4144
      %v4146 = vpop.f32.mrf.mxu0
      %v4147 = vadd.f32 0.0, %v4146
      %4148 = vmatmul.bf16.gmra.mxu0 %v4035
      %v4149 = vpop.f32.mrf.mxu0
      %v4150 = vadd.f32 0.0, %v4149
      %v4151 = vpop.f32.mrf.mxu0
      %v4152 = vadd.f32 0.0, %v4151
      %4153 = vmatmul.bf16.gmra.mxu0 %v4036
      %v4154 = vpop.f32.mrf.mxu0
      %v4155 = vadd.f32 0.0, %v4154
      %v4156 = vpop.f32.mrf.mxu0
      %v4157 = vadd.f32 0.0, %v4156
      %4158 = vmatmul.bf16.gmra.mxu0 %v4037
      %v4159 = vpop.f32.mrf.mxu0
      %v4160 = vadd.f32 0.0, %v4159
      %v4161 = vpop.f32.mrf.mxu0
      %v4162 = vadd.f32 0.0, %v4161
      %4163 = vmatmul.bf16.gmra.mxu0 %v4038
      %v4164 = vpop.f32.mrf.mxu0
      %v4165 = vadd.f32 0.0, %v4164
      %v4166 = vpop.f32.mrf.mxu0
      %v4167 = vadd.f32 0.0, %v4166
      %4168 = vmatmul.bf16.gmra.mxu0 %v4039
      %v4169 = vpop.f32.mrf.mxu0
      %v4170 = vadd.f32 0.0, %v4169
      %v4171 = vpop.f32.mrf.mxu0
      %v4172 = vadd.f32 0.0, %v4171
      %4173 = vmatmul.bf16.gmra.mxu0 %v4040
      %v4174 = vpop.f32.mrf.mxu0
      %v4175 = vadd.f32 0.0, %v4174
      %v4176 = vpop.f32.mrf.mxu0
      %v4177 = vadd.f32 0.0, %v4176
      %4178 = vmatmul.bf16.gmra.mxu0 %v4041
      %v4179 = vpop.f32.mrf.mxu0
      %v4180 = vadd.f32 0.0, %v4179
      %v4181 = vpop.f32.mrf.mxu0
      %v4182 = vadd.f32 0.0, %v4181
      %4183 = vmatmul.bf16.gmra.mxu0 %v4042
      %v4184 = vpop.f32.mrf.mxu0
      %v4185 = vadd.f32 0.0, %v4184
      %v4186 = vpop.f32.mrf.mxu0
      %v4187 = vadd.f32 0.0, %v4186
      %4188 = vmatmul.bf16.gmra.mxu0 %v4043
      %v4189 = vpop.f32.mrf.mxu0
      %v4190 = vadd.f32 0.0, %v4189
      %v4191 = vpop.f32.mrf.mxu0
      %v4192 = vadd.f32 0.0, %v4191
      %4193 = vmatmul.bf16.gmra.mxu0 %v4044
      %v4194 = vpop.f32.mrf.mxu0
      %v4195 = vadd.f32 0.0, %v4194
      %v4196 = vpop.f32.mrf.mxu0
      %v4197 = vadd.f32 0.0, %v4196
      %4198 = vdwg.mxu0
      %v4199 = vadd.f32 %v3965, %v4120
      %v4200 = vadd.f32 %v3966, %v4122
      %v4201 = vadd.f32 %v3967, %v4125
      %v4202 = vadd.f32 %v3968, %v4127
      %v4203 = vadd.f32 %v3969, %v4130
      %v4204 = vadd.f32 %v3970, %v4132
      %v4205 = vadd.f32 %v3971, %v4135
      %v4206 = vadd.f32 %v3972, %v4137
      %v4207 = vadd.f32 %v3973, %v4140
      %v4208 = vadd.f32 %v3974, %v4142
      %v4209 = vadd.f32 %v3975, %v4145
      %v4210 = vadd.f32 %v3976, %v4147
      %v4211 = vadd.f32 %v3977, %v4150
      %v4212 = vadd.f32 %v3978, %v4152
      %v4213 = vadd.f32 %v3979, %v4155
      %v4214 = vadd.f32 %v3980, %v4157
      %v4215 = vadd.f32 %v3981, %v4160
      %v4216 = vadd.f32 %v3982, %v4162
      %v4217 = vadd.f32 %v3983, %v4165
      %v4218 = vadd.f32 %v3984, %v4167
      %v4219 = vadd.f32 %v3985, %v4170
      %v4220 = vadd.f32 %v3986, %v4172
      %v4221 = vadd.f32 %v3987, %v4175
      %v4222 = vadd.f32 %v3988, %v4177
      %v4223 = vadd.f32 %v3989, %v4180
      %v4224 = vadd.f32 %v3990, %v4182
      %v4225 = vadd.f32 %v3991, %v4185
      %v4226 = vadd.f32 %v3992, %v4187
      %v4227 = vadd.f32 %v3993, %v4190
      %v4228 = vadd.f32 %v3994, %v4192
      %v4229 = vadd.f32 %v3995, %v4195
      %v4230 = vadd.f32 %v3996, %v4197
      %v4231 = vld [vmem:[%s3762 + $0x9] sm:$0xff]
      %v4232 = vld [vmem:[%s3762 + $0x11] sm:$0xff]
      %v4233 = vld [vmem:[%s3762 + $0x29] sm:$0xff]
      %v4234 = vld [vmem:[%s3762 + $0x31] sm:$0xff]
      %v4235 = vld [vmem:[%s3762 + $0x49] sm:$0xff]
      %v4236 = vld [vmem:[%s3762 + $0x51] sm:$0xff]
      %v4237 = vld [vmem:[%s3762 + $0x69] sm:$0xff]
      %v4238 = vld [vmem:[%s3762 + $0x71] sm:$0xff]
      %v4239 = vld [vmem:[%s3762 + $0x89] sm:$0xff]
      %v4240 = vld [vmem:[%s3762 + $0x91] sm:$0xff]
      %v4241 = vld [vmem:[%s3762 + $0xa9] sm:$0xff]
      %v4242 = vld [vmem:[%s3762 + $0xb1] sm:$0xff]
      %v4243 = vld [vmem:[%s3762 + $0xc9] sm:$0xff]
      %v4244 = vld [vmem:[%s3762 + $0xd1] sm:$0xff]
      %v4245 = vld [vmem:[%s3762 + $0xe9] sm:$0xff]
      %v4246 = vld [vmem:[%s3762 + $0xf1] sm:$0xff]
      %v4247 = vld [vmem:[%s3762 + $0x109] sm:$0xff]
      %v4248 = vld [vmem:[%s3762 + $0x111] sm:$0xff]
      %v4249 = vld [vmem:[%s3762 + $0x129] sm:$0xff]
      %v4250 = vld [vmem:[%s3762 + $0x131] sm:$0xff]
      %v4251 = vld [vmem:[%s3762 + $0x149] sm:$0xff]
      %v4252 = vld [vmem:[%s3762 + $0x151] sm:$0xff]
      %v4253 = vld [vmem:[%s3762 + $0x169] sm:$0xff]
      %v4254 = vld [vmem:[%s3762 + $0x171] sm:$0xff]
      %v4255 = vld [vmem:[%s3762 + $0x189] sm:$0xff]
      %v4256 = vld [vmem:[%s3762 + $0x191] sm:$0xff]
      %v4257 = vld [vmem:[%s3762 + $0x1a9] sm:$0xff]
      %v4258 = vld [vmem:[%s3762 + $0x1b1] sm:$0xff]
      %v4259 = vld [vmem:[%s3762 + $0x1c9] sm:$0xff]
      %v4260 = vld [vmem:[%s3762 + $0x1d1] sm:$0xff]
      %v4261 = vld [vmem:[%s3762 + $0x1e9] sm:$0xff]
      %v4262 = vld [vmem:[%s3762 + $0x1f1] sm:$0xff]
      %v4263 = vpack.c.bf16 %v4232, %v4231
      %v4264 = vpack.c.bf16 %v4234, %v4233
      %v4265 = vpack.c.bf16 %v4236, %v4235
      %v4266 = vpack.c.bf16 %v4238, %v4237
      %v4267 = vpack.c.bf16 %v4240, %v4239
      %v4268 = vpack.c.bf16 %v4242, %v4241
      %v4269 = vpack.c.bf16 %v4244, %v4243
      %v4270 = vpack.c.bf16 %v4246, %v4245
      %v4271 = vpack.c.bf16 %v4248, %v4247
      %v4272 = vpack.c.bf16 %v4250, %v4249
      %v4273 = vpack.c.bf16 %v4252, %v4251
      %v4274 = vpack.c.bf16 %v4254, %v4253
      %v4275 = vpack.c.bf16 %v4256, %v4255
      %v4276 = vpack.c.bf16 %v4258, %v4257
      %v4277 = vpack.c.bf16 %v4260, %v4259
      %v4278 = vpack.c.bf16 %v4262, %v4261
      %s4279 = scalar_lea.vmem %s3, 512
      %v4280 = vld [vmem:[%s4279] sm:$0xf]
      %v4281 = vld [vmem:[%s4279 + $0x4] sm:$0xf]
      %v4282 = vld [vmem:[%s4279 + $0x8] sm:$0xf]
      %v4283 = vld [vmem:[%s4279 + $0xc] sm:$0xf]
      %v4284 = vld [vmem:[%s4279 + $0x10] sm:$0xf]
      %v4285 = vld [vmem:[%s4279 + $0x14] sm:$0xf]
      %v4286 = vld [vmem:[%s4279 + $0x18] sm:$0xf]
      %v4287 = vld [vmem:[%s4279 + $0x1c] sm:$0xf]
      %v4288 = vld [vmem:[%s4279 + $0x20] sm:$0xf]
      %v4289 = vld [vmem:[%s4279 + $0x24] sm:$0xf]
      %v4290 = vld [vmem:[%s4279 + $0x28] sm:$0xf]
      %v4291 = vld [vmem:[%s4279 + $0x2c] sm:$0xf]
      %v4292 = vld [vmem:[%s4279 + $0x30] sm:$0xf]
      %v4293 = vld [vmem:[%s4279 + $0x34] sm:$0xf]
      %v4294 = vld [vmem:[%s4279 + $0x38] sm:$0xf]
      %v4295 = vld [vmem:[%s4279 + $0x3c] sm:$0xf]
      %v4312 = vunpack.c.l.b16 %v4280
      %v4313 = vunpack.c.l.b16 %v4281
      %v4314 = vunpack.c.l.b16 %v4282
      %v4315 = vunpack.c.l.b16 %v4283
      %v4316 = vunpack.c.l.b16 %v4284
      %v4317 = vunpack.c.l.b16 %v4285
      %v4318 = vunpack.c.l.b16 %v4286
      %v4319 = vunpack.c.l.b16 %v4287
      %v4320 = vunpack.c.l.b16 %v4288
      %v4321 = vunpack.c.l.b16 %v4289
      %v4322 = vunpack.c.l.b16 %v4290
      %v4323 = vunpack.c.l.b16 %v4291
      %v4324 = vunpack.c.l.b16 %v4292
      %v4325 = vunpack.c.l.b16 %v4293
      %v4326 = vunpack.c.l.b16 %v4294
      %v4327 = vunpack.c.l.b16 %v4295
      %v4328 = vpack.c.b16 %v4313, %v4312
      %v4329 = vpack.c.b16 %v4315, %v4314
      %v4330 = vpack.c.b16 %v4317, %v4316
      %v4331 = vpack.c.b16 %v4319, %v4318
      %v4332 = vpack.c.b16 %v4321, %v4320
      %v4333 = vpack.c.b16 %v4323, %v4322
      %v4334 = vpack.c.b16 %v4325, %v4324
      %v4335 = vpack.c.b16 %v4327, %v4326
      %4344 = vmatpush.bf16.msra.mxu0 %v4335
      %4345 = vmatpush.bf16.msra.mxu0 %v4334
      %4346 = vmatpush.bf16.msra.mxu0 %v4333
      %4347 = vmatpush.bf16.msra.mxu0 %v4332
      %4348 = vmatpush.bf16.msra.mxu0 %v4331
      %4349 = vmatpush.bf16.msra.mxu0 %v4330
      %4350 = vmatpush.bf16.msra.mxu0 %v4329
      %4351 = vmatpush.bf16.msra.mxu0 %v4328
      %4352 = vmatmul.bf16.gmra.mxu0 %v4263
      %v4353 = vpop.f32.mrf.mxu0
      %v4354 = vadd.f32 0.0, %v4353
      %v4355 = vpop.f32.mrf.mxu0
      %v4356 = vadd.f32 0.0, %v4355
      %4357 = vmatmul.bf16.gmra.mxu0 %v4264
      %v4358 = vpop.f32.mrf.mxu0
      %v4359 = vadd.f32 0.0, %v4358
      %v4360 = vpop.f32.mrf.mxu0
      %v4361 = vadd.f32 0.0, %v4360
      %4362 = vmatmul.bf16.gmra.mxu0 %v4265
      %v4363 = vpop.f32.mrf.mxu0
      %v4364 = vadd.f32 0.0, %v4363
      %v4365 = vpop.f32.mrf.mxu0
      %v4366 = vadd.f32 0.0, %v4365
      %4367 = vmatmul.bf16.gmra.mxu0 %v4266
      %v4368 = vpop.f32.mrf.mxu0
      %v4369 = vadd.f32 0.0, %v4368
      %v4370 = vpop.f32.mrf.mxu0
      %v4371 = vadd.f32 0.0, %v4370
      %4372 = vmatmul.bf16.gmra.mxu0 %v4267
      %v4373 = vpop.f32.mrf.mxu0
      %v4374 = vadd.f32 0.0, %v4373
      %v4375 = vpop.f32.mrf.mxu0
      %v4376 = vadd.f32 0.0, %v4375
      %4377 = vmatmul.bf16.gmra.mxu0 %v4268
      %v4378 = vpop.f32.mrf.mxu0
      %v4379 = vadd.f32 0.0, %v4378
      %v4380 = vpop.f32.mrf.mxu0
      %v4381 = vadd.f32 0.0, %v4380
      %4382 = vmatmul.bf16.gmra.mxu0 %v4269
      %v4383 = vpop.f32.mrf.mxu0
      %v4384 = vadd.f32 0.0, %v4383
      %v4385 = vpop.f32.mrf.mxu0
      %v4386 = vadd.f32 0.0, %v4385
      %4387 = vmatmul.bf16.gmra.mxu0 %v4270
      %v4388 = vpop.f32.mrf.mxu0
      %v4389 = vadd.f32 0.0, %v4388
      %v4390 = vpop.f32.mrf.mxu0
      %v4391 = vadd.f32 0.0, %v4390
      %4392 = vmatmul.bf16.gmra.mxu0 %v4271
      %v4393 = vpop.f32.mrf.mxu0
      %v4394 = vadd.f32 0.0, %v4393
      %v4395 = vpop.f32.mrf.mxu0
      %v4396 = vadd.f32 0.0, %v4395
      %4397 = vmatmul.bf16.gmra.mxu0 %v4272
      %v4398 = vpop.f32.mrf.mxu0
      %v4399 = vadd.f32 0.0, %v4398
      %v4400 = vpop.f32.mrf.mxu0
      %v4401 = vadd.f32 0.0, %v4400
      %4402 = vmatmul.bf16.gmra.mxu0 %v4273
      %v4403 = vpop.f32.mrf.mxu0
      %v4404 = vadd.f32 0.0, %v4403
      %v4405 = vpop.f32.mrf.mxu0
      %v4406 = vadd.f32 0.0, %v4405
      %4407 = vmatmul.bf16.gmra.mxu0 %v4274
      %v4408 = vpop.f32.mrf.mxu0
      %v4409 = vadd.f32 0.0, %v4408
      %v4410 = vpop.f32.mrf.mxu0
      %v4411 = vadd.f32 0.0, %v4410
      %4412 = vmatmul.bf16.gmra.mxu0 %v4275
      %v4413 = vpop.f32.mrf.mxu0
      %v4414 = vadd.f32 0.0, %v4413
      %v4415 = vpop.f32.mrf.mxu0
      %v4416 = vadd.f32 0.0, %v4415
      %4417 = vmatmul.bf16.gmra.mxu0 %v4276
      %v4418 = vpop.f32.mrf.mxu0
      %v4419 = vadd.f32 0.0, %v4418
      %v4420 = vpop.f32.mrf.mxu0
      %v4421 = vadd.f32 0.0, %v4420
      %4422 = vmatmul.bf16.gmra.mxu0 %v4277
      %v4423 = vpop.f32.mrf.mxu0
      %v4424 = vadd.f32 0.0, %v4423
      %v4425 = vpop.f32.mrf.mxu0
      %v4426 = vadd.f32 0.0, %v4425
      %4427 = vmatmul.bf16.gmra.mxu0 %v4278
      %v4428 = vpop.f32.mrf.mxu0
      %v4429 = vadd.f32 0.0, %v4428
      %v4430 = vpop.f32.mrf.mxu0
      %v4431 = vadd.f32 0.0, %v4430
      %4432 = vdwg.mxu0
      %v4433 = vadd.f32 %v4199, %v4354
      %v4434 = vadd.f32 %v4200, %v4356
      %v4435 = vadd.f32 %v4201, %v4359
      %v4436 = vadd.f32 %v4202, %v4361
      %v4437 = vadd.f32 %v4203, %v4364
      %v4438 = vadd.f32 %v4204, %v4366
      %v4439 = vadd.f32 %v4205, %v4369
      %v4440 = vadd.f32 %v4206, %v4371
      %v4441 = vadd.f32 %v4207, %v4374
      %v4442 = vadd.f32 %v4208, %v4376
      %v4443 = vadd.f32 %v4209, %v4379
      %v4444 = vadd.f32 %v4210, %v4381
      %v4445 = vadd.f32 %v4211, %v4384
      %v4446 = vadd.f32 %v4212, %v4386
      %v4447 = vadd.f32 %v4213, %v4389
      %v4448 = vadd.f32 %v4214, %v4391
      %v4449 = vadd.f32 %v4215, %v4394
      %v4450 = vadd.f32 %v4216, %v4396
      %v4451 = vadd.f32 %v4217, %v4399
      %v4452 = vadd.f32 %v4218, %v4401
      %v4453 = vadd.f32 %v4219, %v4404
      %v4454 = vadd.f32 %v4220, %v4406
      %v4455 = vadd.f32 %v4221, %v4409
      %v4456 = vadd.f32 %v4222, %v4411
      %v4457 = vadd.f32 %v4223, %v4414
      %v4458 = vadd.f32 %v4224, %v4416
      %v4459 = vadd.f32 %v4225, %v4419
      %v4460 = vadd.f32 %v4226, %v4421
      %v4461 = vadd.f32 %v4227, %v4424
      %v4462 = vadd.f32 %v4228, %v4426
      %v4463 = vadd.f32 %v4229, %v4429
      %v4464 = vadd.f32 %v4230, %v4431
      %v4465 = vld [vmem:[%s4] sm:$0x1]
      %v4467 = vperm.slane %v4465, 0
      %v4469 = vadd.f32 %v4433, %v4467
      %v4470 = vadd.f32 %v4434, %v4467
      %v4471 = vadd.f32 %v4435, %v4467
      %v4472 = vadd.f32 %v4436, %v4467
      %v4473 = vadd.f32 %v4437, %v4467
      %v4474 = vadd.f32 %v4438, %v4467
      %v4475 = vadd.f32 %v4439, %v4467
      %v4476 = vadd.f32 %v4440, %v4467
      %v4477 = vadd.f32 %v4441, %v4467
      %v4478 = vadd.f32 %v4442, %v4467
      %v4479 = vadd.f32 %v4443, %v4467
      %v4480 = vadd.f32 %v4444, %v4467
      %v4481 = vadd.f32 %v4445, %v4467
      %v4482 = vadd.f32 %v4446, %v4467
      %v4483 = vadd.f32 %v4447, %v4467
      %v4484 = vadd.f32 %v4448, %v4467
      %v4485 = vadd.f32 %v4449, %v4467
      %v4486 = vadd.f32 %v4450, %v4467
      %v4487 = vadd.f32 %v4451, %v4467
      %v4488 = vadd.f32 %v4452, %v4467
      %v4489 = vadd.f32 %v4453, %v4467
      %v4490 = vadd.f32 %v4454, %v4467
      %v4491 = vadd.f32 %v4455, %v4467
      %v4492 = vadd.f32 %v4456, %v4467
      %v4493 = vadd.f32 %v4457, %v4467
      %v4494 = vadd.f32 %v4458, %v4467
      %v4495 = vadd.f32 %v4459, %v4467
      %v4496 = vadd.f32 %v4460, %v4467
      %v4497 = vadd.f32 %v4461, %v4467
      %v4498 = vadd.f32 %v4462, %v4467
      %v4499 = vadd.f32 %v4463, %v4467
      %v4500 = vadd.f32 %v4464, %v4467
      %v4501 = vmax.f32 %v4469, 0.0
      %v4502 = vmax.f32 %v4470, 0.0
      %v4503 = vmax.f32 %v4471, 0.0
      %v4504 = vmax.f32 %v4472, 0.0
      %v4505 = vmax.f32 %v4473, 0.0
      %v4506 = vmax.f32 %v4474, 0.0
      %v4507 = vmax.f32 %v4475, 0.0
      %v4508 = vmax.f32 %v4476, 0.0
      %v4509 = vmax.f32 %v4477, 0.0
      %v4510 = vmax.f32 %v4478, 0.0
      %v4511 = vmax.f32 %v4479, 0.0
      %v4512 = vmax.f32 %v4480, 0.0
      %v4513 = vmax.f32 %v4481, 0.0
      %v4514 = vmax.f32 %v4482, 0.0
      %v4515 = vmax.f32 %v4483, 0.0
      %v4516 = vmax.f32 %v4484, 0.0
      %v4517 = vmax.f32 %v4485, 0.0
      %v4518 = vmax.f32 %v4486, 0.0
      %v4519 = vmax.f32 %v4487, 0.0
      %v4520 = vmax.f32 %v4488, 0.0
      %v4521 = vmax.f32 %v4489, 0.0
      %v4522 = vmax.f32 %v4490, 0.0
      %v4523 = vmax.f32 %v4491, 0.0
      %v4524 = vmax.f32 %v4492, 0.0
      %v4525 = vmax.f32 %v4493, 0.0
      %v4526 = vmax.f32 %v4494, 0.0
      %v4527 = vmax.f32 %v4495, 0.0
      %v4528 = vmax.f32 %v4496, 0.0
      %v4529 = vmax.f32 %v4497, 0.0
      %v4530 = vmax.f32 %v4498, 0.0
      %v4531 = vmax.f32 %v4499, 0.0
      %v4532 = vmax.f32 %v4500, 0.0
      %4533 = vst [vmem:[%s224] sm:$0xff] %v4501
      %4534 = vst [vmem:[%s224 + $0x8] sm:$0xff] %v4502
      %4535 = vst [vmem:[%s224 + $0x10] sm:$0xff] %v4503
      %4536 = vst [vmem:[%s224 + $0x18] sm:$0xff] %v4504
      %4537 = vst [vmem:[%s224 + $0x20] sm:$0xff] %v4505
      %4538 = vst [vmem:[%s224 + $0x28] sm:$0xff] %v4506
      %4539 = vst [vmem:[%s224 + $0x30] sm:$0xff] %v4507
      %4540 = vst [vmem:[%s224 + $0x38] sm:$0xff] %v4508
      %4541 = vst [vmem:[%s224 + $0x40] sm:$0xff] %v4509
      %4542 = vst [vmem:[%s224 + $0x48] sm:$0xff] %v4510
      %4543 = vst [vmem:[%s224 + $0x50] sm:$0xff] %v4511
      %4544 = vst [vmem:[%s224 + $0x58] sm:$0xff] %v4512
      %4545 = vst [vmem:[%s224 + $0x60] sm:$0xff] %v4513
      %4546 = vst [vmem:[%s224 + $0x68] sm:$0xff] %v4514
      %4547 = vst [vmem:[%s224 + $0x70] sm:$0xff] %v4515
      %4548 = vst [vmem:[%s224 + $0x78] sm:$0xff] %v4516
      %4549 = vst [vmem:[%s224 + $0x80] sm:$0xff] %v4517
      %4550 = vst [vmem:[%s224 + $0x88] sm:$0xff] %v4518
      %4551 = vst [vmem:[%s224 + $0x90] sm:$0xff] %v4519
      %4552 = vst [vmem:[%s224 + $0x98] sm:$0xff] %v4520
      %4553 = vst [vmem:[%s224 + $0xa0] sm:$0xff] %v4521
      %4554 = vst [vmem:[%s224 + $0xa8] sm:$0xff] %v4522
      %4555 = vst [vmem:[%s224 + $0xb0] sm:$0xff] %v4523
      %4556 = vst [vmem:[%s224 + $0xb8] sm:$0xff] %v4524
      %4557 = vst [vmem:[%s224 + $0xc0] sm:$0xff] %v4525
      %4558 = vst [vmem:[%s224 + $0xc8] sm:$0xff] %v4526
      %4559 = vst [vmem:[%s224 + $0xd0] sm:$0xff] %v4527
      %4560 = vst [vmem:[%s224 + $0xd8] sm:$0xff] %v4528
      %4561 = vst [vmem:[%s224 + $0xe0] sm:$0xff] %v4529
      %4562 = vst [vmem:[%s224 + $0xe8] sm:$0xff] %v4530
      %4563 = vst [vmem:[%s224 + $0xf0] sm:$0xff] %v4531
      %4564 = vst [vmem:[%s224 + $0xf8] sm:$0xff] %v4532
      %p4565 = scmp.lt.s32.totalorder %s16, 1
      %s4566 = scalar_select %p4565, %s16, 1
      %s4567 = smul.addr %s4566, 32
      %s4568 = smul.addr %s4567, 8
      %s4569 = scalar_lea.vmem %s5, %s4568
      // Predicated region
      $region41: #{double_convolution.1} parent=39 // pred_check
        %p4570 = pneg %p144
      $region42: #{double_convolution.1} parent=39 // pred_check_branch
        %4572 = sbr.rel (%p4570) target = $region44
      $region43: #{double_convolution.1} parent=39 // pred_region
        _
      $region44: #{double_convolution.1} parent=39 // pred_fallthru
        _
    $region40: #{double_convolution.1} parent=5 // pred_fallthru
      _
    %p4573 = scmp.le.s32.totalorder 2, %s11
    // Predicated region
    $region45: #{double_convolution.1} parent=5 // pred_check
      %p4574 = pneg %p4573
    $region46: #{double_convolution.1} parent=5 // pred_check_branch
      %4576 = sbr.rel (%p4574) target = $region48
    $region47: #{double_convolution.1} parent=5 // pred_region
      %s4577 = ssub.s32 %s11, 2
      // Predicated region
      $region49: #{double_convolution.1} parent=47 // pred_check
        %p4578 = pneg %p150
      $region50: #{double_convolution.1} parent=47 // pred_check_branch
        %4580 = sbr.rel (%p4578) target = $region52
      $region51: #{double_convolution.1} parent=47 // pred_region
        %p4581 = scmp.lt.s32.totalorder %s17, 1
        %s4582 = scalar_select %p4581, %s17, 1
        %s4583 = smul.addr %s4582, 32
        %s4584 = smul.addr %s4583, 8
        %s4585 = scalar_lea.vmem %s5, %s4584
      $region52: #{double_convolution.1} parent=47 // pred_fallthru
        _
    $region48: #{double_convolution.1} parent=5 // pred_fallthru
      _
  $region6: #{double_convolution.1} parent=0 // loop_footer
    %s15 = sadd.s32 1, %s11
  $region7: #{double_convolution.1} parent=0 // loop_footer_branch
    %10 = sbr.rel target = $region3
  $region8: #{double_convolution.1} parent=0 // loop_exit
    _

</llo_original>
